<compile_context>
chip_gen: v6e
topology: v6e:2x2x1
jax: 0.10.0
libtpu: 0.0.40
codegen_flags: <defaults>
</compile_context>

<pallas_src>
import functools

import jax
import jax.numpy as jnp
from jax.experimental import pallas as pl
from jax.experimental.pallas import tpu as pltpu


def _basic_block_kernel(x_ref, w1_ref, b1_ref, w2_ref, b2_ref, cmask_ref,
                        out_ref, lhs_ref, y_ref, mid_ref, *, Wp, Cin, Cout):
    """One batch element, fully fused in VMEM.

    x_ref:    (H*Wp, Cin)        flattened NHWC activation, rows padded to Wp
    w*_ref:   (3*Cin, 3*Cout)    BN-scale-folded weights; row block = dy tap,
                                 column block = dx tap
    b*_ref:   (1, Cout)  f32     folded BN bias
    cmask_ref:(H*Wp, 1)  f32     1.0 on real columns, 0.0 on the Wp-W pad cols
    lhs_ref:  (H*Wp, 3*Cin)      scratch: dy-shifted copies folded along K
    y_ref:    (H*Wp+16, 3*Cout)  f32 scratch: matmul result with 8-row zero
                                 halos (keeps the result store sublane-aligned
                                 and absorbs the dx shift at the array ends)
    mid_ref:  (H*Wp, Cout)       scratch: relu(conv1+bn1), padded cols zeroed
    """
    HWp = lhs_ref.shape[0]
    M = HWp - Wp          # rows that have a valid image row above / below
    PAD = 8               # zero halo rows around the matmul result scratch

    # Zero the halos once per grid step (scratch is uninitialised / persists
    # across steps and across megacore cores).
    zrow = jnp.zeros((PAD, 3 * Cout), jnp.float32)
    y_ref[0:PAD, :] = zrow
    y_ref[PAD + HWp:PAD + HWp + PAD, :] = zrow

    def conv3x3(read, w_ref):
        # ---- LHS build: the three dy taps folded into K (K = 3*Cin).  All
        # sublane offsets (Wp, M) are multiples of 8. ----------------------
        zeros = jnp.zeros((Wp, Cin), dtype=lhs_ref.dtype)
        lhs_ref[0:Wp, 0:Cin] = zeros                     # dy=-1 : top zero pad
        lhs_ref[Wp:HWp, 0:Cin] = read(0, M)              # dy=-1 : row r-1
        lhs_ref[:, Cin:2 * Cin] = read(0, HWp)           # dy= 0 : row r
        lhs_ref[0:M, 2 * Cin:3 * Cin] = read(Wp, HWp)    # dy=+1 : row r+1
        lhs_ref[M:HWp, 2 * Cin:3 * Cin] = zeros          # dy=+1 : bottom pad

        # ---- ONE MXU matmul per conv: (HWp,3Cin)@(3Cin,3Cout), f32 acc. ---
        y_ref[PAD:PAD + HWp, :] = jnp.dot(
            lhs_ref[...], w_ref[...], preferred_element_type=jnp.float32)

        # ---- dx combine: the dx=-1 / dx=+1 partial sums are read one
        # flattened row below / above (sublane-offset loads; no roll, no
        # boundary masks).  A shift that crosses a row or image edge reads
        # either a zero-padded column of the source or a zero halo row. ----
        return (y_ref[PAD:PAD + HWp, Cout:2 * Cout]
                + y_ref[PAD - 1:PAD - 1 + HWp, 0:Cout]
                + y_ref[PAD + 1:PAD + 1 + HWp, 2 * Cout:3 * Cout])

    # conv1 + bn1 + relu.  The padded columns are forced back to zero so the
    # intermediate provides conv2's zero padding in W.
    c1 = conv3x3(lambda lo, hi: x_ref[lo:hi, :], w1_ref)
    mid_ref[...] = (jnp.maximum(c1 + b1_ref[...], 0.0)
                    * cmask_ref[...]).astype(mid_ref.dtype)

    # conv2 + bn2 + residual add + relu; the residual (= the input block) is
    # still resident in VMEM, no extra HBM read.
    c2 = conv3x3(lambda lo, hi: mid_ref[lo:hi, :], w2_ref)
    res = c2 + b2_ref[...] + x_ref[...].astype(jnp.float32)
    out_ref[...] = jnp.maximum(res, 0.0).astype(out_ref.dtype)


def _vmem_limit_bytes():
    # Per-generation scoped-VMEM budget (v7x: 64 MiB physical, v5e/v6e: 128),
    # leaving headroom for compiler-internal scratch.
    cap = 64 * 1024 * 1024
    try:
        cap = int(getattr(pltpu.get_tpu_info(), "vmem_capacity_bytes", cap))
    except Exception:
        pass
    return min((cap * 3) // 4, 96 * 1024 * 1024)


def _basic_block_pallas(x_flat, wf1, b1, wf2, b2, cmask, *, Wp):
    """x_flat: (N, H*Wp, Cin); wf*: (3*Cin, 3*Cout); b*: (1, Cout) f32;
    cmask: (H*Wp, 1) f32 column-validity mask."""
    N, HWp, Cin = x_flat.shape
    Cout = wf1.shape[1] // 3
    assert Wp % 8 == 0 and HWp % Wp == 0
    assert HWp // Wp >= 2, "need H >= 2"
    assert Cin == Cout, "residual add requires Cin == Cout (stride=1 block)"

    kernel = functools.partial(_basic_block_kernel, Wp=Wp, Cin=Cin, Cout=Cout)

    return pl.pallas_call(
        kernel,
        out_shape=jax.ShapeDtypeStruct((N, HWp, Cout), x_flat.dtype),
        grid=(N,),
        in_specs=[
            pl.BlockSpec((None, HWp, Cin), lambda n: (n, 0, 0)),     # x
            pl.BlockSpec((3 * Cin, 3 * Cout), lambda n: (0, 0)),     # wf1
            pl.BlockSpec((1, Cout), lambda n: (0, 0)),               # b1
            pl.BlockSpec((3 * Cin, 3 * Cout), lambda n: (0, 0)),     # wf2
            pl.BlockSpec((1, Cout), lambda n: (0, 0)),               # b2
            pl.BlockSpec((HWp, 1), lambda n: (0, 0)),                # cmask
        ],
        out_specs=pl.BlockSpec((None, HWp, Cout), lambda n: (n, 0, 0)),
        scratch_shapes=[
            pltpu.VMEM((HWp, 3 * Cin), x_flat.dtype),       # K-folded LHS
            pltpu.VMEM((HWp + 16, 3 * Cout), jnp.float32),  # haloed matmul out
            pltpu.VMEM((HWp, Cout), x_flat.dtype),          # relu(conv1+bn1)
        ],
        compiler_params=pltpu.CompilerParams(
            dimension_semantics=("parallel",),
            vmem_limit_bytes=_vmem_limit_bytes()),
    )(x_flat, wf1, b1, wf2, b2, cmask)


def _fold_bn_scale_into_weight(w_hwio, scale):
    """(3,3,Cin,Cout) HWIO weight * per-output-channel BN scale, reshaped to
    the K/N-folded (3*Cin, 3*Cout) layout: row block = dy tap, column block =
    dx tap."""
    kh, kw, cin, cout = w_hwio.shape
    w = w_hwio * scale.reshape(1, 1, 1, cout)
    return jnp.transpose(w, (0, 2, 1, 3)).reshape(kh * cin, kw * cout)


@functools.partial(jax.jit, static_argnames="compute_dtype")
def basic_block_forward(x_nchw, w1, s1, b1, w2, s2, b2, *, compute_dtype=None):
    """BasicBlock.forward (stride=1, downsample=None), NCHW in / NCHW out.

    w1/w2: (3,3,Cin,Cout) HWIO conv weights; s*/b*: folded BN scale / bias.
    compute_dtype: matmul operand dtype (use jnp.bfloat16 in production; f32
    matmul is a multi-pass MXU mode on v5e/v6e).  Accumulation is always f32.
    """
    N, C, H, W = x_nchw.shape
    Cout = w1.shape[-1]
    cdt = jnp.dtype(compute_dtype) if compute_dtype is not None else x_nchw.dtype

    # Pad each image row with zero columns up to Wp = round_up(W + 1, 8):
    #  * every flattened sublane slice offset becomes 8-aligned,
    #  * the dx +/-1 combine never needs boundary masks (shifted reads land on
    #    zero-padded columns).
    Wp = ((W + 8) // 8) * 8
    # NCHW -> NHWC, pad W, flatten to (N, H*Wp, C).
    # TODO(synk): keep the surrounding model NHWC to drop these HBM transposes.
    x = jnp.transpose(x_nchw, (0, 2, 3, 1))
    x = jnp.pad(x, ((0, 0), (0, 0), (0, Wp - W), (0, 0)))
    x = x.reshape(N, H * Wp, C).astype(cdt)

    wf1 = _fold_bn_scale_into_weight(w1, s1).astype(cdt)
    wf2 = _fold_bn_scale_into_weight(w2, s2).astype(cdt)

    # Column-validity mask (built once in XLA; zeroes the padded columns of
    # the intermediate so they act as conv2's zero padding).
    col = jnp.arange(H * Wp, dtype=jnp.int32) % Wp
    cmask = (col < W).astype(jnp.float32).reshape(H * Wp, 1)

    out = _basic_block_pallas(
        x, wf1, b1.reshape(1, Cout).astype(jnp.float32),
        wf2, b2.reshape(1, Cout).astype(jnp.float32), cmask, Wp=Wp)

    out = out.reshape(N, H, Wp, Cout)[:, :, :W, :]
    return jnp.transpose(out, (0, 3, 1, 2)).astype(x_nchw.dtype)


# ---------------- pure-JAX reference for the correctness check ---------------
def _ref_conv3x3(x_nhwc, w_hwio):
    return jax.lax.conv_general_dilated(
        x_nhwc, w_hwio, window_strides=(1, 1), padding=((1, 1), (1, 1)),
        dimension_numbers=("NHWC", "HWIO", "NHWC"),
        precision=jax.lax.Precision.HIGHEST)


def _ref_basic_block(x_nchw, w1, s1, b1, w2, s2, b2):
    x = jnp.transpose(x_nchw, (0, 2, 3, 1))
    out = _ref_conv3x3(x, w1) * s1 + b1
    out = jnp.maximum(out, 0.0)
    out = _ref_conv3x3(out, w2) * s2 + b2
    out = out + x
    out = jnp.maximum(out, 0.0)
    return jnp.transpose(out, (0, 3, 1, 2))


if __name__ == "__main__":
    key = jax.random.PRNGKey(0)
    N, C, H, W = 2, 4, 16, 16          # inplanes = planes = 4, stride = 1
    planes = C
    ks = jax.random.split(key, 12)

    x_nchw = jax.random.normal(ks[0], (N, C, H, W), jnp.float32)

    # Conv weights in PyTorch OIHW layout, converted to HWIO.
    w1_oihw = 0.1 * jax.random.normal(ks[1], (planes, C, 3, 3), jnp.float32)
    w2_oihw = 0.1 * jax.random.normal(ks[2], (planes, planes, 3, 3), jnp.float32)
    w1 = jnp.transpose(w1_oihw, (2, 3, 1, 0))
    w2 = jnp.transpose(w2_oihw, (2, 3, 1, 0))

    # Inference-mode BatchNorm parameters, folded to per-channel scale / bias.
    eps = 1e-5
    gamma1 = 1.0 + 0.1 * jax.random.normal(ks[3], (planes,), jnp.float32)
    beta1 = 0.1 * jax.random.normal(ks[4], (planes,), jnp.float32)
    mean1 = 0.1 * jax.random.normal(ks[5], (planes,), jnp.float32)
    var1 = jnp.abs(1.0 + 0.1 * jax.random.normal(ks[6], (planes,), jnp.float32))
    gamma2 = 1.0 + 0.1 * jax.random.normal(ks[7], (planes,), jnp.float32)
    beta2 = 0.1 * jax.random.normal(ks[8], (planes,), jnp.float32)
    mean2 = 0.1 * jax.random.normal(ks[9], (planes,), jnp.float32)
    var2 = jnp.abs(1.0 + 0.1 * jax.random.normal(ks[10], (planes,), jnp.float32))

    s1 = gamma1 / jnp.sqrt(var1 + eps)
    b1 = beta1 - mean1 * s1
    s2 = gamma2 / jnp.sqrt(var2 + eps)
    b2 = beta2 - mean2 * s2

    out = basic_block_forward(x_nchw, w1, s1, b1, w2, s2, b2)
    out = jax.block_until_ready(out)

    ref = _ref_basic_block(x_nchw, w1, s1, b1, w2, s2, b2)
    assert out.shape == (N, C, H, W)
    assert jnp.allclose(out, ref, rtol=2e-3, atol=2e-3), "mismatch vs reference"

    print("KERNEL_OK")
</pallas_src>

<mosaic_0001>
module attributes {stable_mosaic.version = 11 : i64} {
  func.func @_basic_block_kernel(%arg0: i32, %arg1: memref<1x384x4xf32, #tpu.memory_space<vmem>>, %arg2: memref<12x12xf32, #tpu.memory_space<vmem>>, %arg3: memref<1x4xf32, #tpu.memory_space<vmem>>, %arg4: memref<12x12xf32, #tpu.memory_space<vmem>>, %arg5: memref<1x4xf32, #tpu.memory_space<vmem>>, %arg6: memref<384x1xf32, #tpu.memory_space<vmem>>, %arg7: memref<1x384x4xf32, #tpu.memory_space<vmem>>, %arg8: memref<384x12xf32, #tpu.memory_space<vmem>>, %arg9: memref<400x12xf32, #tpu.memory_space<vmem>>, %arg10: memref<384x4xf32, #tpu.memory_space<vmem>>) attributes {dimension_semantics = [#tpu.dimension_semantics<parallel>], iteration_bounds = array<i64: 2>, scalar_prefetch = 0 : i64, scratch_operands = 3 : i64, tpu.core_type = #tpu.core_type<tc>, window_params = [{transform_indices = @transform_0, window_bounds = array<i64: 1, 384, 4>}, {pipeline_mode = #tpu.pipeline_mode<synchronous>, transform_indices = @transform_1, window_bounds = array<i64: 12, 12>}, {pipeline_mode = #tpu.pipeline_mode<synchronous>, transform_indices = @transform_2, window_bounds = array<i64: 1, 4>}, {pipeline_mode = #tpu.pipeline_mode<synchronous>, transform_indices = @transform_3, window_bounds = array<i64: 12, 12>}, {pipeline_mode = #tpu.pipeline_mode<synchronous>, transform_indices = @transform_4, window_bounds = array<i64: 1, 4>}, {pipeline_mode = #tpu.pipeline_mode<synchronous>, transform_indices = @transform_5, window_bounds = array<i64: 384, 1>}, {transform_indices = @transform_6, window_bounds = array<i64: 1, 384, 4>}]} {
    %cst = arith.constant 0.000000e+00 : f32
    %0 = vector.broadcast %cst : f32 to vector<8x12xf32>
    %c0 = arith.constant 0 : index
    %c0_0 = arith.constant 0 : index
    %1 = vector.load %arg9[%c0, %c0_0] : memref<400x12xf32, #tpu.memory_space<vmem>>, vector<8x12xf32>
    tpu.vector_store %arg9[%c0, %c0_0], %0 {strides = array<i32>} : memref<400x12xf32, #tpu.memory_space<vmem>>, vector<8x12xf32>,
    %c392 = arith.constant 392 : index
    %c0_1 = arith.constant 0 : index
    %2 = vector.load %arg9[%c392, %c0_1] : memref<400x12xf32, #tpu.memory_space<vmem>>, vector<8x12xf32>
    tpu.vector_store %arg9[%c392, %c0_1], %0 {strides = array<i32>} : memref<400x12xf32, #tpu.memory_space<vmem>>, vector<8x12xf32>,
    %cst_2 = arith.constant 0.000000e+00 : f32
    %3 = vector.broadcast %cst_2 : f32 to vector<24x4xf32>
    %c0_3 = arith.constant 0 : index
    %c0_4 = arith.constant 0 : index
    %4 = vector.load %arg8[%c0_3, %c0_4] : memref<384x12xf32, #tpu.memory_space<vmem>>, vector<24x4xf32>
    tpu.vector_store %arg8[%c0_3, %c0_4], %3 {strides = array<i32>} : memref<384x12xf32, #tpu.memory_space<vmem>>, vector<24x4xf32>,
    %c0_5 = arith.constant 0 : index
    %c0_6 = arith.constant 0 : index
    %c0_7 = arith.constant 0 : index
    %5 = vector.load %arg1[%c0_5, %c0_6, %c0_7] : memref<1x384x4xf32, #tpu.memory_space<vmem>>, vector<1x360x4xf32>
    %6 = vector.shape_cast %5 : vector<1x360x4xf32> to vector<360x4xf32>
    %c24 = arith.constant 24 : index
    %c0_8 = arith.constant 0 : index
    %7 = vector.load %arg8[%c24, %c0_8] : memref<384x12xf32, #tpu.memory_space<vmem>>, vector<360x4xf32>
    tpu.vector_store %arg8[%c24, %c0_8], %6 {strides = array<i32>} : memref<384x12xf32, #tpu.memory_space<vmem>>, vector<360x4xf32>,
    %c0_9 = arith.constant 0 : index
    %c0_10 = arith.constant 0 : index
    %c0_11 = arith.constant 0 : index
    %8 = vector.load %arg1[%c0_9, %c0_10, %c0_11] : memref<1x384x4xf32, #tpu.memory_space<vmem>>, vector<1x384x4xf32>
    %9 = vector.shape_cast %8 : vector<1x384x4xf32> to vector<384x4xf32>
    %c0_12 = arith.constant 0 : index
    %c4 = arith.constant 4 : index
    %10 = vector.load %arg8[%c0_12, %c4] : memref<384x12xf32, #tpu.memory_space<vmem>>, vector<384x4xf32>
    tpu.vector_store %arg8[%c0_12, %c4], %9 {strides = array<i32>} : memref<384x12xf32, #tpu.memory_space<vmem>>, vector<384x4xf32>,
    %c0_13 = arith.constant 0 : index
    %c24_14 = arith.constant 24 : index
    %c0_15 = arith.constant 0 : index
    %11 = vector.load %arg1[%c0_13, %c24_14, %c0_15] : memref<1x384x4xf32, #tpu.memory_space<vmem>>, vector<1x360x4xf32>
    %12 = vector.shape_cast %11 : vector<1x360x4xf32> to vector<360x4xf32>
    %c0_16 = arith.constant 0 : index
    %c8 = arith.constant 8 : index
    %13 = vector.load %arg8[%c0_16, %c8] : memref<384x12xf32, #tpu.memory_space<vmem>>, vector<360x4xf32>
    tpu.vector_store %arg8[%c0_16, %c8], %12 {strides = array<i32>} : memref<384x12xf32, #tpu.memory_space<vmem>>, vector<360x4xf32>,
    %c360 = arith.constant 360 : index
    %c8_17 = arith.constant 8 : index
    %14 = vector.load %arg8[%c360, %c8_17] : memref<384x12xf32, #tpu.memory_space<vmem>>, vector<24x4xf32>
    tpu.vector_store %arg8[%c360, %c8_17], %3 {strides = array<i32>} : memref<384x12xf32, #tpu.memory_space<vmem>>, vector<24x4xf32>,
    %c0_18 = arith.constant 0 : index
    %c0_19 = arith.constant 0 : index
    %15 = vector.load %arg8[%c0_18, %c0_19] : memref<384x12xf32, #tpu.memory_space<vmem>>, vector<384x12xf32>
    %c0_20 = arith.constant 0 : index
    %c0_21 = arith.constant 0 : index
    %16 = vector.load %arg2[%c0_20, %c0_21] : memref<12x12xf32, #tpu.memory_space<vmem>>, vector<12x12xf32>
    %cst_22 = arith.constant dense<0.000000e+00> : vector<384x12xf32>
    %17 = tpu.matmul %15, %16, %cst_22 {dimension_numbers = #tpu.dot_dimension_numbers<[1], [0], [0], [1], [0, 0, 1, 1], [], []>} : vector<384x12xf32>, vector<12x12xf32>, vector<384x12xf32> -> vector<384x12xf32>
    %c8_23 = arith.constant 8 : index
    %c0_24 = arith.constant 0 : index
    %18 = vector.load %arg9[%c8_23, %c0_24] : memref<400x12xf32, #tpu.memory_space<vmem>>, vector<384x12xf32>
    tpu.vector_store %arg9[%c8_23, %c0_24], %17 {strides = array<i32>} : memref<400x12xf32, #tpu.memory_space<vmem>>, vector<384x12xf32>,
    %c8_25 = arith.constant 8 : index
    %c4_26 = arith.constant 4 : index
    %19 = vector.load %arg9[%c8_25, %c4_26] : memref<400x12xf32, #tpu.memory_space<vmem>>, vector<384x4xf32>
    %c7 = arith.constant 7 : index
    %c0_27 = arith.constant 0 : index
    %20 = vector.load %arg9[%c7, %c0_27] : memref<400x12xf32, #tpu.memory_space<vmem>>, vector<384x4xf32>
    %21 = arith.addf %19, %20 : vector<384x4xf32>
    %c9 = arith.constant 9 : index
    %c8_28 = arith.constant 8 : index
    %22 = vector.load %arg9[%c9, %c8_28] : memref<400x12xf32, #tpu.memory_space<vmem>>, vector<384x4xf32>
    %23 = arith.addf %21, %22 : vector<384x4xf32>
    %c0_29 = arith.constant 0 : index
    %c0_30 = arith.constant 0 : index
    %24 = vector.load %arg3[%c0_29, %c0_30] : memref<1x4xf32, #tpu.memory_space<vmem>>, vector<1x4xf32>
    %25 = vector.broadcast %24 : vector<1x4xf32> to vector<384x4xf32>
    %26 = arith.addf %23, %25 : vector<384x4xf32>
    %cst_31 = arith.constant 0.000000e+00 : f32
    %27 = vector.broadcast %cst_31 : f32 to vector<384x4xf32>
    %28 = arith.maximumf %26, %27 : vector<384x4xf32>
    %c0_32 = arith.constant 0 : index
    %c0_33 = arith.constant 0 : index
    %29 = vector.load %arg6[%c0_32, %c0_33] : memref<384x1xf32, #tpu.memory_space<vmem>>, vector<384x1xf32>
    %30 = vector.broadcast %29 : vector<384x1xf32> to vector<384x4xf32>
    %31 = arith.mulf %28, %30 : vector<384x4xf32>
    %c0_34 = arith.constant 0 : index
    %c0_35 = arith.constant 0 : index
    %32 = vector.load %arg10[%c0_34, %c0_35] : memref<384x4xf32, #tpu.memory_space<vmem>>, vector<384x4xf32>
    tpu.vector_store %arg10[%c0_34, %c0_35], %31 {strides = array<i32>} : memref<384x4xf32, #tpu.memory_space<vmem>>, vector<384x4xf32>,
    %cst_36 = arith.constant 0.000000e+00 : f32
    %33 = vector.broadcast %cst_36 : f32 to vector<24x4xf32>
    %c0_37 = arith.constant 0 : index
    %c0_38 = arith.constant 0 : index
    %34 = vector.load %arg8[%c0_37, %c0_38] : memref<384x12xf32, #tpu.memory_space<vmem>>, vector<24x4xf32>
    tpu.vector_store %arg8[%c0_37, %c0_38], %33 {strides = array<i32>} : memref<384x12xf32, #tpu.memory_space<vmem>>, vector<24x4xf32>,
    %c0_39 = arith.constant 0 : index
    %c0_40 = arith.constant 0 : index
    %35 = vector.load %arg10[%c0_39, %c0_40] : memref<384x4xf32, #tpu.memory_space<vmem>>, vector<360x4xf32>
    %c24_41 = arith.constant 24 : index
    %c0_42 = arith.constant 0 : index
    %36 = vector.load %arg8[%c24_41, %c0_42] : memref<384x12xf32, #tpu.memory_space<vmem>>, vector<360x4xf32>
    tpu.vector_store %arg8[%c24_41, %c0_42], %35 {strides = array<i32>} : memref<384x12xf32, #tpu.memory_space<vmem>>, vector<360x4xf32>,
    %c0_43 = arith.constant 0 : index
    %c0_44 = arith.constant 0 : index
    %37 = vector.load %arg10[%c0_43, %c0_44] : memref<384x4xf32, #tpu.memory_space<vmem>>, vector<384x4xf32>
    %c0_45 = arith.constant 0 : index
    %c4_46 = arith.constant 4 : index
    %38 = vector.load %arg8[%c0_45, %c4_46] : memref<384x12xf32, #tpu.memory_space<vmem>>, vector<384x4xf32>
    tpu.vector_store %arg8[%c0_45, %c4_46], %37 {strides = array<i32>} : memref<384x12xf32, #tpu.memory_space<vmem>>, vector<384x4xf32>,
    %c24_47 = arith.constant 24 : index
    %c0_48 = arith.constant 0 : index
    %39 = vector.load %arg10[%c24_47, %c0_48] : memref<384x4xf32, #tpu.memory_space<vmem>>, vector<360x4xf32>
    %c0_49 = arith.constant 0 : index
    %c8_50 = arith.constant 8 : index
    %40 = vector.load %arg8[%c0_49, %c8_50] : memref<384x12xf32, #tpu.memory_space<vmem>>, vector<360x4xf32>
    tpu.vector_store %arg8[%c0_49, %c8_50], %39 {strides = array<i32>} : memref<384x12xf32, #tpu.memory_space<vmem>>, vector<360x4xf32>,
    %c360_51 = arith.constant 360 : index
    %c8_52 = arith.constant 8 : index
    %41 = vector.load %arg8[%c360_51, %c8_52] : memref<384x12xf32, #tpu.memory_space<vmem>>, vector<24x4xf32>
    tpu.vector_store %arg8[%c360_51, %c8_52], %33 {strides = array<i32>} : memref<384x12xf32, #tpu.memory_space<vmem>>, vector<24x4xf32>,
    %c0_53 = arith.constant 0 : index
    %c0_54 = arith.constant 0 : index
    %42 = vector.load %arg8[%c0_53, %c0_54] : memref<384x12xf32, #tpu.memory_space<vmem>>, vector<384x12xf32>
    %c0_55 = arith.constant 0 : index
    %c0_56 = arith.constant 0 : index
    %43 = vector.load %arg4[%c0_55, %c0_56] : memref<12x12xf32, #tpu.memory_space<vmem>>, vector<12x12xf32>
    %cst_57 = arith.constant dense<0.000000e+00> : vector<384x12xf32>
    %44 = tpu.matmul %42, %43, %cst_57 {dimension_numbers = #tpu.dot_dimension_numbers<[1], [0], [0], [1], [0, 0, 1, 1], [], []>} : vector<384x12xf32>, vector<12x12xf32>, vector<384x12xf32> -> vector<384x12xf32>
    %c8_58 = arith.constant 8 : index
    %c0_59 = arith.constant 0 : index
    %45 = vector.load %arg9[%c8_58, %c0_59] : memref<400x12xf32, #tpu.memory_space<vmem>>, vector<384x12xf32>
    tpu.vector_store %arg9[%c8_58, %c0_59], %44 {strides = array<i32>} : memref<400x12xf32, #tpu.memory_space<vmem>>, vector<384x12xf32>,
    %c8_60 = arith.constant 8 : index
    %c4_61 = arith.constant 4 : index
    %46 = vector.load %arg9[%c8_60, %c4_61] : memref<400x12xf32, #tpu.memory_space<vmem>>, vector<384x4xf32>
    %c7_62 = arith.constant 7 : index
    %c0_63 = arith.constant 0 : index
    %47 = vector.load %arg9[%c7_62, %c0_63] : memref<400x12xf32, #tpu.memory_space<vmem>>, vector<384x4xf32>
    %48 = arith.addf %46, %47 : vector<384x4xf32>
    %c9_64 = arith.constant 9 : index
    %c8_65 = arith.constant 8 : index
    %49 = vector.load %arg9[%c9_64, %c8_65] : memref<400x12xf32, #tpu.memory_space<vmem>>, vector<384x4xf32>
    %50 = arith.addf %48, %49 : vector<384x4xf32>
    %c0_66 = arith.constant 0 : index
    %c0_67 = arith.constant 0 : index
    %51 = vector.load %arg5[%c0_66, %c0_67] : memref<1x4xf32, #tpu.memory_space<vmem>>, vector<1x4xf32>
    %52 = vector.broadcast %51 : vector<1x4xf32> to vector<384x4xf32>
    %53 = arith.addf %50, %52 : vector<384x4xf32>
    %c0_68 = arith.constant 0 : index
    %c0_69 = arith.constant 0 : index
    %c0_70 = arith.constant 0 : index
    %54 = vector.load %arg1[%c0_68, %c0_69, %c0_70] : memref<1x384x4xf32, #tpu.memory_space<vmem>>, vector<1x384x4xf32>
    %55 = vector.shape_cast %54 : vector<1x384x4xf32> to vector<384x4xf32>
    %56 = arith.addf %53, %55 : vector<384x4xf32>
    %cst_71 = arith.constant 0.000000e+00 : f32
    %57 = vector.broadcast %cst_71 : f32 to vector<384x4xf32>
    %58 = arith.maximumf %56, %57 : vector<384x4xf32>
    %c0_72 = arith.constant 0 : index
    %c0_73 = arith.constant 0 : index
    %c0_74 = arith.constant 0 : index
    %59 = vector.load %arg7[%c0_72, %c0_73, %c0_74] : memref<1x384x4xf32, #tpu.memory_space<vmem>>, vector<1x384x4xf32>
    %60 = vector.shape_cast %59 : vector<1x384x4xf32> to vector<384x4xf32>
    %61 = vector.shape_cast %58 : vector<384x4xf32> to vector<1x384x4xf32>
    tpu.vector_store %arg7[%c0_72, %c0_73, %c0_74], %61 {strides = array<i32>} : memref<1x384x4xf32, #tpu.memory_space<vmem>>, vector<1x384x4xf32>,
    return
  }
  func.func @transform_0(%arg0: i32) -> (i32, i32, i32) {
    %c0_i32 = arith.constant 0 : i32
    %c0_i32_0 = arith.constant 0 : i32
    %c0_i32_1 = arith.constant 0 : i32
    return %arg0, %c0_i32, %c0_i32_0 : i32, i32, i32
  }
  func.func @transform_1(%arg0: i32) -> (i32, i32) {
    %c0_i32 = arith.constant 0 : i32
    %c0_i32_0 = arith.constant 0 : i32
    %c0_i32_1 = arith.constant 0 : i32
    return %c0_i32, %c0_i32_0 : i32, i32
  }
  func.func @transform_2(%arg0: i32) -> (i32, i32) {
    %c0_i32 = arith.constant 0 : i32
    %c0_i32_0 = arith.constant 0 : i32
    %c0_i32_1 = arith.constant 0 : i32
    return %c0_i32, %c0_i32_0 : i32, i32
  }
  func.func @transform_3(%arg0: i32) -> (i32, i32) {
    %c0_i32 = arith.constant 0 : i32
    %c0_i32_0 = arith.constant 0 : i32
    %c0_i32_1 = arith.constant 0 : i32
    return %c0_i32, %c0_i32_0 : i32, i32
  }
  func.func @transform_4(%arg0: i32) -> (i32, i32) {
    %c0_i32 = arith.constant 0 : i32
    %c0_i32_0 = arith.constant 0 : i32
    %c0_i32_1 = arith.constant 0 : i32
    return %c0_i32, %c0_i32_0 : i32, i32
  }
  func.func @transform_5(%arg0: i32) -> (i32, i32) {
    %c0_i32 = arith.constant 0 : i32
    %c0_i32_0 = arith.constant 0 : i32
    %c0_i32_1 = arith.constant 0 : i32
    return %c0_i32, %c0_i32_0 : i32, i32
  }
  func.func @transform_6(%arg0: i32) -> (i32, i32, i32) {
    %c0_i32 = arith.constant 0 : i32
    %c0_i32_0 = arith.constant 0 : i32
    %c0_i32_1 = arith.constant 0 : i32
    return %arg0, %c0_i32, %c0_i32_0 : i32, i32, i32
  }
}

</mosaic_0001>

<llo_original>
// kernel: basic_block_forward.1
$region0: #{basic_block_forward.1}
  #allocation0 [shape = 'u32[]', space=smem, size = 0x4, offset = 0x4, fixed_abs, tag = 'smem constant byte address 0x4 - core index']
  #allocation1 [shape = 'u32[144,128]{1,0:T(1,128)}', space=vmem, size = 0x12000, scoped, tag = 'internal scratch']
  #allocation2 [shape = 'f32[384,12]{1,0:T(8,128)}', space=vmem, size = 0x30000, scoped, tag = 'scratch operand']
  #allocation3 [shape = 'f32[400,12]{1,0:T(8,128)}', space=vmem, size = 0x32000, scoped, tag = 'scratch operand']
  #allocation4 [shape = 'f32[384,4]{1,0:T(8,128)}', space=vmem, size = 0x30000, scoped, tag = 'scratch operand']
  %s0 = inlined_call_operand.vmem [shape: f32[2,384,4], index: 0, kind: input, shape index: {}]
  %s1 = inlined_call_operand.vmem [shape: f32[12,12], index: 1, kind: input, shape index: {}]
  %s2 = inlined_call_operand.vmem [shape: f32[1,4], index: 2, kind: input, shape index: {}]
  %s3 = inlined_call_operand.vmem [shape: f32[12,12], index: 3, kind: input, shape index: {}]
  %s4 = inlined_call_operand.vmem [shape: f32[1,4], index: 4, kind: input, shape index: {}]
  %s5 = inlined_call_operand.vmem [shape: f32[384,1], index: 5, kind: input, shape index: {}]
  %s6 = inlined_call_operand.vmem [shape: f32[2,384,4], index: 6, kind: output, shape index: {}]
  %s7 = sld [smem:[#allocation0]]
  $region57: #{basic_block_forward.1} parent=0
    _
  %s9 = ssub.s32 1, %s7
  %s10 = scalar_select 0, %s9, %s7
  loop: start=0, step=1, limit=4
  $region2: #{basic_block_forward.1} parent=0 // loop_pre_header
    _
  $region3: #{basic_block_forward.1} parent=0 // loop_header
    %s12 = sphi 0, %s16
    %p13 = scmp.ge.s32.totalorder %s12, 4
    %s22 = sphi 0, %s24
    %s25 = sphi 0, %s22
    %s26 = sphi 0, %s25
    %s42 = sphi 0, %s26
    %s46 = sphi 0, %s46
    %s48 = sphi 0, %s46
    %s49 = sphi 0, %s48
    %s63 = sphi 0, %s49
    %s67 = sphi 0, %s67
    %s69 = sphi 0, %s67
    %s70 = sphi 0, %s69
    %s84 = sphi 0, %s70
    %s88 = sphi 0, %s88
    %s90 = sphi 0, %s88
    %s91 = sphi 0, %s90
    %s105 = sphi 0, %s91
    %s109 = sphi 0, %s109
    %s111 = sphi 0, %s109
    %s112 = sphi 0, %s111
    %s126 = sphi 0, %s112
    %s130 = sphi 0, %s130
    %s132 = sphi 0, %s130
    %s133 = sphi 0, %s132
    %s147 = sphi 0, %s133
    %s153 = sphi 0, %s155
    %s156 = sphi 0, %s153
    %s157 = sphi 0, %s156
    %s173 = sphi 0, %s157
  $region4: #{basic_block_forward.1} parent=0 // loop_header_branch
    %15 = sbr.rel (%p13) target = $region8
  $region5: #{basic_block_forward.1} parent=0 // loop_body
    %s17 = ssub.s32 %s12, 1
    %s18 = ssub.s32 %s12, 2
    %s19 = sadd.s32 %s12, 1
    %s20 = ssub.s32 %s12, %s19
    %p21 = scmp.eq.s32.totalorder %s20, 0
    %s23 = sadd.s32 %s22, 1
    %s24 = scalar_select %p21, %s22, %s23
    %p27 = pneg %p21
    %p28 = scmp.eq.s32.totalorder %s12, 1
    %p29 = por %p27, %p28
    %p30 = scmp.ne.s32.totalorder %s22, %s25
    %p31 = scmp.eq.s32.totalorder %s12, 0
    %p32 = por %p30, %p31
    %p33 = scmp.ne.s32.totalorder %s22, %s25
    %p34 = scmp.eq.s32.totalorder %s17, 1
    %p35 = por %p33, %p34
    %p36 = scmp.ne.s32.totalorder %s25, %s26
    %p37 = scmp.eq.s32.totalorder %s17, 0
    %p38 = por %p36, %p37
    %p39 = scmp.ne.s32.totalorder %s25, %s26
    %p40 = scmp.eq.s32.totalorder %s18, 1
    %p41 = por %p39, %p40
    %p43 = scmp.ne.s32.totalorder %s26, %s42
    %p44 = scmp.eq.s32.totalorder %s18, 0
    %p45 = por %p43, %p44
    %s47 = sadd.s32 %s46, 1
    %p50 = scmp.eq.s32.totalorder %s12, 1
    %p51 = scmp.ne.s32.totalorder %s46, %s48
    %p52 = scmp.eq.s32.totalorder %s12, 0
    %p53 = por %p51, %p52
    %p54 = scmp.ne.s32.totalorder %s46, %s48
    %p55 = scmp.eq.s32.totalorder %s17, 1
    %p56 = por %p54, %p55
    %p57 = scmp.ne.s32.totalorder %s48, %s49
    %p58 = scmp.eq.s32.totalorder %s17, 0
    %p59 = por %p57, %p58
    %p60 = scmp.ne.s32.totalorder %s48, %s49
    %p61 = scmp.eq.s32.totalorder %s18, 1
    %p62 = por %p60, %p61
    %p64 = scmp.ne.s32.totalorder %s49, %s63
    %p65 = scmp.eq.s32.totalorder %s18, 0
    %p66 = por %p64, %p65
    %s68 = sadd.s32 %s67, 1
    %p71 = scmp.eq.s32.totalorder %s12, 1
    %p72 = scmp.ne.s32.totalorder %s67, %s69
    %p73 = scmp.eq.s32.totalorder %s12, 0
    %p74 = por %p72, %p73
    %p75 = scmp.ne.s32.totalorder %s67, %s69
    %p76 = scmp.eq.s32.totalorder %s17, 1
    %p77 = por %p75, %p76
    %p78 = scmp.ne.s32.totalorder %s69, %s70
    %p79 = scmp.eq.s32.totalorder %s17, 0
    %p80 = por %p78, %p79
    %p81 = scmp.ne.s32.totalorder %s69, %s70
    %p82 = scmp.eq.s32.totalorder %s18, 1
    %p83 = por %p81, %p82
    %p85 = scmp.ne.s32.totalorder %s70, %s84
    %p86 = scmp.eq.s32.totalorder %s18, 0
    %p87 = por %p85, %p86
    %s89 = sadd.s32 %s88, 1
    %p92 = scmp.eq.s32.totalorder %s12, 1
    %p93 = scmp.ne.s32.totalorder %s88, %s90
    %p94 = scmp.eq.s32.totalorder %s12, 0
    %p95 = por %p93, %p94
    %p96 = scmp.ne.s32.totalorder %s88, %s90
    %p97 = scmp.eq.s32.totalorder %s17, 1
    %p98 = por %p96, %p97
    %p99 = scmp.ne.s32.totalorder %s90, %s91
    %p100 = scmp.eq.s32.totalorder %s17, 0
    %p101 = por %p99, %p100
    %p102 = scmp.ne.s32.totalorder %s90, %s91
    %p103 = scmp.eq.s32.totalorder %s18, 1
    %p104 = por %p102, %p103
    %p106 = scmp.ne.s32.totalorder %s91, %s105
    %p107 = scmp.eq.s32.totalorder %s18, 0
    %p108 = por %p106, %p107
    %s110 = sadd.s32 %s109, 1
    %p113 = scmp.eq.s32.totalorder %s12, 1
    %p114 = scmp.ne.s32.totalorder %s109, %s111
    %p115 = scmp.eq.s32.totalorder %s12, 0
    %p116 = por %p114, %p115
    %p117 = scmp.ne.s32.totalorder %s109, %s111
    %p118 = scmp.eq.s32.totalorder %s17, 1
    %p119 = por %p117, %p118
    %p120 = scmp.ne.s32.totalorder %s111, %s112
    %p121 = scmp.eq.s32.totalorder %s17, 0
    %p122 = por %p120, %p121
    %p123 = scmp.ne.s32.totalorder %s111, %s112
    %p124 = scmp.eq.s32.totalorder %s18, 1
    %p125 = por %p123, %p124
    %p127 = scmp.ne.s32.totalorder %s112, %s126
    %p128 = scmp.eq.s32.totalorder %s18, 0
    %p129 = por %p127, %p128
    %s131 = sadd.s32 %s130, 1
    %p134 = scmp.eq.s32.totalorder %s12, 1
    %p135 = scmp.ne.s32.totalorder %s130, %s132
    %p136 = scmp.eq.s32.totalorder %s12, 0
    %p137 = por %p135, %p136
    %p138 = scmp.ne.s32.totalorder %s130, %s132
    %p139 = scmp.eq.s32.totalorder %s17, 1
    %p140 = por %p138, %p139
    %p141 = scmp.ne.s32.totalorder %s132, %s133
    %p142 = scmp.eq.s32.totalorder %s17, 0
    %p143 = por %p141, %p142
    %p144 = scmp.ne.s32.totalorder %s132, %s133
    %p145 = scmp.eq.s32.totalorder %s18, 1
    %p146 = por %p144, %p145
    %p148 = scmp.ne.s32.totalorder %s133, %s147
    %p149 = scmp.eq.s32.totalorder %s18, 0
    %p150 = por %p148, %p149
    %s151 = ssub.s32 %s12, %s19
    %p152 = scmp.eq.s32.totalorder %s151, 0
    %s154 = sadd.s32 %s153, 1
    %s155 = scalar_select %p152, %s153, %s154
    %p158 = pneg %p152
    %p159 = scmp.eq.s32.totalorder %s12, 1
    %p160 = por %p158, %p159
    %p161 = scmp.ne.s32.totalorder %s153, %s156
    %p162 = scmp.eq.s32.totalorder %s12, 0
    %p163 = por %p161, %p162
    %p164 = scmp.ne.s32.totalorder %s153, %s156
    %p165 = scmp.eq.s32.totalorder %s17, 1
    %p166 = por %p164, %p165
    %p167 = scmp.ne.s32.totalorder %s156, %s157
    %p168 = scmp.eq.s32.totalorder %s17, 0
    %p169 = por %p167, %p168
    %p170 = scmp.ne.s32.totalorder %s156, %s157
    %p171 = scmp.eq.s32.totalorder %s18, 1
    %p172 = por %p170, %p171
    %p174 = scmp.ne.s32.totalorder %s157, %s173
    %p175 = scmp.eq.s32.totalorder %s18, 0
    %p176 = por %p174, %p175
    %p177 = scmp.le.s32.totalorder 1, %s12
    %p178 = scmp.lt.s32.totalorder %s12, 3
    %p179 = pnand %p177, %p178
    %p180 = pneg %p179
    // Predicated region
    $region9: #{basic_block_forward.1} parent=5 // pred_check
      _
    $region10: #{basic_block_forward.1} parent=5 // pred_check_branch
      %182 = sbr.rel (%p179) target = $region12
    $region11: #{basic_block_forward.1} parent=5 // pred_region
      %s183 = ssub.s32 %s12, 1
      // Predicated region
      $region13: #{basic_block_forward.1} parent=11 // pred_check
        %p184 = pneg %p59
      $region14: #{basic_block_forward.1} parent=11 // pred_check_branch
        %186 = sbr.rel (%p184) target = $region16
      $region15: #{basic_block_forward.1} parent=11 // pred_region
        _
      $region16: #{basic_block_forward.1} parent=11 // pred_fallthru
        _
      // Predicated region
      $region17: #{basic_block_forward.1} parent=11 // pred_check
        %p187 = pneg %p80
      $region18: #{basic_block_forward.1} parent=11 // pred_check_branch
        %189 = sbr.rel (%p187) target = $region20
      $region19: #{basic_block_forward.1} parent=11 // pred_region
        _
      $region20: #{basic_block_forward.1} parent=11 // pred_fallthru
        _
      // Predicated region
      $region21: #{basic_block_forward.1} parent=11 // pred_check
        %p190 = pneg %p101
      $region22: #{basic_block_forward.1} parent=11 // pred_check_branch
        %192 = sbr.rel (%p190) target = $region24
      $region23: #{basic_block_forward.1} parent=11 // pred_region
        _
      $region24: #{basic_block_forward.1} parent=11 // pred_fallthru
        _
      // Predicated region
      $region25: #{basic_block_forward.1} parent=11 // pred_check
        %p193 = pneg %p122
      $region26: #{basic_block_forward.1} parent=11 // pred_check_branch
        %195 = sbr.rel (%p193) target = $region28
      $region27: #{basic_block_forward.1} parent=11 // pred_region
        _
      $region28: #{basic_block_forward.1} parent=11 // pred_fallthru
        _
      // Predicated region
      $region29: #{basic_block_forward.1} parent=11 // pred_check
        %p196 = pneg %p143
      $region30: #{basic_block_forward.1} parent=11 // pred_check_branch
        %198 = sbr.rel (%p196) target = $region32
      $region31: #{basic_block_forward.1} parent=11 // pred_region
        _
      $region32: #{basic_block_forward.1} parent=11 // pred_fallthru
        _
    $region12: #{basic_block_forward.1} parent=5 // pred_fallthru
      _
    %p199 = scmp.lt.s32.totalorder %s12, 2
    // Predicated region
    $region33: #{basic_block_forward.1} parent=5 // pred_check
      %p200 = pneg %p199
    $region34: #{basic_block_forward.1} parent=5 // pred_check_branch
      %202 = sbr.rel (%p200) target = $region36
    $region35: #{basic_block_forward.1} parent=5 // pred_region
      // Predicated region
      $region37: #{basic_block_forward.1} parent=35 // pred_check
        %p203 = pneg %p32
      $region38: #{basic_block_forward.1} parent=35 // pred_check_branch
        %205 = sbr.rel (%p203) target = $region40
      $region39: #{basic_block_forward.1} parent=35 // pred_region
        %p206 = scmp.lt.s32.totalorder %s12, 1
        %s207 = scalar_select %p206, %s12, 1
        %s208 = smul.addr %s207, 48
        %s209 = smul.addr %s208, 8
        %s210 = scalar_lea.vmem %s0, %s209
      $region40: #{basic_block_forward.1} parent=35 // pred_fallthru
        _
    $region36: #{basic_block_forward.1} parent=5 // pred_fallthru
      _
    %p211 = scmp.le.s32.totalorder 1, %s12
    %p212 = scmp.lt.s32.totalorder %s12, 3
    %p213 = pnand %p211, %p212
    %p214 = pneg %p213
    // Predicated region
    $region41: #{basic_block_forward.1} parent=5 // pred_check
      _
    $region42: #{basic_block_forward.1} parent=5 // pred_check_branch
      %216 = sbr.rel (%p213) target = $region44
    $region43: #{basic_block_forward.1} parent=5 // pred_region
      %s217 = ssub.s32 %s12, 1
      %p218 = scmp.lt.s32.totalorder %s17, 1
      %s219 = scalar_select %p218, %s17, 1
      %s220 = smul.addr %s219, 48
      %s221 = smul.addr %s220, 8
      %s222 = scalar_lea.vmem %s0, %s221
      %p223 = pneg %p38
      %p224 = pneg %p35
      %p225 = pneg %p59
      %p226 = pneg %p56
      %p227 = pneg %p80
      %p228 = pneg %p77
      %p229 = pneg %p101
      %p230 = pneg %p98
      %p231 = pneg %p122
      %p232 = pneg %p119
      %p233 = pneg %p143
      %p234 = pneg %p140
      %p235 = pneg %p169
      %p236 = pneg %p166
      %p237 = scmp.lt.s32.totalorder %s17, 1
      %s238 = scalar_select %p237, %s17, 1
      %s239 = smul.addr %s238, 48
      %s240 = smul.addr %s239, 8
      %s241 = scalar_lea.vmem %s6, %s240
      %p242 = scmp.lt.s32.totalorder %s17, 1
      %s243 = scalar_select %p242, %s17, 1
      %s244 = smul.addr %s243, 48
      %s245 = smul.addr %s244, 8
      %s246 = scalar_lea.vmem %s0, %s245
      %p247 = scmp.lt.s32.totalorder %s17, 1
      %s248 = scalar_select %p247, %s17, 1
      %s249 = smul.addr %s248, 48
      %s250 = smul.addr %s249, 8
      %s251 = scalar_lea.vmem %s6, %s250
      %vm252 = vcmask 97280
      %253 = vst.msk [vmem:[#allocation3] sm:$0xff] %vm252, 0.0
      %254 = vst.msk [vmem:[#allocation3 + $0x188] sm:$0xff] %vm252, 0.0
      %vm255 = vcmask 31744
      %256 = vst.msk [vmem:[#allocation2] sm:$0xff] %vm255, 0.0
      %257 = vst.msk [vmem:[#allocation2 + $0x8] sm:$0xff] %vm255, 0.0
      %258 = vst.msk [vmem:[#allocation2 + $0x10] sm:$0xff] %vm255, 0.0
      %v259 = vld [vmem:[%s246] sm:$0xff]
      %v260 = vld [vmem:[%s246 + $0x8] sm:$0xff]
      %v261 = vld [vmem:[%s246 + $0x10] sm:$0xff]
      %v262 = vld [vmem:[%s246 + $0x18] sm:$0xff]
      %v263 = vld [vmem:[%s246 + $0x20] sm:$0xff]
      %v264 = vld [vmem:[%s246 + $0x28] sm:$0xff]
      %v265 = vld [vmem:[%s246 + $0x30] sm:$0xff]
      %v266 = vld [vmem:[%s246 + $0x38] sm:$0xff]
      %v267 = vld [vmem:[%s246 + $0x40] sm:$0xff]
      %v268 = vld [vmem:[%s246 + $0x48] sm:$0xff]
      %v269 = vld [vmem:[%s246 + $0x50] sm:$0xff]
      %v270 = vld [vmem:[%s246 + $0x58] sm:$0xff]
      %v271 = vld [vmem:[%s246 + $0x60] sm:$0xff]
      %v272 = vld [vmem:[%s246 + $0x68] sm:$0xff]
      %v273 = vld [vmem:[%s246 + $0x70] sm:$0xff]
      %v274 = vld [vmem:[%s246 + $0x78] sm:$0xff]
      %v275 = vld [vmem:[%s246 + $0x80] sm:$0xff]
      %v276 = vld [vmem:[%s246 + $0x88] sm:$0xff]
      %v277 = vld [vmem:[%s246 + $0x90] sm:$0xff]
      %v278 = vld [vmem:[%s246 + $0x98] sm:$0xff]
      %v279 = vld [vmem:[%s246 + $0xa0] sm:$0xff]
      %v280 = vld [vmem:[%s246 + $0xa8] sm:$0xff]
      %v281 = vld [vmem:[%s246 + $0xb0] sm:$0xff]
      %v282 = vld [vmem:[%s246 + $0xb8] sm:$0xff]
      %v283 = vld [vmem:[%s246 + $0xc0] sm:$0xff]
      %v284 = vld [vmem:[%s246 + $0xc8] sm:$0xff]
      %v285 = vld [vmem:[%s246 + $0xd0] sm:$0xff]
      %v286 = vld [vmem:[%s246 + $0xd8] sm:$0xff]
      %v287 = vld [vmem:[%s246 + $0xe0] sm:$0xff]
      %v288 = vld [vmem:[%s246 + $0xe8] sm:$0xff]
      %v289 = vld [vmem:[%s246 + $0xf0] sm:$0xff]
      %v290 = vld [vmem:[%s246 + $0xf8] sm:$0xff]
      %v291 = vld [vmem:[%s246 + $0x100] sm:$0xff]
      %v292 = vld [vmem:[%s246 + $0x108] sm:$0xff]
      %v293 = vld [vmem:[%s246 + $0x110] sm:$0xff]
      %v294 = vld [vmem:[%s246 + $0x118] sm:$0xff]
      %v295 = vld [vmem:[%s246 + $0x120] sm:$0xff]
      %v296 = vld [vmem:[%s246 + $0x128] sm:$0xff]
      %v297 = vld [vmem:[%s246 + $0x130] sm:$0xff]
      %v298 = vld [vmem:[%s246 + $0x138] sm:$0xff]
      %v299 = vld [vmem:[%s246 + $0x140] sm:$0xff]
      %v300 = vld [vmem:[%s246 + $0x148] sm:$0xff]
      %v301 = vld [vmem:[%s246 + $0x150] sm:$0xff]
      %v302 = vld [vmem:[%s246 + $0x158] sm:$0xff]
      %v303 = vld [vmem:[%s246 + $0x160] sm:$0xff]
      %304 = vst.msk [vmem:[#allocation2 + $0x18] sm:$0xff] %vm255, %v259
      %305 = vst.msk [vmem:[#allocation2 + $0x20] sm:$0xff] %vm255, %v260
      %306 = vst.msk [vmem:[#allocation2 + $0x28] sm:$0xff] %vm255, %v261
      %307 = vst.msk [vmem:[#allocation2 + $0x30] sm:$0xff] %vm255, %v262
      %308 = vst.msk [vmem:[#allocation2 + $0x38] sm:$0xff] %vm255, %v263
      %309 = vst.msk [vmem:[#allocation2 + $0x40] sm:$0xff] %vm255, %v264
      %310 = vst.msk [vmem:[#allocation2 + $0x48] sm:$0xff] %vm255, %v265
      %311 = vst.msk [vmem:[#allocation2 + $0x50] sm:$0xff] %vm255, %v266
      %312 = vst.msk [vmem:[#allocation2 + $0x58] sm:$0xff] %vm255, %v267
      %313 = vst.msk [vmem:[#allocation2 + $0x60] sm:$0xff] %vm255, %v268
      %314 = vst.msk [vmem:[#allocation2 + $0x68] sm:$0xff] %vm255, %v269
      %315 = vst.msk [vmem:[#allocation2 + $0x70] sm:$0xff] %vm255, %v270
      %316 = vst.msk [vmem:[#allocation2 + $0x78] sm:$0xff] %vm255, %v271
      %317 = vst.msk [vmem:[#allocation2 + $0x80] sm:$0xff] %vm255, %v272
      %318 = vst.msk [vmem:[#allocation2 + $0x88] sm:$0xff] %vm255, %v273
      %319 = vst.msk [vmem:[#allocation2 + $0x90] sm:$0xff] %vm255, %v274
      %320 = vst.msk [vmem:[#allocation2 + $0x98] sm:$0xff] %vm255, %v275
      %321 = vst.msk [vmem:[#allocation2 + $0xa0] sm:$0xff] %vm255, %v276
      %322 = vst.msk [vmem:[#allocation2 + $0xa8] sm:$0xff] %vm255, %v277
      %323 = vst.msk [vmem:[#allocation2 + $0xb0] sm:$0xff] %vm255, %v278
      %324 = vst.msk [vmem:[#allocation2 + $0xb8] sm:$0xff] %vm255, %v279
      %325 = vst.msk [vmem:[#allocation2 + $0xc0] sm:$0xff] %vm255, %v280
      %326 = vst.msk [vmem:[#allocation2 + $0xc8] sm:$0xff] %vm255, %v281
      %327 = vst.msk [vmem:[#allocation2 + $0xd0] sm:$0xff] %vm255, %v282
      %328 = vst.msk [vmem:[#allocation2 + $0xd8] sm:$0xff] %vm255, %v283
      %329 = vst.msk [vmem:[#allocation2 + $0xe0] sm:$0xff] %vm255, %v284
      %330 = vst.msk [vmem:[#allocation2 + $0xe8] sm:$0xff] %vm255, %v285
      %331 = vst.msk [vmem:[#allocation2 + $0xf0] sm:$0xff] %vm255, %v286
      %332 = vst.msk [vmem:[#allocation2 + $0xf8] sm:$0xff] %vm255, %v287
      %333 = vst.msk [vmem:[#allocation2 + $0x100] sm:$0xff] %vm255, %v288
      %334 = vst.msk [vmem:[#allocation2 + $0x108] sm:$0xff] %vm255, %v289
      %335 = vst.msk [vmem:[#allocation2 + $0x110] sm:$0xff] %vm255, %v290
      %336 = vst.msk [vmem:[#allocation2 + $0x118] sm:$0xff] %vm255, %v291
      %337 = vst.msk [vmem:[#allocation2 + $0x120] sm:$0xff] %vm255, %v292
      %338 = vst.msk [vmem:[#allocation2 + $0x128] sm:$0xff] %vm255, %v293
      %339 = vst.msk [vmem:[#allocation2 + $0x130] sm:$0xff] %vm255, %v294
      %340 = vst.msk [vmem:[#allocation2 + $0x138] sm:$0xff] %vm255, %v295
      %341 = vst.msk [vmem:[#allocation2 + $0x140] sm:$0xff] %vm255, %v296
      %342 = vst.msk [vmem:[#allocation2 + $0x148] sm:$0xff] %vm255, %v297
      %343 = vst.msk [vmem:[#allocation2 + $0x150] sm:$0xff] %vm255, %v298
      %344 = vst.msk [vmem:[#allocation2 + $0x158] sm:$0xff] %vm255, %v299
      %345 = vst.msk [vmem:[#allocation2 + $0x160] sm:$0xff] %vm255, %v300
      %346 = vst.msk [vmem:[#allocation2 + $0x168] sm:$0xff] %vm255, %v301
      %347 = vst.msk [vmem:[#allocation2 + $0x170] sm:$0xff] %vm255, %v302
      %348 = vst.msk [vmem:[#allocation2 + $0x178] sm:$0xff] %vm255, %v303
      %v349 = vld [vmem:[%s246] sm:$0xff]
      %v350 = vld [vmem:[%s246 + $0x8] sm:$0xff]
      %v351 = vld [vmem:[%s246 + $0x10] sm:$0xff]
      %v352 = vld [vmem:[%s246 + $0x18] sm:$0xff]
      %v353 = vld [vmem:[%s246 + $0x20] sm:$0xff]
      %v354 = vld [vmem:[%s246 + $0x28] sm:$0xff]
      %v355 = vld [vmem:[%s246 + $0x30] sm:$0xff]
      %v356 = vld [vmem:[%s246 + $0x38] sm:$0xff]
      %v357 = vld [vmem:[%s246 + $0x40] sm:$0xff]
      %v358 = vld [vmem:[%s246 + $0x48] sm:$0xff]
      %v359 = vld [vmem:[%s246 + $0x50] sm:$0xff]
      %v360 = vld [vmem:[%s246 + $0x58] sm:$0xff]
      %v361 = vld [vmem:[%s246 + $0x60] sm:$0xff]
      %v362 = vld [vmem:[%s246 + $0x68] sm:$0xff]
      %v363 = vld [vmem:[%s246 + $0x70] sm:$0xff]
      %v364 = vld [vmem:[%s246 + $0x78] sm:$0xff]
      %v365 = vld [vmem:[%s246 + $0x80] sm:$0xff]
      %v366 = vld [vmem:[%s246 + $0x88] sm:$0xff]
      %v367 = vld [vmem:[%s246 + $0x90] sm:$0xff]
      %v368 = vld [vmem:[%s246 + $0x98] sm:$0xff]
      %v369 = vld [vmem:[%s246 + $0xa0] sm:$0xff]
      %v370 = vld [vmem:[%s246 + $0xa8] sm:$0xff]
      %v371 = vld [vmem:[%s246 + $0xb0] sm:$0xff]
      %v372 = vld [vmem:[%s246 + $0xb8] sm:$0xff]
      %v373 = vld [vmem:[%s246 + $0xc0] sm:$0xff]
      %v374 = vld [vmem:[%s246 + $0xc8] sm:$0xff]
      %v375 = vld [vmem:[%s246 + $0xd0] sm:$0xff]
      %v376 = vld [vmem:[%s246 + $0xd8] sm:$0xff]
      %v377 = vld [vmem:[%s246 + $0xe0] sm:$0xff]
      %v378 = vld [vmem:[%s246 + $0xe8] sm:$0xff]
      %v379 = vld [vmem:[%s246 + $0xf0] sm:$0xff]
      %v380 = vld [vmem:[%s246 + $0xf8] sm:$0xff]
      %v381 = vld [vmem:[%s246 + $0x100] sm:$0xff]
      %v382 = vld [vmem:[%s246 + $0x108] sm:$0xff]
      %v383 = vld [vmem:[%s246 + $0x110] sm:$0xff]
      %v384 = vld [vmem:[%s246 + $0x118] sm:$0xff]
      %v385 = vld [vmem:[%s246 + $0x120] sm:$0xff]
      %v386 = vld [vmem:[%s246 + $0x128] sm:$0xff]
      %v387 = vld [vmem:[%s246 + $0x130] sm:$0xff]
      %v388 = vld [vmem:[%s246 + $0x138] sm:$0xff]
      %v389 = vld [vmem:[%s246 + $0x140] sm:$0xff]
      %v390 = vld [vmem:[%s246 + $0x148] sm:$0xff]
      %v391 = vld [vmem:[%s246 + $0x150] sm:$0xff]
      %v392 = vld [vmem:[%s246 + $0x158] sm:$0xff]
      %v393 = vld [vmem:[%s246 + $0x160] sm:$0xff]
      %v394 = vld [vmem:[%s246 + $0x168] sm:$0xff]
      %v395 = vld [vmem:[%s246 + $0x170] sm:$0xff]
      %v396 = vld [vmem:[%s246 + $0x178] sm:$0xff]
      %445 = vrot.lane.b32.xlu0 %v349, 4
      %v446 = vpop.permute.xlu0 %445
      %447 = vrot.lane.b32.xlu0 %v350, 4
      %v448 = vpop.permute.xlu0 %447
      %449 = vrot.lane.b32.xlu0 %v351, 4
      %v450 = vpop.permute.xlu0 %449
      %451 = vrot.lane.b32.xlu0 %v352, 4
      %v452 = vpop.permute.xlu0 %451
      %453 = vrot.lane.b32.xlu0 %v353, 4
      %v454 = vpop.permute.xlu0 %453
      %455 = vrot.lane.b32.xlu0 %v354, 4
      %v456 = vpop.permute.xlu0 %455
      %457 = vrot.lane.b32.xlu0 %v355, 4
      %v458 = vpop.permute.xlu0 %457
      %459 = vrot.lane.b32.xlu0 %v356, 4
      %v460 = vpop.permute.xlu0 %459
      %461 = vrot.lane.b32.xlu0 %v357, 4
      %v462 = vpop.permute.xlu0 %461
      %463 = vrot.lane.b32.xlu0 %v358, 4
      %v464 = vpop.permute.xlu0 %463
      %465 = vrot.lane.b32.xlu0 %v359, 4
      %v466 = vpop.permute.xlu0 %465
      %467 = vrot.lane.b32.xlu0 %v360, 4
      %v468 = vpop.permute.xlu0 %467
      %469 = vrot.lane.b32.xlu0 %v361, 4
      %v470 = vpop.permute.xlu0 %469
      %471 = vrot.lane.b32.xlu0 %v362, 4
      %v472 = vpop.permute.xlu0 %471
      %473 = vrot.lane.b32.xlu0 %v363, 4
      %v474 = vpop.permute.xlu0 %473
      %475 = vrot.lane.b32.xlu0 %v364, 4
      %v476 = vpop.permute.xlu0 %475
      %477 = vrot.lane.b32.xlu0 %v365, 4
      %v478 = vpop.permute.xlu0 %477
      %479 = vrot.lane.b32.xlu0 %v366, 4
      %v480 = vpop.permute.xlu0 %479
      %481 = vrot.lane.b32.xlu0 %v367, 4
      %v482 = vpop.permute.xlu0 %481
      %483 = vrot.lane.b32.xlu0 %v368, 4
      %v484 = vpop.permute.xlu0 %483
      %485 = vrot.lane.b32.xlu0 %v369, 4
      %v486 = vpop.permute.xlu0 %485
      %487 = vrot.lane.b32.xlu0 %v370, 4
      %v488 = vpop.permute.xlu0 %487
      %489 = vrot.lane.b32.xlu0 %v371, 4
      %v490 = vpop.permute.xlu0 %489
      %491 = vrot.lane.b32.xlu0 %v372, 4
      %v492 = vpop.permute.xlu0 %491
      %493 = vrot.lane.b32.xlu0 %v373, 4
      %v494 = vpop.permute.xlu0 %493
      %495 = vrot.lane.b32.xlu0 %v374, 4
      %v496 = vpop.permute.xlu0 %495
      %497 = vrot.lane.b32.xlu0 %v375, 4
      %v498 = vpop.permute.xlu0 %497
      %499 = vrot.lane.b32.xlu0 %v376, 4
      %v500 = vpop.permute.xlu0 %499
      %501 = vrot.lane.b32.xlu0 %v377, 4
      %v502 = vpop.permute.xlu0 %501
      %503 = vrot.lane.b32.xlu0 %v378, 4
      %v504 = vpop.permute.xlu0 %503
      %505 = vrot.lane.b32.xlu0 %v379, 4
      %v506 = vpop.permute.xlu0 %505
      %507 = vrot.lane.b32.xlu0 %v380, 4
      %v508 = vpop.permute.xlu0 %507
      %509 = vrot.lane.b32.xlu0 %v381, 4
      %v510 = vpop.permute.xlu0 %509
      %511 = vrot.lane.b32.xlu0 %v382, 4
      %v512 = vpop.permute.xlu0 %511
      %513 = vrot.lane.b32.xlu0 %v383, 4
      %v514 = vpop.permute.xlu0 %513
      %515 = vrot.lane.b32.xlu0 %v384, 4
      %v516 = vpop.permute.xlu0 %515
      %517 = vrot.lane.b32.xlu0 %v385, 4
      %v518 = vpop.permute.xlu0 %517
      %519 = vrot.lane.b32.xlu0 %v386, 4
      %v520 = vpop.permute.xlu0 %519
      %521 = vrot.lane.b32.xlu0 %v387, 4
      %v522 = vpop.permute.xlu0 %521
      %523 = vrot.lane.b32.xlu0 %v388, 4
      %v524 = vpop.permute.xlu0 %523
      %525 = vrot.lane.b32.xlu0 %v389, 4
      %v526 = vpop.permute.xlu0 %525
      %527 = vrot.lane.b32.xlu0 %v390, 4
      %v528 = vpop.permute.xlu0 %527
      %529 = vrot.lane.b32.xlu0 %v391, 4
      %v530 = vpop.permute.xlu0 %529
      %531 = vrot.lane.b32.xlu0 %v392, 4
      %v532 = vpop.permute.xlu0 %531
      %533 = vrot.lane.b32.xlu0 %v393, 4
      %v534 = vpop.permute.xlu0 %533
      %535 = vrot.lane.b32.xlu0 %v394, 4
      %v536 = vpop.permute.xlu0 %535
      %537 = vrot.lane.b32.xlu0 %v395, 4
      %v538 = vpop.permute.xlu0 %537
      %539 = vrot.lane.b32.xlu0 %v396, 4
      %v540 = vpop.permute.xlu0 %539
      %vm589 = vcmask 64544
      %590 = vst.msk [vmem:[#allocation2] sm:$0xff] %vm589, %v446
      %591 = vst.msk [vmem:[#allocation2 + $0x8] sm:$0xff] %vm589, %v448
      %592 = vst.msk [vmem:[#allocation2 + $0x10] sm:$0xff] %vm589, %v450
      %593 = vst.msk [vmem:[#allocation2 + $0x18] sm:$0xff] %vm589, %v452
      %594 = vst.msk [vmem:[#allocation2 + $0x20] sm:$0xff] %vm589, %v454
      %595 = vst.msk [vmem:[#allocation2 + $0x28] sm:$0xff] %vm589, %v456
      %596 = vst.msk [vmem:[#allocation2 + $0x30] sm:$0xff] %vm589, %v458
      %597 = vst.msk [vmem:[#allocation2 + $0x38] sm:$0xff] %vm589, %v460
      %598 = vst.msk [vmem:[#allocation2 + $0x40] sm:$0xff] %vm589, %v462
      %599 = vst.msk [vmem:[#allocation2 + $0x48] sm:$0xff] %vm589, %v464
      %600 = vst.msk [vmem:[#allocation2 + $0x50] sm:$0xff] %vm589, %v466
      %601 = vst.msk [vmem:[#allocation2 + $0x58] sm:$0xff] %vm589, %v468
      %602 = vst.msk [vmem:[#allocation2 + $0x60] sm:$0xff] %vm589, %v470
      %603 = vst.msk [vmem:[#allocation2 + $0x68] sm:$0xff] %vm589, %v472
      %604 = vst.msk [vmem:[#allocation2 + $0x70] sm:$0xff] %vm589, %v474
      %605 = vst.msk [vmem:[#allocation2 + $0x78] sm:$0xff] %vm589, %v476
      %606 = vst.msk [vmem:[#allocation2 + $0x80] sm:$0xff] %vm589, %v478
      %607 = vst.msk [vmem:[#allocation2 + $0x88] sm:$0xff] %vm589, %v480
      %608 = vst.msk [vmem:[#allocation2 + $0x90] sm:$0xff] %vm589, %v482
      %609 = vst.msk [vmem:[#allocation2 + $0x98] sm:$0xff] %vm589, %v484
      %610 = vst.msk [vmem:[#allocation2 + $0xa0] sm:$0xff] %vm589, %v486
      %611 = vst.msk [vmem:[#allocation2 + $0xa8] sm:$0xff] %vm589, %v488
      %612 = vst.msk [vmem:[#allocation2 + $0xb0] sm:$0xff] %vm589, %v490
      %613 = vst.msk [vmem:[#allocation2 + $0xb8] sm:$0xff] %vm589, %v492
      %614 = vst.msk [vmem:[#allocation2 + $0xc0] sm:$0xff] %vm589, %v494
      %615 = vst.msk [vmem:[#allocation2 + $0xc8] sm:$0xff] %vm589, %v496
      %616 = vst.msk [vmem:[#allocation2 + $0xd0] sm:$0xff] %vm589, %v498
      %617 = vst.msk [vmem:[#allocation2 + $0xd8] sm:$0xff] %vm589, %v500
      %618 = vst.msk [vmem:[#allocation2 + $0xe0] sm:$0xff] %vm589, %v502
      %619 = vst.msk [vmem:[#allocation2 + $0xe8] sm:$0xff] %vm589, %v504
      %620 = vst.msk [vmem:[#allocation2 + $0xf0] sm:$0xff] %vm589, %v506
      %621 = vst.msk [vmem:[#allocation2 + $0xf8] sm:$0xff] %vm589, %v508
      %622 = vst.msk [vmem:[#allocation2 + $0x100] sm:$0xff] %vm589, %v510
      %623 = vst.msk [vmem:[#allocation2 + $0x108] sm:$0xff] %vm589, %v512
      %624 = vst.msk [vmem:[#allocation2 + $0x110] sm:$0xff] %vm589, %v514
      %625 = vst.msk [vmem:[#allocation2 + $0x118] sm:$0xff] %vm589, %v516
      %626 = vst.msk [vmem:[#allocation2 + $0x120] sm:$0xff] %vm589, %v518
      %627 = vst.msk [vmem:[#allocation2 + $0x128] sm:$0xff] %vm589, %v520
      %628 = vst.msk [vmem:[#allocation2 + $0x130] sm:$0xff] %vm589, %v522
      %629 = vst.msk [vmem:[#allocation2 + $0x138] sm:$0xff] %vm589, %v524
      %630 = vst.msk [vmem:[#allocation2 + $0x140] sm:$0xff] %vm589, %v526
      %631 = vst.msk [vmem:[#allocation2 + $0x148] sm:$0xff] %vm589, %v528
      %632 = vst.msk [vmem:[#allocation2 + $0x150] sm:$0xff] %vm589, %v530
      %633 = vst.msk [vmem:[#allocation2 + $0x158] sm:$0xff] %vm589, %v532
      %634 = vst.msk [vmem:[#allocation2 + $0x160] sm:$0xff] %vm589, %v534
      %635 = vst.msk [vmem:[#allocation2 + $0x168] sm:$0xff] %vm589, %v536
      %636 = vst.msk [vmem:[#allocation2 + $0x170] sm:$0xff] %vm589, %v538
      %637 = vst.msk [vmem:[#allocation2 + $0x178] sm:$0xff] %vm589, %v540
      %v638 = vld [vmem:[%s246 + $0x18] sm:$0xff]
      %v639 = vld [vmem:[%s246 + $0x20] sm:$0xff]
      %v640 = vld [vmem:[%s246 + $0x28] sm:$0xff]
      %v641 = vld [vmem:[%s246 + $0x30] sm:$0xff]
      %v642 = vld [vmem:[%s246 + $0x38] sm:$0xff]
      %v643 = vld [vmem:[%s246 + $0x40] sm:$0xff]
      %v644 = vld [vmem:[%s246 + $0x48] sm:$0xff]
      %v645 = vld [vmem:[%s246 + $0x50] sm:$0xff]
      %v646 = vld [vmem:[%s246 + $0x58] sm:$0xff]
      %v647 = vld [vmem:[%s246 + $0x60] sm:$0xff]
      %v648 = vld [vmem:[%s246 + $0x68] sm:$0xff]
      %v649 = vld [vmem:[%s246 + $0x70] sm:$0xff]
      %v650 = vld [vmem:[%s246 + $0x78] sm:$0xff]
      %v651 = vld [vmem:[%s246 + $0x80] sm:$0xff]
      %v652 = vld [vmem:[%s246 + $0x88] sm:$0xff]
      %v653 = vld [vmem:[%s246 + $0x90] sm:$0xff]
      %v654 = vld [vmem:[%s246 + $0x98] sm:$0xff]
      %v655 = vld [vmem:[%s246 + $0xa0] sm:$0xff]
      %v656 = vld [vmem:[%s246 + $0xa8] sm:$0xff]
      %v657 = vld [vmem:[%s246 + $0xb0] sm:$0xff]
      %v658 = vld [vmem:[%s246 + $0xb8] sm:$0xff]
      %v659 = vld [vmem:[%s246 + $0xc0] sm:$0xff]
      %v660 = vld [vmem:[%s246 + $0xc8] sm:$0xff]
      %v661 = vld [vmem:[%s246 + $0xd0] sm:$0xff]
      %v662 = vld [vmem:[%s246 + $0xd8] sm:$0xff]
      %v663 = vld [vmem:[%s246 + $0xe0] sm:$0xff]
      %v664 = vld [vmem:[%s246 + $0xe8] sm:$0xff]
      %v665 = vld [vmem:[%s246 + $0xf0] sm:$0xff]
      %v666 = vld [vmem:[%s246 + $0xf8] sm:$0xff]
      %v667 = vld [vmem:[%s246 + $0x100] sm:$0xff]
      %v668 = vld [vmem:[%s246 + $0x108] sm:$0xff]
      %v669 = vld [vmem:[%s246 + $0x110] sm:$0xff]
      %v670 = vld [vmem:[%s246 + $0x118] sm:$0xff]
      %v671 = vld [vmem:[%s246 + $0x120] sm:$0xff]
      %v672 = vld [vmem:[%s246 + $0x128] sm:$0xff]
      %v673 = vld [vmem:[%s246 + $0x130] sm:$0xff]
      %v674 = vld [vmem:[%s246 + $0x138] sm:$0xff]
      %v675 = vld [vmem:[%s246 + $0x140] sm:$0xff]
      %v676 = vld [vmem:[%s246 + $0x148] sm:$0xff]
      %v677 = vld [vmem:[%s246 + $0x150] sm:$0xff]
      %v678 = vld [vmem:[%s246 + $0x158] sm:$0xff]
      %v679 = vld [vmem:[%s246 + $0x160] sm:$0xff]
      %v680 = vld [vmem:[%s246 + $0x168] sm:$0xff]
      %v681 = vld [vmem:[%s246 + $0x170] sm:$0xff]
      %v682 = vld [vmem:[%s246 + $0x178] sm:$0xff]
      %728 = vrot.lane.b32.xlu0 %v638, 8
      %v729 = vpop.permute.xlu0 %728
      %730 = vrot.lane.b32.xlu0 %v639, 8
      %v731 = vpop.permute.xlu0 %730
      %732 = vrot.lane.b32.xlu0 %v640, 8
      %v733 = vpop.permute.xlu0 %732
      %734 = vrot.lane.b32.xlu0 %v641, 8
      %v735 = vpop.permute.xlu0 %734
      %736 = vrot.lane.b32.xlu0 %v642, 8
      %v737 = vpop.permute.xlu0 %736
      %738 = vrot.lane.b32.xlu0 %v643, 8
      %v739 = vpop.permute.xlu0 %738
      %740 = vrot.lane.b32.xlu0 %v644, 8
      %v741 = vpop.permute.xlu0 %740
      %742 = vrot.lane.b32.xlu0 %v645, 8
      %v743 = vpop.permute.xlu0 %742
      %744 = vrot.lane.b32.xlu0 %v646, 8
      %v745 = vpop.permute.xlu0 %744
      %746 = vrot.lane.b32.xlu0 %v647, 8
      %v747 = vpop.permute.xlu0 %746
      %748 = vrot.lane.b32.xlu0 %v648, 8
      %v749 = vpop.permute.xlu0 %748
      %750 = vrot.lane.b32.xlu0 %v649, 8
      %v751 = vpop.permute.xlu0 %750
      %752 = vrot.lane.b32.xlu0 %v650, 8
      %v753 = vpop.permute.xlu0 %752
      %754 = vrot.lane.b32.xlu0 %v651, 8
      %v755 = vpop.permute.xlu0 %754
      %756 = vrot.lane.b32.xlu0 %v652, 8
      %v757 = vpop.permute.xlu0 %756
      %758 = vrot.lane.b32.xlu0 %v653, 8
      %v759 = vpop.permute.xlu0 %758
      %760 = vrot.lane.b32.xlu0 %v654, 8
      %v761 = vpop.permute.xlu0 %760
      %762 = vrot.lane.b32.xlu0 %v655, 8
      %v763 = vpop.permute.xlu0 %762
      %764 = vrot.lane.b32.xlu0 %v656, 8
      %v765 = vpop.permute.xlu0 %764
      %766 = vrot.lane.b32.xlu0 %v657, 8
      %v767 = vpop.permute.xlu0 %766
      %768 = vrot.lane.b32.xlu0 %v658, 8
      %v769 = vpop.permute.xlu0 %768
      %770 = vrot.lane.b32.xlu0 %v659, 8
      %v771 = vpop.permute.xlu0 %770
      %772 = vrot.lane.b32.xlu0 %v660, 8
      %v773 = vpop.permute.xlu0 %772
      %774 = vrot.lane.b32.xlu0 %v661, 8
      %v775 = vpop.permute.xlu0 %774
      %776 = vrot.lane.b32.xlu0 %v662, 8
      %v777 = vpop.permute.xlu0 %776
      %778 = vrot.lane.b32.xlu0 %v663, 8
      %v779 = vpop.permute.xlu0 %778
      %780 = vrot.lane.b32.xlu0 %v664, 8
      %v781 = vpop.permute.xlu0 %780
      %782 = vrot.lane.b32.xlu0 %v665, 8
      %v783 = vpop.permute.xlu0 %782
      %784 = vrot.lane.b32.xlu0 %v666, 8
      %v785 = vpop.permute.xlu0 %784
      %786 = vrot.lane.b32.xlu0 %v667, 8
      %v787 = vpop.permute.xlu0 %786
      %788 = vrot.lane.b32.xlu0 %v668, 8
      %v789 = vpop.permute.xlu0 %788
      %790 = vrot.lane.b32.xlu0 %v669, 8
      %v791 = vpop.permute.xlu0 %790
      %792 = vrot.lane.b32.xlu0 %v670, 8
      %v793 = vpop.permute.xlu0 %792
      %794 = vrot.lane.b32.xlu0 %v671, 8
      %v795 = vpop.permute.xlu0 %794
      %796 = vrot.lane.b32.xlu0 %v672, 8
      %v797 = vpop.permute.xlu0 %796
      %798 = vrot.lane.b32.xlu0 %v673, 8
      %v799 = vpop.permute.xlu0 %798
      %800 = vrot.lane.b32.xlu0 %v674, 8
      %v801 = vpop.permute.xlu0 %800
      %802 = vrot.lane.b32.xlu0 %v675, 8
      %v803 = vpop.permute.xlu0 %802
      %804 = vrot.lane.b32.xlu0 %v676, 8
      %v805 = vpop.permute.xlu0 %804
      %806 = vrot.lane.b32.xlu0 %v677, 8
      %v807 = vpop.permute.xlu0 %806
      %808 = vrot.lane.b32.xlu0 %v678, 8
      %v809 = vpop.permute.xlu0 %808
      %810 = vrot.lane.b32.xlu0 %v679, 8
      %v811 = vpop.permute.xlu0 %810
      %812 = vrot.lane.b32.xlu0 %v680, 8
      %v813 = vpop.permute.xlu0 %812
      %814 = vrot.lane.b32.xlu0 %v681, 8
      %v815 = vpop.permute.xlu0 %814
      %816 = vrot.lane.b32.xlu0 %v682, 8
      %v817 = vpop.permute.xlu0 %816
      %vm863 = vcmask 97344
      %864 = vst.msk [vmem:[#allocation2] sm:$0xff] %vm863, %v729
      %865 = vst.msk [vmem:[#allocation2 + $0x8] sm:$0xff] %vm863, %v731
      %866 = vst.msk [vmem:[#allocation2 + $0x10] sm:$0xff] %vm863, %v733
      %867 = vst.msk [vmem:[#allocation2 + $0x18] sm:$0xff] %vm863, %v735
      %868 = vst.msk [vmem:[#allocation2 + $0x20] sm:$0xff] %vm863, %v737
      %869 = vst.msk [vmem:[#allocation2 + $0x28] sm:$0xff] %vm863, %v739
      %870 = vst.msk [vmem:[#allocation2 + $0x30] sm:$0xff] %vm863, %v741
      %871 = vst.msk [vmem:[#allocation2 + $0x38] sm:$0xff] %vm863, %v743
      %872 = vst.msk [vmem:[#allocation2 + $0x40] sm:$0xff] %vm863, %v745
      %873 = vst.msk [vmem:[#allocation2 + $0x48] sm:$0xff] %vm863, %v747
      %874 = vst.msk [vmem:[#allocation2 + $0x50] sm:$0xff] %vm863, %v749
      %875 = vst.msk [vmem:[#allocation2 + $0x58] sm:$0xff] %vm863, %v751
      %876 = vst.msk [vmem:[#allocation2 + $0x60] sm:$0xff] %vm863, %v753
      %877 = vst.msk [vmem:[#allocation2 + $0x68] sm:$0xff] %vm863, %v755
      %878 = vst.msk [vmem:[#allocation2 + $0x70] sm:$0xff] %vm863, %v757
      %879 = vst.msk [vmem:[#allocation2 + $0x78] sm:$0xff] %vm863, %v759
      %880 = vst.msk [vmem:[#allocation2 + $0x80] sm:$0xff] %vm863, %v761
      %881 = vst.msk [vmem:[#allocation2 + $0x88] sm:$0xff] %vm863, %v763
      %882 = vst.msk [vmem:[#allocation2 + $0x90] sm:$0xff] %vm863, %v765
      %883 = vst.msk [vmem:[#allocation2 + $0x98] sm:$0xff] %vm863, %v767
      %884 = vst.msk [vmem:[#allocation2 + $0xa0] sm:$0xff] %vm863, %v769
      %885 = vst.msk [vmem:[#allocation2 + $0xa8] sm:$0xff] %vm863, %v771
      %886 = vst.msk [vmem:[#allocation2 + $0xb0] sm:$0xff] %vm863, %v773
      %887 = vst.msk [vmem:[#allocation2 + $0xb8] sm:$0xff] %vm863, %v775
      %888 = vst.msk [vmem:[#allocation2 + $0xc0] sm:$0xff] %vm863, %v777
      %889 = vst.msk [vmem:[#allocation2 + $0xc8] sm:$0xff] %vm863, %v779
      %890 = vst.msk [vmem:[#allocation2 + $0xd0] sm:$0xff] %vm863, %v781
      %891 = vst.msk [vmem:[#allocation2 + $0xd8] sm:$0xff] %vm863, %v783
      %892 = vst.msk [vmem:[#allocation2 + $0xe0] sm:$0xff] %vm863, %v785
      %893 = vst.msk [vmem:[#allocation2 + $0xe8] sm:$0xff] %vm863, %v787
      %894 = vst.msk [vmem:[#allocation2 + $0xf0] sm:$0xff] %vm863, %v789
      %895 = vst.msk [vmem:[#allocation2 + $0xf8] sm:$0xff] %vm863, %v791
      %896 = vst.msk [vmem:[#allocation2 + $0x100] sm:$0xff] %vm863, %v793
      %897 = vst.msk [vmem:[#allocation2 + $0x108] sm:$0xff] %vm863, %v795
      %898 = vst.msk [vmem:[#allocation2 + $0x110] sm:$0xff] %vm863, %v797
      %899 = vst.msk [vmem:[#allocation2 + $0x118] sm:$0xff] %vm863, %v799
      %900 = vst.msk [vmem:[#allocation2 + $0x120] sm:$0xff] %vm863, %v801
      %901 = vst.msk [vmem:[#allocation2 + $0x128] sm:$0xff] %vm863, %v803
      %902 = vst.msk [vmem:[#allocation2 + $0x130] sm:$0xff] %vm863, %v805
      %903 = vst.msk [vmem:[#allocation2 + $0x138] sm:$0xff] %vm863, %v807
      %904 = vst.msk [vmem:[#allocation2 + $0x140] sm:$0xff] %vm863, %v809
      %905 = vst.msk [vmem:[#allocation2 + $0x148] sm:$0xff] %vm863, %v811
      %906 = vst.msk [vmem:[#allocation2 + $0x150] sm:$0xff] %vm863, %v813
      %907 = vst.msk [vmem:[#allocation2 + $0x158] sm:$0xff] %vm863, %v815
      %908 = vst.msk [vmem:[#allocation2 + $0x160] sm:$0xff] %vm863, %v817
      %909 = vst.msk [vmem:[#allocation2 + $0x168] sm:$0xff] %vm863, 0.0
      %910 = vst.msk [vmem:[#allocation2 + $0x170] sm:$0xff] %vm863, 0.0
      %911 = vst.msk [vmem:[#allocation2 + $0x178] sm:$0xff] %vm863, 0.0
      %v912 = vld [vmem:[#allocation2] sm:$0xff]
      %v913 = vld [vmem:[#allocation2 + $0x8] sm:$0xff]
      %v914 = vld [vmem:[#allocation2 + $0x10] sm:$0xff]
      %v915 = vld [vmem:[#allocation2 + $0x18] sm:$0xff]
      %v916 = vld [vmem:[#allocation2 + $0x20] sm:$0xff]
      %v917 = vld [vmem:[#allocation2 + $0x28] sm:$0xff]
      %v918 = vld [vmem:[#allocation2 + $0x30] sm:$0xff]
      %v919 = vld [vmem:[#allocation2 + $0x38] sm:$0xff]
      %v920 = vld [vmem:[#allocation2 + $0x40] sm:$0xff]
      %v921 = vld [vmem:[#allocation2 + $0x48] sm:$0xff]
      %v922 = vld [vmem:[#allocation2 + $0x50] sm:$0xff]
      %v923 = vld [vmem:[#allocation2 + $0x58] sm:$0xff]
      %v924 = vld [vmem:[#allocation2 + $0x60] sm:$0xff]
      %v925 = vld [vmem:[#allocation2 + $0x68] sm:$0xff]
      %v926 = vld [vmem:[#allocation2 + $0x70] sm:$0xff]
      %v927 = vld [vmem:[#allocation2 + $0x78] sm:$0xff]
      %v928 = vld [vmem:[#allocation2 + $0x80] sm:$0xff]
      %v929 = vld [vmem:[#allocation2 + $0x88] sm:$0xff]
      %v930 = vld [vmem:[#allocation2 + $0x90] sm:$0xff]
      %v931 = vld [vmem:[#allocation2 + $0x98] sm:$0xff]
      %v932 = vld [vmem:[#allocation2 + $0xa0] sm:$0xff]
      %v933 = vld [vmem:[#allocation2 + $0xa8] sm:$0xff]
      %v934 = vld [vmem:[#allocation2 + $0xb0] sm:$0xff]
      %v935 = vld [vmem:[#allocation2 + $0xb8] sm:$0xff]
      %v936 = vld [vmem:[#allocation2 + $0xc0] sm:$0xff]
      %v937 = vld [vmem:[#allocation2 + $0xc8] sm:$0xff]
      %v938 = vld [vmem:[#allocation2 + $0xd0] sm:$0xff]
      %v939 = vld [vmem:[#allocation2 + $0xd8] sm:$0xff]
      %v940 = vld [vmem:[#allocation2 + $0xe0] sm:$0xff]
      %v941 = vld [vmem:[#allocation2 + $0xe8] sm:$0xff]
      %v942 = vld [vmem:[#allocation2 + $0xf0] sm:$0xff]
      %v943 = vld [vmem:[#allocation2 + $0xf8] sm:$0xff]
      %v944 = vld [vmem:[#allocation2 + $0x100] sm:$0xff]
      %v945 = vld [vmem:[#allocation2 + $0x108] sm:$0xff]
      %v946 = vld [vmem:[#allocation2 + $0x110] sm:$0xff]
      %v947 = vld [vmem:[#allocation2 + $0x118] sm:$0xff]
      %v948 = vld [vmem:[#allocation2 + $0x120] sm:$0xff]
      %v949 = vld [vmem:[#allocation2 + $0x128] sm:$0xff]
      %v950 = vld [vmem:[#allocation2 + $0x130] sm:$0xff]
      %v951 = vld [vmem:[#allocation2 + $0x138] sm:$0xff]
      %v952 = vld [vmem:[#allocation2 + $0x140] sm:$0xff]
      %v953 = vld [vmem:[#allocation2 + $0x148] sm:$0xff]
      %v954 = vld [vmem:[#allocation2 + $0x150] sm:$0xff]
      %v955 = vld [vmem:[#allocation2 + $0x158] sm:$0xff]
      %v956 = vld [vmem:[#allocation2 + $0x160] sm:$0xff]
      %v957 = vld [vmem:[#allocation2 + $0x168] sm:$0xff]
      %v958 = vld [vmem:[#allocation2 + $0x170] sm:$0xff]
      %v959 = vld [vmem:[#allocation2 + $0x178] sm:$0xff]
      %v960 = vld [vmem:[%s1] sm:$0xff]
      %v961 = vld [vmem:[%s1 + $0x8] sm:$0xf]
      %v963 = vsel %vm252, %v912, 0
      %v966 = vsel %vm252, %v913, 0
      %v969 = vsel %vm252, %v914, 0
      %v972 = vsel %vm252, %v915, 0
      %v975 = vsel %vm252, %v916, 0
      %v978 = vsel %vm252, %v917, 0
      %v981 = vsel %vm252, %v918, 0
      %v984 = vsel %vm252, %v919, 0
      %v987 = vsel %vm252, %v920, 0
      %v990 = vsel %vm252, %v921, 0
      %v993 = vsel %vm252, %v922, 0
      %v996 = vsel %vm252, %v923, 0
      %v999 = vsel %vm252, %v924, 0
      %v1002 = vsel %vm252, %v925, 0
      %v1005 = vsel %vm252, %v926, 0
      %v1008 = vsel %vm252, %v927, 0
      %v1011 = vsel %vm252, %v928, 0
      %v1014 = vsel %vm252, %v929, 0
      %v1017 = vsel %vm252, %v930, 0
      %v1020 = vsel %vm252, %v931, 0
      %v1023 = vsel %vm252, %v932, 0
      %v1026 = vsel %vm252, %v933, 0
      %v1029 = vsel %vm252, %v934, 0
      %v1032 = vsel %vm252, %v935, 0
      %v1035 = vsel %vm252, %v936, 0
      %v1038 = vsel %vm252, %v937, 0
      %v1041 = vsel %vm252, %v938, 0
      %v1044 = vsel %vm252, %v939, 0
      %v1047 = vsel %vm252, %v940, 0
      %v1050 = vsel %vm252, %v941, 0
      %v1053 = vsel %vm252, %v942, 0
      %v1056 = vsel %vm252, %v943, 0
      %v1059 = vsel %vm252, %v944, 0
      %v1062 = vsel %vm252, %v945, 0
      %v1065 = vsel %vm252, %v946, 0
      %v1068 = vsel %vm252, %v947, 0
      %v1071 = vsel %vm252, %v948, 0
      %v1074 = vsel %vm252, %v949, 0
      %v1077 = vsel %vm252, %v950, 0
      %v1080 = vsel %vm252, %v951, 0
      %v1083 = vsel %vm252, %v952, 0
      %v1086 = vsel %vm252, %v953, 0
      %v1089 = vsel %vm252, %v954, 0
      %v1092 = vsel %vm252, %v955, 0
      %v1095 = vsel %vm252, %v956, 0
      %v1098 = vsel %vm252, %v957, 0
      %v1101 = vsel %vm252, %v958, 0
      %v1104 = vsel %vm252, %v959, 0
      %vm1106 = vcmask 1043456
      %v1108 = vsel %vm1106, %v961, 0
      %1110 = vmatprep.subr.mxu0 0.0
      %1111 = vmatpush1.msra.mxu0 0.0
      %1112 = vmatprep.subr.mxu0 0.0
      %1113 = vmatpush1.msra.mxu0 0.0
      %1114 = vmatprep.subr.mxu0 0.0
      %1115 = vmatpush1.msra.mxu0 0.0
      %1116 = vmatprep.subr.mxu0 0.0
      %1117 = vmatpush1.msra.mxu0 0.0
      %1118 = vmatprep.subr.mxu0 0.0
      %1119 = vmatpush1.msra.mxu0 0.0
      %1120 = vmatprep.subr.mxu0 0.0
      %1121 = vmatpush1.msra.mxu0 0.0
      %1122 = vmatprep.subr.mxu0 0.0
      %1123 = vmatpush1.msra.mxu0 0.0
      %1124 = vmatprep.subr.mxu0 0.0
      %1125 = vmatpush1.msra.mxu0 0.0
      %1126 = vmatprep.subr.mxu0 0.0
      %1127 = vmatpush1.msra.mxu0 0.0
      %1128 = vmatprep.subr.mxu0 0.0
      %1129 = vmatpush1.msra.mxu0 0.0
      %1130 = vmatprep.subr.mxu0 0.0
      %1131 = vmatpush1.msra.mxu0 0.0
      %1132 = vmatprep.subr.mxu0 0.0
      %1133 = vmatpush1.msra.mxu0 0.0
      %1134 = vmatprep.subr.mxu0 0.0
      %1135 = vmatpush1.msra.mxu0 0.0
      %1136 = vmatprep.subr.mxu0 0.0
      %1137 = vmatpush1.msra.mxu0 0.0
      %1138 = vmatprep.subr.mxu0 0.0
      %1139 = vmatpush1.msra.mxu0 %v1108
      %1140 = vmatprep.subr.mxu0 0.0
      %1141 = vmatpush1.msra.mxu0 %v960
      %1142 = vmatprep.subr.mxu0 0.0
      %1143 = vmatpush2.msra.mxu0 0.0
      %1144 = vmatprep.subr.mxu0 0.0
      %1145 = vmatpush2.msra.mxu0 0.0
      %1146 = vmatprep.subr.mxu0 0.0
      %1147 = vmatpush2.msra.mxu0 0.0
      %1148 = vmatprep.subr.mxu0 0.0
      %1149 = vmatpush2.msra.mxu0 0.0
      %1150 = vmatprep.subr.mxu0 0.0
      %1151 = vmatpush2.msra.mxu0 0.0
      %1152 = vmatprep.subr.mxu0 0.0
      %1153 = vmatpush2.msra.mxu0 0.0
      %1154 = vmatprep.subr.mxu0 0.0
      %1155 = vmatpush2.msra.mxu0 0.0
      %1156 = vmatprep.subr.mxu0 0.0
      %1157 = vmatpush2.msra.mxu0 0.0
      %1158 = vmatprep.subr.mxu0 0.0
      %1159 = vmatpush2.msra.mxu0 0.0
      %1160 = vmatprep.subr.mxu0 0.0
      %1161 = vmatpush2.msra.mxu0 0.0
      %1162 = vmatprep.subr.mxu0 0.0
      %1163 = vmatpush2.msra.mxu0 0.0
      %1164 = vmatprep.subr.mxu0 0.0
      %1165 = vmatpush2.msra.mxu0 0.0
      %1166 = vmatprep.subr.mxu0 0.0
      %1167 = vmatpush2.msra.mxu0 0.0
      %1168 = vmatprep.subr.mxu0 0.0
      %1169 = vmatpush2.msra.mxu0 0.0
      %1170 = vmatprep.subr.mxu0 0.0
      %1171 = vmatpush2.msra.mxu0 0.0
      %1172 = vmatprep.subr.mxu0 0.0
      %1173 = vmatpush2.msra.mxu0 0.0
      %1174 = vmatprep.mubr.f32.mxu0 0.0
      %1175 = vmatmul.mubr.f32.gmra.mxu0 %v963
      %v1176 = vpop.f32.mrf.mxu0
      %v1177 = vadd.f32 0.0, %v1176
      %v1178 = vpop.f32.mrf.mxu0
      %1179 = vmatprep.mubr.f32.mxu0 0.0
      %1180 = vmatmul.mubr.f32.gmra.mxu0 %v966
      %v1181 = vpop.f32.mrf.mxu0
      %v1182 = vadd.f32 0.0, %v1181
      %v1183 = vpop.f32.mrf.mxu0
      %1184 = vmatprep.mubr.f32.mxu0 0.0
      %1185 = vmatmul.mubr.f32.gmra.mxu0 %v969
      %v1186 = vpop.f32.mrf.mxu0
      %v1187 = vadd.f32 0.0, %v1186
      %v1188 = vpop.f32.mrf.mxu0
      %1189 = vmatprep.mubr.f32.mxu0 0.0
      %1190 = vmatmul.mubr.f32.gmra.mxu0 %v972
      %v1191 = vpop.f32.mrf.mxu0
      %v1192 = vadd.f32 0.0, %v1191
      %v1193 = vpop.f32.mrf.mxu0
      %1194 = vmatprep.mubr.f32.mxu0 0.0
      %1195 = vmatmul.mubr.f32.gmra.mxu0 %v975
      %v1196 = vpop.f32.mrf.mxu0
      %v1197 = vadd.f32 0.0, %v1196
      %v1198 = vpop.f32.mrf.mxu0
      %1199 = vmatprep.mubr.f32.mxu0 0.0
      %1200 = vmatmul.mubr.f32.gmra.mxu0 %v978
      %v1201 = vpop.f32.mrf.mxu0
      %v1202 = vadd.f32 0.0, %v1201
      %v1203 = vpop.f32.mrf.mxu0
      %1204 = vmatprep.mubr.f32.mxu0 0.0
      %1205 = vmatmul.mubr.f32.gmra.mxu0 %v981
      %v1206 = vpop.f32.mrf.mxu0
      %v1207 = vadd.f32 0.0, %v1206
      %v1208 = vpop.f32.mrf.mxu0
      %1209 = vmatprep.mubr.f32.mxu0 0.0
      %1210 = vmatmul.mubr.f32.gmra.mxu0 %v984
      %v1211 = vpop.f32.mrf.mxu0
      %v1212 = vadd.f32 0.0, %v1211
      %v1213 = vpop.f32.mrf.mxu0
      %1214 = vmatprep.mubr.f32.mxu0 0.0
      %1215 = vmatmul.mubr.f32.gmra.mxu0 %v987
      %v1216 = vpop.f32.mrf.mxu0
      %v1217 = vadd.f32 0.0, %v1216
      %v1218 = vpop.f32.mrf.mxu0
      %1219 = vmatprep.mubr.f32.mxu0 0.0
      %1220 = vmatmul.mubr.f32.gmra.mxu0 %v990
      %v1221 = vpop.f32.mrf.mxu0
      %v1222 = vadd.f32 0.0, %v1221
      %v1223 = vpop.f32.mrf.mxu0
      %1224 = vmatprep.mubr.f32.mxu0 0.0
      %1225 = vmatmul.mubr.f32.gmra.mxu0 %v993
      %v1226 = vpop.f32.mrf.mxu0
      %v1227 = vadd.f32 0.0, %v1226
      %v1228 = vpop.f32.mrf.mxu0
      %1229 = vmatprep.mubr.f32.mxu0 0.0
      %1230 = vmatmul.mubr.f32.gmra.mxu0 %v996
      %v1231 = vpop.f32.mrf.mxu0
      %v1232 = vadd.f32 0.0, %v1231
      %v1233 = vpop.f32.mrf.mxu0
      %1234 = vmatprep.mubr.f32.mxu0 0.0
      %1235 = vmatmul.mubr.f32.gmra.mxu0 %v999
      %v1236 = vpop.f32.mrf.mxu0
      %v1237 = vadd.f32 0.0, %v1236
      %v1238 = vpop.f32.mrf.mxu0
      %1239 = vmatprep.mubr.f32.mxu0 0.0
      %1240 = vmatmul.mubr.f32.gmra.mxu0 %v1002
      %v1241 = vpop.f32.mrf.mxu0
      %v1242 = vadd.f32 0.0, %v1241
      %v1243 = vpop.f32.mrf.mxu0
      %1244 = vmatprep.mubr.f32.mxu0 0.0
      %1245 = vmatmul.mubr.f32.gmra.mxu0 %v1005
      %v1246 = vpop.f32.mrf.mxu0
      %v1247 = vadd.f32 0.0, %v1246
      %v1248 = vpop.f32.mrf.mxu0
      %1249 = vmatprep.mubr.f32.mxu0 0.0
      %1250 = vmatmul.mubr.f32.gmra.mxu0 %v1008
      %v1251 = vpop.f32.mrf.mxu0
      %v1252 = vadd.f32 0.0, %v1251
      %v1253 = vpop.f32.mrf.mxu0
      %1254 = vmatprep.mubr.f32.mxu0 0.0
      %1255 = vmatmul.mubr.f32.gmra.mxu0 %v1011
      %v1256 = vpop.f32.mrf.mxu0
      %v1257 = vadd.f32 0.0, %v1256
      %v1258 = vpop.f32.mrf.mxu0
      %1259 = vmatprep.mubr.f32.mxu0 0.0
      %1260 = vmatmul.mubr.f32.gmra.mxu0 %v1014
      %v1261 = vpop.f32.mrf.mxu0
      %v1262 = vadd.f32 0.0, %v1261
      %v1263 = vpop.f32.mrf.mxu0
      %1264 = vmatprep.mubr.f32.mxu0 0.0
      %1265 = vmatmul.mubr.f32.gmra.mxu0 %v1017
      %v1266 = vpop.f32.mrf.mxu0
      %v1267 = vadd.f32 0.0, %v1266
      %v1268 = vpop.f32.mrf.mxu0
      %1269 = vmatprep.mubr.f32.mxu0 0.0
      %1270 = vmatmul.mubr.f32.gmra.mxu0 %v1020
      %v1271 = vpop.f32.mrf.mxu0
      %v1272 = vadd.f32 0.0, %v1271
      %v1273 = vpop.f32.mrf.mxu0
      %1274 = vmatprep.mubr.f32.mxu0 0.0
      %1275 = vmatmul.mubr.f32.gmra.mxu0 %v1023
      %v1276 = vpop.f32.mrf.mxu0
      %v1277 = vadd.f32 0.0, %v1276
      %v1278 = vpop.f32.mrf.mxu0
      %1279 = vmatprep.mubr.f32.mxu0 0.0
      %1280 = vmatmul.mubr.f32.gmra.mxu0 %v1026
      %v1281 = vpop.f32.mrf.mxu0
      %v1282 = vadd.f32 0.0, %v1281
      %v1283 = vpop.f32.mrf.mxu0
      %1284 = vmatprep.mubr.f32.mxu0 0.0
      %1285 = vmatmul.mubr.f32.gmra.mxu0 %v1029
      %v1286 = vpop.f32.mrf.mxu0
      %v1287 = vadd.f32 0.0, %v1286
      %v1288 = vpop.f32.mrf.mxu0
      %1289 = vmatprep.mubr.f32.mxu0 0.0
      %1290 = vmatmul.mubr.f32.gmra.mxu0 %v1032
      %v1291 = vpop.f32.mrf.mxu0
      %v1292 = vadd.f32 0.0, %v1291
      %v1293 = vpop.f32.mrf.mxu0
      %1294 = vmatprep.mubr.f32.mxu0 0.0
      %1295 = vmatmul.mubr.f32.gmra.mxu0 %v1035
      %v1296 = vpop.f32.mrf.mxu0
      %v1297 = vadd.f32 0.0, %v1296
      %v1298 = vpop.f32.mrf.mxu0
      %1299 = vmatprep.mubr.f32.mxu0 0.0
      %1300 = vmatmul.mubr.f32.gmra.mxu0 %v1038
      %v1301 = vpop.f32.mrf.mxu0
      %v1302 = vadd.f32 0.0, %v1301
      %v1303 = vpop.f32.mrf.mxu0
      %1304 = vmatprep.mubr.f32.mxu0 0.0
      %1305 = vmatmul.mubr.f32.gmra.mxu0 %v1041
      %v1306 = vpop.f32.mrf.mxu0
      %v1307 = vadd.f32 0.0, %v1306
      %v1308 = vpop.f32.mrf.mxu0
      %1309 = vmatprep.mubr.f32.mxu0 0.0
      %1310 = vmatmul.mubr.f32.gmra.mxu0 %v1044
      %v1311 = vpop.f32.mrf.mxu0
      %v1312 = vadd.f32 0.0, %v1311
      %v1313 = vpop.f32.mrf.mxu0
      %1314 = vmatprep.mubr.f32.mxu0 0.0
      %1315 = vmatmul.mubr.f32.gmra.mxu0 %v1047
      %v1316 = vpop.f32.mrf.mxu0
      %v1317 = vadd.f32 0.0, %v1316
      %v1318 = vpop.f32.mrf.mxu0
      %1319 = vmatprep.mubr.f32.mxu0 0.0
      %1320 = vmatmul.mubr.f32.gmra.mxu0 %v1050
      %v1321 = vpop.f32.mrf.mxu0
      %v1322 = vadd.f32 0.0, %v1321
      %v1323 = vpop.f32.mrf.mxu0
      %1324 = vmatprep.mubr.f32.mxu0 0.0
      %1325 = vmatmul.mubr.f32.gmra.mxu0 %v1053
      %v1326 = vpop.f32.mrf.mxu0
      %v1327 = vadd.f32 0.0, %v1326
      %v1328 = vpop.f32.mrf.mxu0
      %1329 = vmatprep.mubr.f32.mxu0 0.0
      %1330 = vmatmul.mubr.f32.gmra.mxu0 %v1056
      %v1331 = vpop.f32.mrf.mxu0
      %v1332 = vadd.f32 0.0, %v1331
      %v1333 = vpop.f32.mrf.mxu0
      %1334 = vmatprep.mubr.f32.mxu0 0.0
      %1335 = vmatmul.mubr.f32.gmra.mxu0 %v1059
      %v1336 = vpop.f32.mrf.mxu0
      %v1337 = vadd.f32 0.0, %v1336
      %v1338 = vpop.f32.mrf.mxu0
      %1339 = vmatprep.mubr.f32.mxu0 0.0
      %1340 = vmatmul.mubr.f32.gmra.mxu0 %v1062
      %v1341 = vpop.f32.mrf.mxu0
      %v1342 = vadd.f32 0.0, %v1341
      %v1343 = vpop.f32.mrf.mxu0
      %1344 = vmatprep.mubr.f32.mxu0 0.0
      %1345 = vmatmul.mubr.f32.gmra.mxu0 %v1065
      %v1346 = vpop.f32.mrf.mxu0
      %v1347 = vadd.f32 0.0, %v1346
      %v1348 = vpop.f32.mrf.mxu0
      %1349 = vmatprep.mubr.f32.mxu0 0.0
      %1350 = vmatmul.mubr.f32.gmra.mxu0 %v1068
      %v1351 = vpop.f32.mrf.mxu0
      %v1352 = vadd.f32 0.0, %v1351
      %v1353 = vpop.f32.mrf.mxu0
      %1354 = vmatprep.mubr.f32.mxu0 0.0
      %1355 = vmatmul.mubr.f32.gmra.mxu0 %v1071
      %v1356 = vpop.f32.mrf.mxu0
      %v1357 = vadd.f32 0.0, %v1356
      %v1358 = vpop.f32.mrf.mxu0
      %1359 = vmatprep.mubr.f32.mxu0 0.0
      %1360 = vmatmul.mubr.f32.gmra.mxu0 %v1074
      %v1361 = vpop.f32.mrf.mxu0
      %v1362 = vadd.f32 0.0, %v1361
      %v1363 = vpop.f32.mrf.mxu0
      %1364 = vmatprep.mubr.f32.mxu0 0.0
      %1365 = vmatmul.mubr.f32.gmra.mxu0 %v1077
      %v1366 = vpop.f32.mrf.mxu0
      %v1367 = vadd.f32 0.0, %v1366
      %v1368 = vpop.f32.mrf.mxu0
      %1369 = vmatprep.mubr.f32.mxu0 0.0
      %1370 = vmatmul.mubr.f32.gmra.mxu0 %v1080
      %v1371 = vpop.f32.mrf.mxu0
      %v1372 = vadd.f32 0.0, %v1371
      %v1373 = vpop.f32.mrf.mxu0
      %1374 = vmatprep.mubr.f32.mxu0 0.0
      %1375 = vmatmul.mubr.f32.gmra.mxu0 %v1083
      %v1376 = vpop.f32.mrf.mxu0
      %v1377 = vadd.f32 0.0, %v1376
      %v1378 = vpop.f32.mrf.mxu0
      %1379 = vmatprep.mubr.f32.mxu0 0.0
      %1380 = vmatmul.mubr.f32.gmra.mxu0 %v1086
      %v1381 = vpop.f32.mrf.mxu0
      %v1382 = vadd.f32 0.0, %v1381
      %v1383 = vpop.f32.mrf.mxu0
      %1384 = vmatprep.mubr.f32.mxu0 0.0
      %1385 = vmatmul.mubr.f32.gmra.mxu0 %v1089
      %v1386 = vpop.f32.mrf.mxu0
      %v1387 = vadd.f32 0.0, %v1386
      %v1388 = vpop.f32.mrf.mxu0
      %1389 = vmatprep.mubr.f32.mxu0 0.0
      %1390 = vmatmul.mubr.f32.gmra.mxu0 %v1092
      %v1391 = vpop.f32.mrf.mxu0
      %v1392 = vadd.f32 0.0, %v1391
      %v1393 = vpop.f32.mrf.mxu0
      %1394 = vmatprep.mubr.f32.mxu0 0.0
      %1395 = vmatmul.mubr.f32.gmra.mxu0 %v1095
      %v1396 = vpop.f32.mrf.mxu0
      %v1397 = vadd.f32 0.0, %v1396
      %v1398 = vpop.f32.mrf.mxu0
      %1399 = vmatprep.mubr.f32.mxu0 0.0
      %1400 = vmatmul.mubr.f32.gmra.mxu0 %v1098
      %v1401 = vpop.f32.mrf.mxu0
      %v1402 = vadd.f32 0.0, %v1401
      %v1403 = vpop.f32.mrf.mxu0
      %1404 = vmatprep.mubr.f32.mxu0 0.0
      %1405 = vmatmul.mubr.f32.gmra.mxu0 %v1101
      %v1406 = vpop.f32.mrf.mxu0
      %v1407 = vadd.f32 0.0, %v1406
      %v1408 = vpop.f32.mrf.mxu0
      %1409 = vmatprep.mubr.f32.mxu0 0.0
      %1410 = vmatmul.mubr.f32.gmra.mxu0 %v1104
      %v1411 = vpop.f32.mrf.mxu0
      %v1412 = vadd.f32 0.0, %v1411
      %v1413 = vpop.f32.mrf.mxu0
      %1414 = vdwg.mxu0
      %1415 = vst.msk [vmem:[#allocation3 + $0x8] sm:$0xff] %vm252, %v1177
      %1416 = vst.msk [vmem:[#allocation3 + $0x10] sm:$0xff] %vm252, %v1182
      %1417 = vst.msk [vmem:[#allocation3 + $0x18] sm:$0xff] %vm252, %v1187
      %1418 = vst.msk [vmem:[#allocation3 + $0x20] sm:$0xff] %vm252, %v1192
      %1419 = vst.msk [vmem:[#allocation3 + $0x28] sm:$0xff] %vm252, %v1197
      %1420 = vst.msk [vmem:[#allocation3 + $0x30] sm:$0xff] %vm252, %v1202
      %1421 = vst.msk [vmem:[#allocation3 + $0x38] sm:$0xff] %vm252, %v1207
      %1422 = vst.msk [vmem:[#allocation3 + $0x40] sm:$0xff] %vm252, %v1212
      %1423 = vst.msk [vmem:[#allocation3 + $0x48] sm:$0xff] %vm252, %v1217
      %1424 = vst.msk [vmem:[#allocation3 + $0x50] sm:$0xff] %vm252, %v1222
      %1425 = vst.msk [vmem:[#allocation3 + $0x58] sm:$0xff] %vm252, %v1227
      %1426 = vst.msk [vmem:[#allocation3 + $0x60] sm:$0xff] %vm252, %v1232
      %1427 = vst.msk [vmem:[#allocation3 + $0x68] sm:$0xff] %vm252, %v1237
      %1428 = vst.msk [vmem:[#allocation3 + $0x70] sm:$0xff] %vm252, %v1242
      %1429 = vst.msk [vmem:[#allocation3 + $0x78] sm:$0xff] %vm252, %v1247
      %1430 = vst.msk [vmem:[#allocation3 + $0x80] sm:$0xff] %vm252, %v1252
      %1431 = vst.msk [vmem:[#allocation3 + $0x88] sm:$0xff] %vm252, %v1257
      %1432 = vst.msk [vmem:[#allocation3 + $0x90] sm:$0xff] %vm252, %v1262
      %1433 = vst.msk [vmem:[#allocation3 + $0x98] sm:$0xff] %vm252, %v1267
      %1434 = vst.msk [vmem:[#allocation3 + $0xa0] sm:$0xff] %vm252, %v1272
      %1435 = vst.msk [vmem:[#allocation3 + $0xa8] sm:$0xff] %vm252, %v1277
      %1436 = vst.msk [vmem:[#allocation3 + $0xb0] sm:$0xff] %vm252, %v1282
      %1437 = vst.msk [vmem:[#allocation3 + $0xb8] sm:$0xff] %vm252, %v1287
      %1438 = vst.msk [vmem:[#allocation3 + $0xc0] sm:$0xff] %vm252, %v1292
      %1439 = vst.msk [vmem:[#allocation3 + $0xc8] sm:$0xff] %vm252, %v1297
      %1440 = vst.msk [vmem:[#allocation3 + $0xd0] sm:$0xff] %vm252, %v1302
      %1441 = vst.msk [vmem:[#allocation3 + $0xd8] sm:$0xff] %vm252, %v1307
      %1442 = vst.msk [vmem:[#allocation3 + $0xe0] sm:$0xff] %vm252, %v1312
      %1443 = vst.msk [vmem:[#allocation3 + $0xe8] sm:$0xff] %vm252, %v1317
      %1444 = vst.msk [vmem:[#allocation3 + $0xf0] sm:$0xff] %vm252, %v1322
      %1445 = vst.msk [vmem:[#allocation3 + $0xf8] sm:$0xff] %vm252, %v1327
      %1446 = vst.msk [vmem:[#allocation3 + $0x100] sm:$0xff] %vm252, %v1332
      %1447 = vst.msk [vmem:[#allocation3 + $0x108] sm:$0xff] %vm252, %v1337
      %1448 = vst.msk [vmem:[#allocation3 + $0x110] sm:$0xff] %vm252, %v1342
      %1449 = vst.msk [vmem:[#allocation3 + $0x118] sm:$0xff] %vm252, %v1347
      %1450 = vst.msk [vmem:[#allocation3 + $0x120] sm:$0xff] %vm252, %v1352
      %1451 = vst.msk [vmem:[#allocation3 + $0x128] sm:$0xff] %vm252, %v1357
      %1452 = vst.msk [vmem:[#allocation3 + $0x130] sm:$0xff] %vm252, %v1362
      %1453 = vst.msk [vmem:[#allocation3 + $0x138] sm:$0xff] %vm252, %v1367
      %1454 = vst.msk [vmem:[#allocation3 + $0x140] sm:$0xff] %vm252, %v1372
      %1455 = vst.msk [vmem:[#allocation3 + $0x148] sm:$0xff] %vm252, %v1377
      %1456 = vst.msk [vmem:[#allocation3 + $0x150] sm:$0xff] %vm252, %v1382
      %1457 = vst.msk [vmem:[#allocation3 + $0x158] sm:$0xff] %vm252, %v1387
      %1458 = vst.msk [vmem:[#allocation3 + $0x160] sm:$0xff] %vm252, %v1392
      %1459 = vst.msk [vmem:[#allocation3 + $0x168] sm:$0xff] %vm252, %v1397
      %1460 = vst.msk [vmem:[#allocation3 + $0x170] sm:$0xff] %vm252, %v1402
      %1461 = vst.msk [vmem:[#allocation3 + $0x178] sm:$0xff] %vm252, %v1407
      %1462 = vst.msk [vmem:[#allocation3 + $0x180] sm:$0xff] %vm252, %v1412
      %v1463 = vld [vmem:[#allocation3 + $0x8] sm:$0xff]
      %v1464 = vld [vmem:[#allocation3 + $0x10] sm:$0xff]
      %v1465 = vld [vmem:[#allocation3 + $0x18] sm:$0xff]
      %v1466 = vld [vmem:[#allocation3 + $0x20] sm:$0xff]
      %v1467 = vld [vmem:[#allocation3 + $0x28] sm:$0xff]
      %v1468 = vld [vmem:[#allocation3 + $0x30] sm:$0xff]
      %v1469 = vld [vmem:[#allocation3 + $0x38] sm:$0xff]
      %v1470 = vld [vmem:[#allocation3 + $0x40] sm:$0xff]
      %v1471 = vld [vmem:[#allocation3 + $0x48] sm:$0xff]
      %v1472 = vld [vmem:[#allocation3 + $0x50] sm:$0xff]
      %v1473 = vld [vmem:[#allocation3 + $0x58] sm:$0xff]
      %v1474 = vld [vmem:[#allocation3 + $0x60] sm:$0xff]
      %v1475 = vld [vmem:[#allocation3 + $0x68] sm:$0xff]
      %v1476 = vld [vmem:[#allocation3 + $0x70] sm:$0xff]
      %v1477 = vld [vmem:[#allocation3 + $0x78] sm:$0xff]
      %v1478 = vld [vmem:[#allocation3 + $0x80] sm:$0xff]
      %v1479 = vld [vmem:[#allocation3 + $0x88] sm:$0xff]
      %v1480 = vld [vmem:[#allocation3 + $0x90] sm:$0xff]
      %v1481 = vld [vmem:[#allocation3 + $0x98] sm:$0xff]
      %v1482 = vld [vmem:[#allocation3 + $0xa0] sm:$0xff]
      %v1483 = vld [vmem:[#allocation3 + $0xa8] sm:$0xff]
      %v1484 = vld [vmem:[#allocation3 + $0xb0] sm:$0xff]
      %v1485 = vld [vmem:[#allocation3 + $0xb8] sm:$0xff]
      %v1486 = vld [vmem:[#allocation3 + $0xc0] sm:$0xff]
      %v1487 = vld [vmem:[#allocation3 + $0xc8] sm:$0xff]
      %v1488 = vld [vmem:[#allocation3 + $0xd0] sm:$0xff]
      %v1489 = vld [vmem:[#allocation3 + $0xd8] sm:$0xff]
      %v1490 = vld [vmem:[#allocation3 + $0xe0] sm:$0xff]
      %v1491 = vld [vmem:[#allocation3 + $0xe8] sm:$0xff]
      %v1492 = vld [vmem:[#allocation3 + $0xf0] sm:$0xff]
      %v1493 = vld [vmem:[#allocation3 + $0xf8] sm:$0xff]
      %v1494 = vld [vmem:[#allocation3 + $0x100] sm:$0xff]
      %v1495 = vld [vmem:[#allocation3 + $0x108] sm:$0xff]
      %v1496 = vld [vmem:[#allocation3 + $0x110] sm:$0xff]
      %v1497 = vld [vmem:[#allocation3 + $0x118] sm:$0xff]
      %v1498 = vld [vmem:[#allocation3 + $0x120] sm:$0xff]
      %v1499 = vld [vmem:[#allocation3 + $0x128] sm:$0xff]
      %v1500 = vld [vmem:[#allocation3 + $0x130] sm:$0xff]
      %v1501 = vld [vmem:[#allocation3 + $0x138] sm:$0xff]
      %v1502 = vld [vmem:[#allocation3 + $0x140] sm:$0xff]
      %v1503 = vld [vmem:[#allocation3 + $0x148] sm:$0xff]
      %v1504 = vld [vmem:[#allocation3 + $0x150] sm:$0xff]
      %v1505 = vld [vmem:[#allocation3 + $0x158] sm:$0xff]
      %v1506 = vld [vmem:[#allocation3 + $0x160] sm:$0xff]
      %v1507 = vld [vmem:[#allocation3 + $0x168] sm:$0xff]
      %v1508 = vld [vmem:[#allocation3 + $0x170] sm:$0xff]
      %v1509 = vld [vmem:[#allocation3 + $0x178] sm:$0xff]
      %v1510 = vld [vmem:[#allocation3 + $0x180] sm:$0xff]
      %v1511 = vld [vmem:[#allocation3 + $0x7] sm:$0xff]
      %v1512 = vld [vmem:[#allocation3 + $0xf] sm:$0xff]
      %v1513 = vld [vmem:[#allocation3 + $0x17] sm:$0xff]
      %v1514 = vld [vmem:[#allocation3 + $0x1f] sm:$0xff]
      %v1515 = vld [vmem:[#allocation3 + $0x27] sm:$0xff]
      %v1516 = vld [vmem:[#allocation3 + $0x2f] sm:$0xff]
      %v1517 = vld [vmem:[#allocation3 + $0x37] sm:$0xff]
      %v1518 = vld [vmem:[#allocation3 + $0x3f] sm:$0xff]
      %v1519 = vld [vmem:[#allocation3 + $0x47] sm:$0xff]
      %v1520 = vld [vmem:[#allocation3 + $0x4f] sm:$0xff]
      %v1521 = vld [vmem:[#allocation3 + $0x57] sm:$0xff]
      %v1522 = vld [vmem:[#allocation3 + $0x5f] sm:$0xff]
      %v1523 = vld [vmem:[#allocation3 + $0x67] sm:$0xff]
      %v1524 = vld [vmem:[#allocation3 + $0x6f] sm:$0xff]
      %v1525 = vld [vmem:[#allocation3 + $0x77] sm:$0xff]
      %v1526 = vld [vmem:[#allocation3 + $0x7f] sm:$0xff]
      %v1527 = vld [vmem:[#allocation3 + $0x87] sm:$0xff]
      %v1528 = vld [vmem:[#allocation3 + $0x8f] sm:$0xff]
      %v1529 = vld [vmem:[#allocation3 + $0x97] sm:$0xff]
      %v1530 = vld [vmem:[#allocation3 + $0x9f] sm:$0xff]
      %v1531 = vld [vmem:[#allocation3 + $0xa7] sm:$0xff]
      %v1532 = vld [vmem:[#allocation3 + $0xaf] sm:$0xff]
      %v1533 = vld [vmem:[#allocation3 + $0xb7] sm:$0xff]
      %v1534 = vld [vmem:[#allocation3 + $0xbf] sm:$0xff]
      %v1535 = vld [vmem:[#allocation3 + $0xc7] sm:$0xff]
      %v1536 = vld [vmem:[#allocation3 + $0xcf] sm:$0xff]
      %v1537 = vld [vmem:[#allocation3 + $0xd7] sm:$0xff]
      %v1538 = vld [vmem:[#allocation3 + $0xdf] sm:$0xff]
      %v1539 = vld [vmem:[#allocation3 + $0xe7] sm:$0xff]
      %v1540 = vld [vmem:[#allocation3 + $0xef] sm:$0xff]
      %v1541 = vld [vmem:[#allocation3 + $0xf7] sm:$0xff]
      %v1542 = vld [vmem:[#allocation3 + $0xff] sm:$0xff]
      %v1543 = vld [vmem:[#allocation3 + $0x107] sm:$0xff]
      %v1544 = vld [vmem:[#allocation3 + $0x10f] sm:$0xff]
      %v1545 = vld [vmem:[#allocation3 + $0x117] sm:$0xff]
      %v1546 = vld [vmem:[#allocation3 + $0x11f] sm:$0xff]
      %v1547 = vld [vmem:[#allocation3 + $0x127] sm:$0xff]
      %v1548 = vld [vmem:[#allocation3 + $0x12f] sm:$0xff]
      %v1549 = vld [vmem:[#allocation3 + $0x137] sm:$0xff]
      %v1550 = vld [vmem:[#allocation3 + $0x13f] sm:$0xff]
      %v1551 = vld [vmem:[#allocation3 + $0x147] sm:$0xff]
      %v1552 = vld [vmem:[#allocation3 + $0x14f] sm:$0xff]
      %v1553 = vld [vmem:[#allocation3 + $0x157] sm:$0xff]
      %v1554 = vld [vmem:[#allocation3 + $0x15f] sm:$0xff]
      %v1555 = vld [vmem:[#allocation3 + $0x167] sm:$0xff]
      %v1556 = vld [vmem:[#allocation3 + $0x16f] sm:$0xff]
      %v1557 = vld [vmem:[#allocation3 + $0x177] sm:$0xff]
      %v1558 = vld [vmem:[#allocation3 + $0x17f] sm:$0xff]
      %1607 = vrot.lane.b32.xlu0 %v1511, 4
      %v1608 = vpop.permute.xlu0 %1607
      %1609 = vrot.lane.b32.xlu0 %v1512, 4
      %v1610 = vpop.permute.xlu0 %1609
      %1611 = vrot.lane.b32.xlu0 %v1513, 4
      %v1612 = vpop.permute.xlu0 %1611
      %1613 = vrot.lane.b32.xlu0 %v1514, 4
      %v1614 = vpop.permute.xlu0 %1613
      %1615 = vrot.lane.b32.xlu0 %v1515, 4
      %v1616 = vpop.permute.xlu0 %1615
      %1617 = vrot.lane.b32.xlu0 %v1516, 4
      %v1618 = vpop.permute.xlu0 %1617
      %1619 = vrot.lane.b32.xlu0 %v1517, 4
      %v1620 = vpop.permute.xlu0 %1619
      %1621 = vrot.lane.b32.xlu0 %v1518, 4
      %v1622 = vpop.permute.xlu0 %1621
      %1623 = vrot.lane.b32.xlu0 %v1519, 4
      %v1624 = vpop.permute.xlu0 %1623
      %1625 = vrot.lane.b32.xlu0 %v1520, 4
      %v1626 = vpop.permute.xlu0 %1625
      %1627 = vrot.lane.b32.xlu0 %v1521, 4
      %v1628 = vpop.permute.xlu0 %1627
      %1629 = vrot.lane.b32.xlu0 %v1522, 4
      %v1630 = vpop.permute.xlu0 %1629
      %1631 = vrot.lane.b32.xlu0 %v1523, 4
      %v1632 = vpop.permute.xlu0 %1631
      %1633 = vrot.lane.b32.xlu0 %v1524, 4
      %v1634 = vpop.permute.xlu0 %1633
      %1635 = vrot.lane.b32.xlu0 %v1525, 4
      %v1636 = vpop.permute.xlu0 %1635
      %1637 = vrot.lane.b32.xlu0 %v1526, 4
      %v1638 = vpop.permute.xlu0 %1637
      %1639 = vrot.lane.b32.xlu0 %v1527, 4
      %v1640 = vpop.permute.xlu0 %1639
      %1641 = vrot.lane.b32.xlu0 %v1528, 4
      %v1642 = vpop.permute.xlu0 %1641
      %1643 = vrot.lane.b32.xlu0 %v1529, 4
      %v1644 = vpop.permute.xlu0 %1643
      %1645 = vrot.lane.b32.xlu0 %v1530, 4
      %v1646 = vpop.permute.xlu0 %1645
      %1647 = vrot.lane.b32.xlu0 %v1531, 4
      %v1648 = vpop.permute.xlu0 %1647
      %1649 = vrot.lane.b32.xlu0 %v1532, 4
      %v1650 = vpop.permute.xlu0 %1649
      %1651 = vrot.lane.b32.xlu0 %v1533, 4
      %v1652 = vpop.permute.xlu0 %1651
      %1653 = vrot.lane.b32.xlu0 %v1534, 4
      %v1654 = vpop.permute.xlu0 %1653
      %1655 = vrot.lane.b32.xlu0 %v1535, 4
      %v1656 = vpop.permute.xlu0 %1655
      %1657 = vrot.lane.b32.xlu0 %v1536, 4
      %v1658 = vpop.permute.xlu0 %1657
      %1659 = vrot.lane.b32.xlu0 %v1537, 4
      %v1660 = vpop.permute.xlu0 %1659
      %1661 = vrot.lane.b32.xlu0 %v1538, 4
      %v1662 = vpop.permute.xlu0 %1661
      %1663 = vrot.lane.b32.xlu0 %v1539, 4
      %v1664 = vpop.permute.xlu0 %1663
      %1665 = vrot.lane.b32.xlu0 %v1540, 4
      %v1666 = vpop.permute.xlu0 %1665
      %1667 = vrot.lane.b32.xlu0 %v1541, 4
      %v1668 = vpop.permute.xlu0 %1667
      %1669 = vrot.lane.b32.xlu0 %v1542, 4
      %v1670 = vpop.permute.xlu0 %1669
      %1671 = vrot.lane.b32.xlu0 %v1543, 4
      %v1672 = vpop.permute.xlu0 %1671
      %1673 = vrot.lane.b32.xlu0 %v1544, 4
      %v1674 = vpop.permute.xlu0 %1673
      %1675 = vrot.lane.b32.xlu0 %v1545, 4
      %v1676 = vpop.permute.xlu0 %1675
      %1677 = vrot.lane.b32.xlu0 %v1546, 4
      %v1678 = vpop.permute.xlu0 %1677
      %1679 = vrot.lane.b32.xlu0 %v1547, 4
      %v1680 = vpop.permute.xlu0 %1679
      %1681 = vrot.lane.b32.xlu0 %v1548, 4
      %v1682 = vpop.permute.xlu0 %1681
      %1683 = vrot.lane.b32.xlu0 %v1549, 4
      %v1684 = vpop.permute.xlu0 %1683
      %1685 = vrot.lane.b32.xlu0 %v1550, 4
      %v1686 = vpop.permute.xlu0 %1685
      %1687 = vrot.lane.b32.xlu0 %v1551, 4
      %v1688 = vpop.permute.xlu0 %1687
      %1689 = vrot.lane.b32.xlu0 %v1552, 4
      %v1690 = vpop.permute.xlu0 %1689
      %1691 = vrot.lane.b32.xlu0 %v1553, 4
      %v1692 = vpop.permute.xlu0 %1691
      %1693 = vrot.lane.b32.xlu0 %v1554, 4
      %v1694 = vpop.permute.xlu0 %1693
      %1695 = vrot.lane.b32.xlu0 %v1555, 4
      %v1696 = vpop.permute.xlu0 %1695
      %1697 = vrot.lane.b32.xlu0 %v1556, 4
      %v1698 = vpop.permute.xlu0 %1697
      %1699 = vrot.lane.b32.xlu0 %v1557, 4
      %v1700 = vpop.permute.xlu0 %1699
      %1701 = vrot.lane.b32.xlu0 %v1558, 4
      %v1702 = vpop.permute.xlu0 %1701
      %v1751 = vadd.f32 %v1463, %v1608
      %v1752 = vadd.f32 %v1464, %v1610
      %v1753 = vadd.f32 %v1465, %v1612
      %v1754 = vadd.f32 %v1466, %v1614
      %v1755 = vadd.f32 %v1467, %v1616
      %v1756 = vadd.f32 %v1468, %v1618
      %v1757 = vadd.f32 %v1469, %v1620
      %v1758 = vadd.f32 %v1470, %v1622
      %v1759 = vadd.f32 %v1471, %v1624
      %v1760 = vadd.f32 %v1472, %v1626
      %v1761 = vadd.f32 %v1473, %v1628
      %v1762 = vadd.f32 %v1474, %v1630
      %v1763 = vadd.f32 %v1475, %v1632
      %v1764 = vadd.f32 %v1476, %v1634
      %v1765 = vadd.f32 %v1477, %v1636
      %v1766 = vadd.f32 %v1478, %v1638
      %v1767 = vadd.f32 %v1479, %v1640
      %v1768 = vadd.f32 %v1480, %v1642
      %v1769 = vadd.f32 %v1481, %v1644
      %v1770 = vadd.f32 %v1482, %v1646
      %v1771 = vadd.f32 %v1483, %v1648
      %v1772 = vadd.f32 %v1484, %v1650
      %v1773 = vadd.f32 %v1485, %v1652
      %v1774 = vadd.f32 %v1486, %v1654
      %v1775 = vadd.f32 %v1487, %v1656
      %v1776 = vadd.f32 %v1488, %v1658
      %v1777 = vadd.f32 %v1489, %v1660
      %v1778 = vadd.f32 %v1490, %v1662
      %v1779 = vadd.f32 %v1491, %v1664
      %v1780 = vadd.f32 %v1492, %v1666
      %v1781 = vadd.f32 %v1493, %v1668
      %v1782 = vadd.f32 %v1494, %v1670
      %v1783 = vadd.f32 %v1495, %v1672
      %v1784 = vadd.f32 %v1496, %v1674
      %v1785 = vadd.f32 %v1497, %v1676
      %v1786 = vadd.f32 %v1498, %v1678
      %v1787 = vadd.f32 %v1499, %v1680
      %v1788 = vadd.f32 %v1500, %v1682
      %v1789 = vadd.f32 %v1501, %v1684
      %v1790 = vadd.f32 %v1502, %v1686
      %v1791 = vadd.f32 %v1503, %v1688
      %v1792 = vadd.f32 %v1504, %v1690
      %v1793 = vadd.f32 %v1505, %v1692
      %v1794 = vadd.f32 %v1506, %v1694
      %v1795 = vadd.f32 %v1507, %v1696
      %v1796 = vadd.f32 %v1508, %v1698
      %v1797 = vadd.f32 %v1509, %v1700
      %v1798 = vadd.f32 %v1510, %v1702
      %v1799 = vld [vmem:[#allocation3 + $0x9] sm:$0xff]
      %v1800 = vld [vmem:[#allocation3 + $0x11] sm:$0xff]
      %v1801 = vld [vmem:[#allocation3 + $0x19] sm:$0xff]
      %v1802 = vld [vmem:[#allocation3 + $0x21] sm:$0xff]
      %v1803 = vld [vmem:[#allocation3 + $0x29] sm:$0xff]
      %v1804 = vld [vmem:[#allocation3 + $0x31] sm:$0xff]
      %v1805 = vld [vmem:[#allocation3 + $0x39] sm:$0xff]
      %v1806 = vld [vmem:[#allocation3 + $0x41] sm:$0xff]
      %v1807 = vld [vmem:[#allocation3 + $0x49] sm:$0xff]
      %v1808 = vld [vmem:[#allocation3 + $0x51] sm:$0xff]
      %v1809 = vld [vmem:[#allocation3 + $0x59] sm:$0xff]
      %v1810 = vld [vmem:[#allocation3 + $0x61] sm:$0xff]
      %v1811 = vld [vmem:[#allocation3 + $0x69] sm:$0xff]
      %v1812 = vld [vmem:[#allocation3 + $0x71] sm:$0xff]
      %v1813 = vld [vmem:[#allocation3 + $0x79] sm:$0xff]
      %v1814 = vld [vmem:[#allocation3 + $0x81] sm:$0xff]
      %v1815 = vld [vmem:[#allocation3 + $0x89] sm:$0xff]
      %v1816 = vld [vmem:[#allocation3 + $0x91] sm:$0xff]
      %v1817 = vld [vmem:[#allocation3 + $0x99] sm:$0xff]
      %v1818 = vld [vmem:[#allocation3 + $0xa1] sm:$0xff]
      %v1819 = vld [vmem:[#allocation3 + $0xa9] sm:$0xff]
      %v1820 = vld [vmem:[#allocation3 + $0xb1] sm:$0xff]
      %v1821 = vld [vmem:[#allocation3 + $0xb9] sm:$0xff]
      %v1822 = vld [vmem:[#allocation3 + $0xc1] sm:$0xff]
      %v1823 = vld [vmem:[#allocation3 + $0xc9] sm:$0xff]
      %v1824 = vld [vmem:[#allocation3 + $0xd1] sm:$0xff]
      %v1825 = vld [vmem:[#allocation3 + $0xd9] sm:$0xff]
      %v1826 = vld [vmem:[#allocation3 + $0xe1] sm:$0xff]
      %v1827 = vld [vmem:[#allocation3 + $0xe9] sm:$0xff]
      %v1828 = vld [vmem:[#allocation3 + $0xf1] sm:$0xff]
      %v1829 = vld [vmem:[#allocation3 + $0xf9] sm:$0xff]
      %v1830 = vld [vmem:[#allocation3 + $0x101] sm:$0xff]
      %v1831 = vld [vmem:[#allocation3 + $0x109] sm:$0xff]
      %v1832 = vld [vmem:[#allocation3 + $0x111] sm:$0xff]
      %v1833 = vld [vmem:[#allocation3 + $0x119] sm:$0xff]
      %v1834 = vld [vmem:[#allocation3 + $0x121] sm:$0xff]
      %v1835 = vld [vmem:[#allocation3 + $0x129] sm:$0xff]
      %v1836 = vld [vmem:[#allocation3 + $0x131] sm:$0xff]
      %v1837 = vld [vmem:[#allocation3 + $0x139] sm:$0xff]
      %v1838 = vld [vmem:[#allocation3 + $0x141] sm:$0xff]
      %v1839 = vld [vmem:[#allocation3 + $0x149] sm:$0xff]
      %v1840 = vld [vmem:[#allocation3 + $0x151] sm:$0xff]
      %v1841 = vld [vmem:[#allocation3 + $0x159] sm:$0xff]
      %v1842 = vld [vmem:[#allocation3 + $0x161] sm:$0xff]
      %v1843 = vld [vmem:[#allocation3 + $0x169] sm:$0xff]
      %v1844 = vld [vmem:[#allocation3 + $0x171] sm:$0xff]
      %v1845 = vld [vmem:[#allocation3 + $0x179] sm:$0xff]
      %v1846 = vld [vmem:[#allocation3 + $0x181] sm:$0xff]
      %1895 = vrot.lane.b32.xlu0 %v1799, 124
      %v1896 = vpop.permute.xlu0 %1895
      %1897 = vrot.lane.b32.xlu0 %v1800, 124
      %v1898 = vpop.permute.xlu0 %1897
      %1899 = vrot.lane.b32.xlu0 %v1801, 124
      %v1900 = vpop.permute.xlu0 %1899
      %1901 = vrot.lane.b32.xlu0 %v1802, 124
      %v1902 = vpop.permute.xlu0 %1901
      %1903 = vrot.lane.b32.xlu0 %v1803, 124
      %v1904 = vpop.permute.xlu0 %1903
      %1905 = vrot.lane.b32.xlu0 %v1804, 124
      %v1906 = vpop.permute.xlu0 %1905
      %1907 = vrot.lane.b32.xlu0 %v1805, 124
      %v1908 = vpop.permute.xlu0 %1907
      %1909 = vrot.lane.b32.xlu0 %v1806, 124
      %v1910 = vpop.permute.xlu0 %1909
      %1911 = vrot.lane.b32.xlu0 %v1807, 124
      %v1912 = vpop.permute.xlu0 %1911
      %1913 = vrot.lane.b32.xlu0 %v1808, 124
      %v1914 = vpop.permute.xlu0 %1913
      %1915 = vrot.lane.b32.xlu0 %v1809, 124
      %v1916 = vpop.permute.xlu0 %1915
      %1917 = vrot.lane.b32.xlu0 %v1810, 124
      %v1918 = vpop.permute.xlu0 %1917
      %1919 = vrot.lane.b32.xlu0 %v1811, 124
      %v1920 = vpop.permute.xlu0 %1919
      %1921 = vrot.lane.b32.xlu0 %v1812, 124
      %v1922 = vpop.permute.xlu0 %1921
      %1923 = vrot.lane.b32.xlu0 %v1813, 124
      %v1924 = vpop.permute.xlu0 %1923
      %1925 = vrot.lane.b32.xlu0 %v1814, 124
      %v1926 = vpop.permute.xlu0 %1925
      %1927 = vrot.lane.b32.xlu0 %v1815, 124
      %v1928 = vpop.permute.xlu0 %1927
      %1929 = vrot.lane.b32.xlu0 %v1816, 124
      %v1930 = vpop.permute.xlu0 %1929
      %1931 = vrot.lane.b32.xlu0 %v1817, 124
      %v1932 = vpop.permute.xlu0 %1931
      %1933 = vrot.lane.b32.xlu0 %v1818, 124
      %v1934 = vpop.permute.xlu0 %1933
      %1935 = vrot.lane.b32.xlu0 %v1819, 124
      %v1936 = vpop.permute.xlu0 %1935
      %1937 = vrot.lane.b32.xlu0 %v1820, 124
      %v1938 = vpop.permute.xlu0 %1937
      %1939 = vrot.lane.b32.xlu0 %v1821, 124
      %v1940 = vpop.permute.xlu0 %1939
      %1941 = vrot.lane.b32.xlu0 %v1822, 124
      %v1942 = vpop.permute.xlu0 %1941
      %1943 = vrot.lane.b32.xlu0 %v1823, 124
      %v1944 = vpop.permute.xlu0 %1943
      %1945 = vrot.lane.b32.xlu0 %v1824, 124
      %v1946 = vpop.permute.xlu0 %1945
      %1947 = vrot.lane.b32.xlu0 %v1825, 124
      %v1948 = vpop.permute.xlu0 %1947
      %1949 = vrot.lane.b32.xlu0 %v1826, 124
      %v1950 = vpop.permute.xlu0 %1949
      %1951 = vrot.lane.b32.xlu0 %v1827, 124
      %v1952 = vpop.permute.xlu0 %1951
      %1953 = vrot.lane.b32.xlu0 %v1828, 124
      %v1954 = vpop.permute.xlu0 %1953
      %1955 = vrot.lane.b32.xlu0 %v1829, 124
      %v1956 = vpop.permute.xlu0 %1955
      %1957 = vrot.lane.b32.xlu0 %v1830, 124
      %v1958 = vpop.permute.xlu0 %1957
      %1959 = vrot.lane.b32.xlu0 %v1831, 124
      %v1960 = vpop.permute.xlu0 %1959
      %1961 = vrot.lane.b32.xlu0 %v1832, 124
      %v1962 = vpop.permute.xlu0 %1961
      %1963 = vrot.lane.b32.xlu0 %v1833, 124
      %v1964 = vpop.permute.xlu0 %1963
      %1965 = vrot.lane.b32.xlu0 %v1834, 124
      %v1966 = vpop.permute.xlu0 %1965
      %1967 = vrot.lane.b32.xlu0 %v1835, 124
      %v1968 = vpop.permute.xlu0 %1967
      %1969 = vrot.lane.b32.xlu0 %v1836, 124
      %v1970 = vpop.permute.xlu0 %1969
      %1971 = vrot.lane.b32.xlu0 %v1837, 124
      %v1972 = vpop.permute.xlu0 %1971
      %1973 = vrot.lane.b32.xlu0 %v1838, 124
      %v1974 = vpop.permute.xlu0 %1973
      %1975 = vrot.lane.b32.xlu0 %v1839, 124
      %v1976 = vpop.permute.xlu0 %1975
      %1977 = vrot.lane.b32.xlu0 %v1840, 124
      %v1978 = vpop.permute.xlu0 %1977
      %1979 = vrot.lane.b32.xlu0 %v1841, 124
      %v1980 = vpop.permute.xlu0 %1979
      %1981 = vrot.lane.b32.xlu0 %v1842, 124
      %v1982 = vpop.permute.xlu0 %1981
      %1983 = vrot.lane.b32.xlu0 %v1843, 124
      %v1984 = vpop.permute.xlu0 %1983
      %1985 = vrot.lane.b32.xlu0 %v1844, 124
      %v1986 = vpop.permute.xlu0 %1985
      %1987 = vrot.lane.b32.xlu0 %v1845, 124
      %v1988 = vpop.permute.xlu0 %1987
      %1989 = vrot.lane.b32.xlu0 %v1846, 124
      %v1990 = vpop.permute.xlu0 %1989
      %v2039 = vadd.f32 %v1751, %v1896
      %v2040 = vadd.f32 %v1752, %v1898
      %v2041 = vadd.f32 %v1753, %v1900
      %v2042 = vadd.f32 %v1754, %v1902
      %v2043 = vadd.f32 %v1755, %v1904
      %v2044 = vadd.f32 %v1756, %v1906
      %v2045 = vadd.f32 %v1757, %v1908
      %v2046 = vadd.f32 %v1758, %v1910
      %v2047 = vadd.f32 %v1759, %v1912
      %v2048 = vadd.f32 %v1760, %v1914
      %v2049 = vadd.f32 %v1761, %v1916
      %v2050 = vadd.f32 %v1762, %v1918
      %v2051 = vadd.f32 %v1763, %v1920
      %v2052 = vadd.f32 %v1764, %v1922
      %v2053 = vadd.f32 %v1765, %v1924
      %v2054 = vadd.f32 %v1766, %v1926
      %v2055 = vadd.f32 %v1767, %v1928
      %v2056 = vadd.f32 %v1768, %v1930
      %v2057 = vadd.f32 %v1769, %v1932
      %v2058 = vadd.f32 %v1770, %v1934
      %v2059 = vadd.f32 %v1771, %v1936
      %v2060 = vadd.f32 %v1772, %v1938
      %v2061 = vadd.f32 %v1773, %v1940
      %v2062 = vadd.f32 %v1774, %v1942
      %v2063 = vadd.f32 %v1775, %v1944
      %v2064 = vadd.f32 %v1776, %v1946
      %v2065 = vadd.f32 %v1777, %v1948
      %v2066 = vadd.f32 %v1778, %v1950
      %v2067 = vadd.f32 %v1779, %v1952
      %v2068 = vadd.f32 %v1780, %v1954
      %v2069 = vadd.f32 %v1781, %v1956
      %v2070 = vadd.f32 %v1782, %v1958
      %v2071 = vadd.f32 %v1783, %v1960
      %v2072 = vadd.f32 %v1784, %v1962
      %v2073 = vadd.f32 %v1785, %v1964
      %v2074 = vadd.f32 %v1786, %v1966
      %v2075 = vadd.f32 %v1787, %v1968
      %v2076 = vadd.f32 %v1788, %v1970
      %v2077 = vadd.f32 %v1789, %v1972
      %v2078 = vadd.f32 %v1790, %v1974
      %v2079 = vadd.f32 %v1791, %v1976
      %v2080 = vadd.f32 %v1792, %v1978
      %v2081 = vadd.f32 %v1793, %v1980
      %v2082 = vadd.f32 %v1794, %v1982
      %v2083 = vadd.f32 %v1795, %v1984
      %v2084 = vadd.f32 %v1796, %v1986
      %v2085 = vadd.f32 %v1797, %v1988
      %v2086 = vadd.f32 %v1798, %v1990
      %v2087 = vld [vmem:[%s2] sm:$0x1]
      %v2089 = vlaneseq
      %v2090 = vshrl.u32 %v2089, 7
      %v2091 = vsub.s32 0, %v2090
      %v2092 = vrot.slane %v2087, %v2091
      %2093 = vrot.lane.b32.xlu0 %v2092, 4
      %v2094 = vpop.permute.xlu0 %2093
      %v2096 = vadd.f32 %v2039, %v2094
      %v2097 = vadd.f32 %v2040, %v2094
      %v2098 = vadd.f32 %v2041, %v2094
      %v2099 = vadd.f32 %v2042, %v2094
      %v2100 = vadd.f32 %v2043, %v2094
      %v2101 = vadd.f32 %v2044, %v2094
      %v2102 = vadd.f32 %v2045, %v2094
      %v2103 = vadd.f32 %v2046, %v2094
      %v2104 = vadd.f32 %v2047, %v2094
      %v2105 = vadd.f32 %v2048, %v2094
      %v2106 = vadd.f32 %v2049, %v2094
      %v2107 = vadd.f32 %v2050, %v2094
      %v2108 = vadd.f32 %v2051, %v2094
      %v2109 = vadd.f32 %v2052, %v2094
      %v2110 = vadd.f32 %v2053, %v2094
      %v2111 = vadd.f32 %v2054, %v2094
      %v2112 = vadd.f32 %v2055, %v2094
      %v2113 = vadd.f32 %v2056, %v2094
      %v2114 = vadd.f32 %v2057, %v2094
      %v2115 = vadd.f32 %v2058, %v2094
      %v2116 = vadd.f32 %v2059, %v2094
      %v2117 = vadd.f32 %v2060, %v2094
      %v2118 = vadd.f32 %v2061, %v2094
      %v2119 = vadd.f32 %v2062, %v2094
      %v2120 = vadd.f32 %v2063, %v2094
      %v2121 = vadd.f32 %v2064, %v2094
      %v2122 = vadd.f32 %v2065, %v2094
      %v2123 = vadd.f32 %v2066, %v2094
      %v2124 = vadd.f32 %v2067, %v2094
      %v2125 = vadd.f32 %v2068, %v2094
      %v2126 = vadd.f32 %v2069, %v2094
      %v2127 = vadd.f32 %v2070, %v2094
      %v2128 = vadd.f32 %v2071, %v2094
      %v2129 = vadd.f32 %v2072, %v2094
      %v2130 = vadd.f32 %v2073, %v2094
      %v2131 = vadd.f32 %v2074, %v2094
      %v2132 = vadd.f32 %v2075, %v2094
      %v2133 = vadd.f32 %v2076, %v2094
      %v2134 = vadd.f32 %v2077, %v2094
      %v2135 = vadd.f32 %v2078, %v2094
      %v2136 = vadd.f32 %v2079, %v2094
      %v2137 = vadd.f32 %v2080, %v2094
      %v2138 = vadd.f32 %v2081, %v2094
      %v2139 = vadd.f32 %v2082, %v2094
      %v2140 = vadd.f32 %v2083, %v2094
      %v2141 = vadd.f32 %v2084, %v2094
      %v2142 = vadd.f32 %v2085, %v2094
      %v2143 = vadd.f32 %v2086, %v2094
      %v2144 = vmax.f32 %v2096, 0.0
      %v2145 = vmax.f32 %v2097, 0.0
      %v2146 = vmax.f32 %v2098, 0.0
      %v2147 = vmax.f32 %v2099, 0.0
      %v2148 = vmax.f32 %v2100, 0.0
      %v2149 = vmax.f32 %v2101, 0.0
      %v2150 = vmax.f32 %v2102, 0.0
      %v2151 = vmax.f32 %v2103, 0.0
      %v2152 = vmax.f32 %v2104, 0.0
      %v2153 = vmax.f32 %v2105, 0.0
      %v2154 = vmax.f32 %v2106, 0.0
      %v2155 = vmax.f32 %v2107, 0.0
      %v2156 = vmax.f32 %v2108, 0.0
      %v2157 = vmax.f32 %v2109, 0.0
      %v2158 = vmax.f32 %v2110, 0.0
      %v2159 = vmax.f32 %v2111, 0.0
      %v2160 = vmax.f32 %v2112, 0.0
      %v2161 = vmax.f32 %v2113, 0.0
      %v2162 = vmax.f32 %v2114, 0.0
      %v2163 = vmax.f32 %v2115, 0.0
      %v2164 = vmax.f32 %v2116, 0.0
      %v2165 = vmax.f32 %v2117, 0.0
      %v2166 = vmax.f32 %v2118, 0.0
      %v2167 = vmax.f32 %v2119, 0.0
      %v2168 = vmax.f32 %v2120, 0.0
      %v2169 = vmax.f32 %v2121, 0.0
      %v2170 = vmax.f32 %v2122, 0.0
      %v2171 = vmax.f32 %v2123, 0.0
      %v2172 = vmax.f32 %v2124, 0.0
      %v2173 = vmax.f32 %v2125, 0.0
      %v2174 = vmax.f32 %v2126, 0.0
      %v2175 = vmax.f32 %v2127, 0.0
      %v2176 = vmax.f32 %v2128, 0.0
      %v2177 = vmax.f32 %v2129, 0.0
      %v2178 = vmax.f32 %v2130, 0.0
      %v2179 = vmax.f32 %v2131, 0.0
      %v2180 = vmax.f32 %v2132, 0.0
      %v2181 = vmax.f32 %v2133, 0.0
      %v2182 = vmax.f32 %v2134, 0.0
      %v2183 = vmax.f32 %v2135, 0.0
      %v2184 = vmax.f32 %v2136, 0.0
      %v2185 = vmax.f32 %v2137, 0.0
      %v2186 = vmax.f32 %v2138, 0.0
      %v2187 = vmax.f32 %v2139, 0.0
      %v2188 = vmax.f32 %v2140, 0.0
      %v2189 = vmax.f32 %v2141, 0.0
      %v2190 = vmax.f32 %v2142, 0.0
      %v2191 = vmax.f32 %v2143, 0.0
      %v2192 = vld [vmem:[%s5] sm:$0xff]
      %v2193 = vld [vmem:[%s5 + $0x8] sm:$0xff]
      %v2194 = vld [vmem:[%s5 + $0x10] sm:$0xff]
      %v2195 = vld [vmem:[%s5 + $0x18] sm:$0xff]
      %v2196 = vld [vmem:[%s5 + $0x20] sm:$0xff]
      %v2197 = vld [vmem:[%s5 + $0x28] sm:$0xff]
      %v2198 = vld [vmem:[%s5 + $0x30] sm:$0xff]
      %v2199 = vld [vmem:[%s5 + $0x38] sm:$0xff]
      %v2200 = vld [vmem:[%s5 + $0x40] sm:$0xff]
      %v2201 = vld [vmem:[%s5 + $0x48] sm:$0xff]
      %v2202 = vld [vmem:[%s5 + $0x50] sm:$0xff]
      %v2203 = vld [vmem:[%s5 + $0x58] sm:$0xff]
      %v2204 = vld [vmem:[%s5 + $0x60] sm:$0xff]
      %v2205 = vld [vmem:[%s5 + $0x68] sm:$0xff]
      %v2206 = vld [vmem:[%s5 + $0x70] sm:$0xff]
      %v2207 = vld [vmem:[%s5 + $0x78] sm:$0xff]
      %v2208 = vld [vmem:[%s5 + $0x80] sm:$0xff]
      %v2209 = vld [vmem:[%s5 + $0x88] sm:$0xff]
      %v2210 = vld [vmem:[%s5 + $0x90] sm:$0xff]
      %v2211 = vld [vmem:[%s5 + $0x98] sm:$0xff]
      %v2212 = vld [vmem:[%s5 + $0xa0] sm:$0xff]
      %v2213 = vld [vmem:[%s5 + $0xa8] sm:$0xff]
      %v2214 = vld [vmem:[%s5 + $0xb0] sm:$0xff]
      %v2215 = vld [vmem:[%s5 + $0xb8] sm:$0xff]
      %v2216 = vld [vmem:[%s5 + $0xc0] sm:$0xff]
      %v2217 = vld [vmem:[%s5 + $0xc8] sm:$0xff]
      %v2218 = vld [vmem:[%s5 + $0xd0] sm:$0xff]
      %v2219 = vld [vmem:[%s5 + $0xd8] sm:$0xff]
      %v2220 = vld [vmem:[%s5 + $0xe0] sm:$0xff]
      %v2221 = vld [vmem:[%s5 + $0xe8] sm:$0xff]
      %v2222 = vld [vmem:[%s5 + $0xf0] sm:$0xff]
      %v2223 = vld [vmem:[%s5 + $0xf8] sm:$0xff]
      %v2224 = vld [vmem:[%s5 + $0x100] sm:$0xff]
      %v2225 = vld [vmem:[%s5 + $0x108] sm:$0xff]
      %v2226 = vld [vmem:[%s5 + $0x110] sm:$0xff]
      %v2227 = vld [vmem:[%s5 + $0x118] sm:$0xff]
      %v2228 = vld [vmem:[%s5 + $0x120] sm:$0xff]
      %v2229 = vld [vmem:[%s5 + $0x128] sm:$0xff]
      %v2230 = vld [vmem:[%s5 + $0x130] sm:$0xff]
      %v2231 = vld [vmem:[%s5 + $0x138] sm:$0xff]
      %v2232 = vld [vmem:[%s5 + $0x140] sm:$0xff]
      %v2233 = vld [vmem:[%s5 + $0x148] sm:$0xff]
      %v2234 = vld [vmem:[%s5 + $0x150] sm:$0xff]
      %v2235 = vld [vmem:[%s5 + $0x158] sm:$0xff]
      %v2236 = vld [vmem:[%s5 + $0x160] sm:$0xff]
      %v2237 = vld [vmem:[%s5 + $0x168] sm:$0xff]
      %v2238 = vld [vmem:[%s5 + $0x170] sm:$0xff]
      %v2239 = vld [vmem:[%s5 + $0x178] sm:$0xff]
      %2241 = vset.pattern.permute.xlu0 0
      %2242 = vperm.xlu0 %2241, %v2192
      %v2243 = vpop.permute.xlu0 %2242
      %2246 = vset.pattern.permute.xlu0 0
      %2247 = vperm.xlu0 %2246, %v2193
      %v2248 = vpop.permute.xlu0 %2247
      %2251 = vset.pattern.permute.xlu0 0
      %2252 = vperm.xlu0 %2251, %v2194
      %v2253 = vpop.permute.xlu0 %2252
      %2256 = vset.pattern.permute.xlu0 0
      %2257 = vperm.xlu0 %2256, %v2195
      %v2258 = vpop.permute.xlu0 %2257
      %2261 = vset.pattern.permute.xlu0 0
      %2262 = vperm.xlu0 %2261, %v2196
      %v2263 = vpop.permute.xlu0 %2262
      %2266 = vset.pattern.permute.xlu0 0
      %2267 = vperm.xlu0 %2266, %v2197
      %v2268 = vpop.permute.xlu0 %2267
      %2271 = vset.pattern.permute.xlu0 0
      %2272 = vperm.xlu0 %2271, %v2198
      %v2273 = vpop.permute.xlu0 %2272
      %2276 = vset.pattern.permute.xlu0 0
      %2277 = vperm.xlu0 %2276, %v2199
      %v2278 = vpop.permute.xlu0 %2277
      %2281 = vset.pattern.permute.xlu0 0
      %2282 = vperm.xlu0 %2281, %v2200
      %v2283 = vpop.permute.xlu0 %2282
      %2286 = vset.pattern.permute.xlu0 0
      %2287 = vperm.xlu0 %2286, %v2201
      %v2288 = vpop.permute.xlu0 %2287
      %2291 = vset.pattern.permute.xlu0 0
      %2292 = vperm.xlu0 %2291, %v2202
      %v2293 = vpop.permute.xlu0 %2292
      %2296 = vset.pattern.permute.xlu0 0
      %2297 = vperm.xlu0 %2296, %v2203
      %v2298 = vpop.permute.xlu0 %2297
      %2301 = vset.pattern.permute.xlu0 0
      %2302 = vperm.xlu0 %2301, %v2204
      %v2303 = vpop.permute.xlu0 %2302
      %2306 = vset.pattern.permute.xlu0 0
      %2307 = vperm.xlu0 %2306, %v2205
      %v2308 = vpop.permute.xlu0 %2307
      %2311 = vset.pattern.permute.xlu0 0
      %2312 = vperm.xlu0 %2311, %v2206
      %v2313 = vpop.permute.xlu0 %2312
      %2316 = vset.pattern.permute.xlu0 0
      %2317 = vperm.xlu0 %2316, %v2207
      %v2318 = vpop.permute.xlu0 %2317
      %2321 = vset.pattern.permute.xlu0 0
      %2322 = vperm.xlu0 %2321, %v2208
      %v2323 = vpop.permute.xlu0 %2322
      %2326 = vset.pattern.permute.xlu0 0
      %2327 = vperm.xlu0 %2326, %v2209
      %v2328 = vpop.permute.xlu0 %2327
      %2331 = vset.pattern.permute.xlu0 0
      %2332 = vperm.xlu0 %2331, %v2210
      %v2333 = vpop.permute.xlu0 %2332
      %2336 = vset.pattern.permute.xlu0 0
      %2337 = vperm.xlu0 %2336, %v2211
      %v2338 = vpop.permute.xlu0 %2337
      %2341 = vset.pattern.permute.xlu0 0
      %2342 = vperm.xlu0 %2341, %v2212
      %v2343 = vpop.permute.xlu0 %2342
      %2346 = vset.pattern.permute.xlu0 0
      %2347 = vperm.xlu0 %2346, %v2213
      %v2348 = vpop.permute.xlu0 %2347
      %2351 = vset.pattern.permute.xlu0 0
      %2352 = vperm.xlu0 %2351, %v2214
      %v2353 = vpop.permute.xlu0 %2352
      %2356 = vset.pattern.permute.xlu0 0
      %2357 = vperm.xlu0 %2356, %v2215
      %v2358 = vpop.permute.xlu0 %2357
      %2361 = vset.pattern.permute.xlu0 0
      %2362 = vperm.xlu0 %2361, %v2216
      %v2363 = vpop.permute.xlu0 %2362
      %2366 = vset.pattern.permute.xlu0 0
      %2367 = vperm.xlu0 %2366, %v2217
      %v2368 = vpop.permute.xlu0 %2367
      %2371 = vset.pattern.permute.xlu0 0
      %2372 = vperm.xlu0 %2371, %v2218
      %v2373 = vpop.permute.xlu0 %2372
      %2376 = vset.pattern.permute.xlu0 0
      %2377 = vperm.xlu0 %2376, %v2219
      %v2378 = vpop.permute.xlu0 %2377
      %2381 = vset.pattern.permute.xlu0 0
      %2382 = vperm.xlu0 %2381, %v2220
      %v2383 = vpop.permute.xlu0 %2382
      %2386 = vset.pattern.permute.xlu0 0
      %2387 = vperm.xlu0 %2386, %v2221
      %v2388 = vpop.permute.xlu0 %2387
      %2391 = vset.pattern.permute.xlu0 0
      %2392 = vperm.xlu0 %2391, %v2222
      %v2393 = vpop.permute.xlu0 %2392
      %2396 = vset.pattern.permute.xlu0 0
      %2397 = vperm.xlu0 %2396, %v2223
      %v2398 = vpop.permute.xlu0 %2397
      %2401 = vset.pattern.permute.xlu0 0
      %2402 = vperm.xlu0 %2401, %v2224
      %v2403 = vpop.permute.xlu0 %2402
      %2406 = vset.pattern.permute.xlu0 0
      %2407 = vperm.xlu0 %2406, %v2225
      %v2408 = vpop.permute.xlu0 %2407
      %2411 = vset.pattern.permute.xlu0 0
      %2412 = vperm.xlu0 %2411, %v2226
      %v2413 = vpop.permute.xlu0 %2412
      %2416 = vset.pattern.permute.xlu0 0
      %2417 = vperm.xlu0 %2416, %v2227
      %v2418 = vpop.permute.xlu0 %2417
      %2421 = vset.pattern.permute.xlu0 0
      %2422 = vperm.xlu0 %2421, %v2228
      %v2423 = vpop.permute.xlu0 %2422
      %2426 = vset.pattern.permute.xlu0 0
      %2427 = vperm.xlu0 %2426, %v2229
      %v2428 = vpop.permute.xlu0 %2427
      %2431 = vset.pattern.permute.xlu0 0
      %2432 = vperm.xlu0 %2431, %v2230
      %v2433 = vpop.permute.xlu0 %2432
      %2436 = vset.pattern.permute.xlu0 0
      %2437 = vperm.xlu0 %2436, %v2231
      %v2438 = vpop.permute.xlu0 %2437
      %2441 = vset.pattern.permute.xlu0 0
      %2442 = vperm.xlu0 %2441, %v2232
      %v2443 = vpop.permute.xlu0 %2442
      %2446 = vset.pattern.permute.xlu0 0
      %2447 = vperm.xlu0 %2446, %v2233
      %v2448 = vpop.permute.xlu0 %2447
      %2451 = vset.pattern.permute.xlu0 0
      %2452 = vperm.xlu0 %2451, %v2234
      %v2453 = vpop.permute.xlu0 %2452
      %2456 = vset.pattern.permute.xlu0 0
      %2457 = vperm.xlu0 %2456, %v2235
      %v2458 = vpop.permute.xlu0 %2457
      %2461 = vset.pattern.permute.xlu0 0
      %2462 = vperm.xlu0 %2461, %v2236
      %v2463 = vpop.permute.xlu0 %2462
      %2466 = vset.pattern.permute.xlu0 0
      %2467 = vperm.xlu0 %2466, %v2237
      %v2468 = vpop.permute.xlu0 %2467
      %2471 = vset.pattern.permute.xlu0 0
      %2472 = vperm.xlu0 %2471, %v2238
      %v2473 = vpop.permute.xlu0 %2472
      %2476 = vset.pattern.permute.xlu0 0
      %2477 = vperm.xlu0 %2476, %v2239
      %v2478 = vpop.permute.xlu0 %2477
      %v2480 = vmul.f32 %v2144, %v2243
      %v2481 = vmul.f32 %v2145, %v2248
      %v2482 = vmul.f32 %v2146, %v2253
      %v2483 = vmul.f32 %v2147, %v2258
      %v2484 = vmul.f32 %v2148, %v2263
      %v2485 = vmul.f32 %v2149, %v2268
      %v2486 = vmul.f32 %v2150, %v2273
      %v2487 = vmul.f32 %v2151, %v2278
      %v2488 = vmul.f32 %v2152, %v2283
      %v2489 = vmul.f32 %v2153, %v2288
      %v2490 = vmul.f32 %v2154, %v2293
      %v2491 = vmul.f32 %v2155, %v2298
      %v2492 = vmul.f32 %v2156, %v2303
      %v2493 = vmul.f32 %v2157, %v2308
      %v2494 = vmul.f32 %v2158, %v2313
      %v2495 = vmul.f32 %v2159, %v2318
      %v2496 = vmul.f32 %v2160, %v2323
      %v2497 = vmul.f32 %v2161, %v2328
      %v2498 = vmul.f32 %v2162, %v2333
      %v2499 = vmul.f32 %v2163, %v2338
      %v2500 = vmul.f32 %v2164, %v2343
      %v2501 = vmul.f32 %v2165, %v2348
      %v2502 = vmul.f32 %v2166, %v2353
      %v2503 = vmul.f32 %v2167, %v2358
      %v2504 = vmul.f32 %v2168, %v2363
      %v2505 = vmul.f32 %v2169, %v2368
      %v2506 = vmul.f32 %v2170, %v2373
      %v2507 = vmul.f32 %v2171, %v2378
      %v2508 = vmul.f32 %v2172, %v2383
      %v2509 = vmul.f32 %v2173, %v2388
      %v2510 = vmul.f32 %v2174, %v2393
      %v2511 = vmul.f32 %v2175, %v2398
      %v2512 = vmul.f32 %v2176, %v2403
      %v2513 = vmul.f32 %v2177, %v2408
      %v2514 = vmul.f32 %v2178, %v2413
      %v2515 = vmul.f32 %v2179, %v2418
      %v2516 = vmul.f32 %v2180, %v2423
      %v2517 = vmul.f32 %v2181, %v2428
      %v2518 = vmul.f32 %v2182, %v2433
      %v2519 = vmul.f32 %v2183, %v2438
      %v2520 = vmul.f32 %v2184, %v2443
      %v2521 = vmul.f32 %v2185, %v2448
      %v2522 = vmul.f32 %v2186, %v2453
      %v2523 = vmul.f32 %v2187, %v2458
      %v2524 = vmul.f32 %v2188, %v2463
      %v2525 = vmul.f32 %v2189, %v2468
      %v2526 = vmul.f32 %v2190, %v2473
      %v2527 = vmul.f32 %v2191, %v2478
      %2576 = vrot.lane.b32.xlu0 %v2480, 124
      %v2577 = vpop.permute.xlu0 %2576
      %2578 = vrot.lane.b32.xlu0 %v2481, 124
      %v2579 = vpop.permute.xlu0 %2578
      %2580 = vrot.lane.b32.xlu0 %v2482, 124
      %v2581 = vpop.permute.xlu0 %2580
      %2582 = vrot.lane.b32.xlu0 %v2483, 124
      %v2583 = vpop.permute.xlu0 %2582
      %2584 = vrot.lane.b32.xlu0 %v2484, 124
      %v2585 = vpop.permute.xlu0 %2584
      %2586 = vrot.lane.b32.xlu0 %v2485, 124
      %v2587 = vpop.permute.xlu0 %2586
      %2588 = vrot.lane.b32.xlu0 %v2486, 124
      %v2589 = vpop.permute.xlu0 %2588
      %2590 = vrot.lane.b32.xlu0 %v2487, 124
      %v2591 = vpop.permute.xlu0 %2590
      %2592 = vrot.lane.b32.xlu0 %v2488, 124
      %v2593 = vpop.permute.xlu0 %2592
      %2594 = vrot.lane.b32.xlu0 %v2489, 124
      %v2595 = vpop.permute.xlu0 %2594
      %2596 = vrot.lane.b32.xlu0 %v2490, 124
      %v2597 = vpop.permute.xlu0 %2596
      %2598 = vrot.lane.b32.xlu0 %v2491, 124
      %v2599 = vpop.permute.xlu0 %2598
      %2600 = vrot.lane.b32.xlu0 %v2492, 124
      %v2601 = vpop.permute.xlu0 %2600
      %2602 = vrot.lane.b32.xlu0 %v2493, 124
      %v2603 = vpop.permute.xlu0 %2602
      %2604 = vrot.lane.b32.xlu0 %v2494, 124
      %v2605 = vpop.permute.xlu0 %2604
      %2606 = vrot.lane.b32.xlu0 %v2495, 124
      %v2607 = vpop.permute.xlu0 %2606
      %2608 = vrot.lane.b32.xlu0 %v2496, 124
      %v2609 = vpop.permute.xlu0 %2608
      %2610 = vrot.lane.b32.xlu0 %v2497, 124
      %v2611 = vpop.permute.xlu0 %2610
      %2612 = vrot.lane.b32.xlu0 %v2498, 124
      %v2613 = vpop.permute.xlu0 %2612
      %2614 = vrot.lane.b32.xlu0 %v2499, 124
      %v2615 = vpop.permute.xlu0 %2614
      %2616 = vrot.lane.b32.xlu0 %v2500, 124
      %v2617 = vpop.permute.xlu0 %2616
      %2618 = vrot.lane.b32.xlu0 %v2501, 124
      %v2619 = vpop.permute.xlu0 %2618
      %2620 = vrot.lane.b32.xlu0 %v2502, 124
      %v2621 = vpop.permute.xlu0 %2620
      %2622 = vrot.lane.b32.xlu0 %v2503, 124
      %v2623 = vpop.permute.xlu0 %2622
      %2624 = vrot.lane.b32.xlu0 %v2504, 124
      %v2625 = vpop.permute.xlu0 %2624
      %2626 = vrot.lane.b32.xlu0 %v2505, 124
      %v2627 = vpop.permute.xlu0 %2626
      %2628 = vrot.lane.b32.xlu0 %v2506, 124
      %v2629 = vpop.permute.xlu0 %2628
      %2630 = vrot.lane.b32.xlu0 %v2507, 124
      %v2631 = vpop.permute.xlu0 %2630
      %2632 = vrot.lane.b32.xlu0 %v2508, 124
      %v2633 = vpop.permute.xlu0 %2632
      %2634 = vrot.lane.b32.xlu0 %v2509, 124
      %v2635 = vpop.permute.xlu0 %2634
      %2636 = vrot.lane.b32.xlu0 %v2510, 124
      %v2637 = vpop.permute.xlu0 %2636
      %2638 = vrot.lane.b32.xlu0 %v2511, 124
      %v2639 = vpop.permute.xlu0 %2638
      %2640 = vrot.lane.b32.xlu0 %v2512, 124
      %v2641 = vpop.permute.xlu0 %2640
      %2642 = vrot.lane.b32.xlu0 %v2513, 124
      %v2643 = vpop.permute.xlu0 %2642
      %2644 = vrot.lane.b32.xlu0 %v2514, 124
      %v2645 = vpop.permute.xlu0 %2644
      %2646 = vrot.lane.b32.xlu0 %v2515, 124
      %v2647 = vpop.permute.xlu0 %2646
      %2648 = vrot.lane.b32.xlu0 %v2516, 124
      %v2649 = vpop.permute.xlu0 %2648
      %2650 = vrot.lane.b32.xlu0 %v2517, 124
      %v2651 = vpop.permute.xlu0 %2650
      %2652 = vrot.lane.b32.xlu0 %v2518, 124
      %v2653 = vpop.permute.xlu0 %2652
      %2654 = vrot.lane.b32.xlu0 %v2519, 124
      %v2655 = vpop.permute.xlu0 %2654
      %2656 = vrot.lane.b32.xlu0 %v2520, 124
      %v2657 = vpop.permute.xlu0 %2656
      %2658 = vrot.lane.b32.xlu0 %v2521, 124
      %v2659 = vpop.permute.xlu0 %2658
      %2660 = vrot.lane.b32.xlu0 %v2522, 124
      %v2661 = vpop.permute.xlu0 %2660
      %2662 = vrot.lane.b32.xlu0 %v2523, 124
      %v2663 = vpop.permute.xlu0 %2662
      %2664 = vrot.lane.b32.xlu0 %v2524, 124
      %v2665 = vpop.permute.xlu0 %2664
      %2666 = vrot.lane.b32.xlu0 %v2525, 124
      %v2667 = vpop.permute.xlu0 %2666
      %2668 = vrot.lane.b32.xlu0 %v2526, 124
      %v2669 = vpop.permute.xlu0 %2668
      %2670 = vrot.lane.b32.xlu0 %v2527, 124
      %v2671 = vpop.permute.xlu0 %2670
      %2720 = vst.msk [vmem:[#allocation4] sm:$0xff] %vm255, %v2577
      %2721 = vst.msk [vmem:[#allocation4 + $0x8] sm:$0xff] %vm255, %v2579
      %2722 = vst.msk [vmem:[#allocation4 + $0x10] sm:$0xff] %vm255, %v2581
      %2723 = vst.msk [vmem:[#allocation4 + $0x18] sm:$0xff] %vm255, %v2583
      %2724 = vst.msk [vmem:[#allocation4 + $0x20] sm:$0xff] %vm255, %v2585
      %2725 = vst.msk [vmem:[#allocation4 + $0x28] sm:$0xff] %vm255, %v2587
      %2726 = vst.msk [vmem:[#allocation4 + $0x30] sm:$0xff] %vm255, %v2589
      %2727 = vst.msk [vmem:[#allocation4 + $0x38] sm:$0xff] %vm255, %v2591
      %2728 = vst.msk [vmem:[#allocation4 + $0x40] sm:$0xff] %vm255, %v2593
      %2729 = vst.msk [vmem:[#allocation4 + $0x48] sm:$0xff] %vm255, %v2595
      %2730 = vst.msk [vmem:[#allocation4 + $0x50] sm:$0xff] %vm255, %v2597
      %2731 = vst.msk [vmem:[#allocation4 + $0x58] sm:$0xff] %vm255, %v2599
      %2732 = vst.msk [vmem:[#allocation4 + $0x60] sm:$0xff] %vm255, %v2601
      %2733 = vst.msk [vmem:[#allocation4 + $0x68] sm:$0xff] %vm255, %v2603
      %2734 = vst.msk [vmem:[#allocation4 + $0x70] sm:$0xff] %vm255, %v2605
      %2735 = vst.msk [vmem:[#allocation4 + $0x78] sm:$0xff] %vm255, %v2607
      %2736 = vst.msk [vmem:[#allocation4 + $0x80] sm:$0xff] %vm255, %v2609
      %2737 = vst.msk [vmem:[#allocation4 + $0x88] sm:$0xff] %vm255, %v2611
      %2738 = vst.msk [vmem:[#allocation4 + $0x90] sm:$0xff] %vm255, %v2613
      %2739 = vst.msk [vmem:[#allocation4 + $0x98] sm:$0xff] %vm255, %v2615
      %2740 = vst.msk [vmem:[#allocation4 + $0xa0] sm:$0xff] %vm255, %v2617
      %2741 = vst.msk [vmem:[#allocation4 + $0xa8] sm:$0xff] %vm255, %v2619
      %2742 = vst.msk [vmem:[#allocation4 + $0xb0] sm:$0xff] %vm255, %v2621
      %2743 = vst.msk [vmem:[#allocation4 + $0xb8] sm:$0xff] %vm255, %v2623
      %2744 = vst.msk [vmem:[#allocation4 + $0xc0] sm:$0xff] %vm255, %v2625
      %2745 = vst.msk [vmem:[#allocation4 + $0xc8] sm:$0xff] %vm255, %v2627
      %2746 = vst.msk [vmem:[#allocation4 + $0xd0] sm:$0xff] %vm255, %v2629
      %2747 = vst.msk [vmem:[#allocation4 + $0xd8] sm:$0xff] %vm255, %v2631
      %2748 = vst.msk [vmem:[#allocation4 + $0xe0] sm:$0xff] %vm255, %v2633
      %2749 = vst.msk [vmem:[#allocation4 + $0xe8] sm:$0xff] %vm255, %v2635
      %2750 = vst.msk [vmem:[#allocation4 + $0xf0] sm:$0xff] %vm255, %v2637
      %2751 = vst.msk [vmem:[#allocation4 + $0xf8] sm:$0xff] %vm255, %v2639
      %2752 = vst.msk [vmem:[#allocation4 + $0x100] sm:$0xff] %vm255, %v2641
      %2753 = vst.msk [vmem:[#allocation4 + $0x108] sm:$0xff] %vm255, %v2643
      %2754 = vst.msk [vmem:[#allocation4 + $0x110] sm:$0xff] %vm255, %v2645
      %2755 = vst.msk [vmem:[#allocation4 + $0x118] sm:$0xff] %vm255, %v2647
      %2756 = vst.msk [vmem:[#allocation4 + $0x120] sm:$0xff] %vm255, %v2649
      %2757 = vst.msk [vmem:[#allocation4 + $0x128] sm:$0xff] %vm255, %v2651
      %2758 = vst.msk [vmem:[#allocation4 + $0x130] sm:$0xff] %vm255, %v2653
      %2759 = vst.msk [vmem:[#allocation4 + $0x138] sm:$0xff] %vm255, %v2655
      %2760 = vst.msk [vmem:[#allocation4 + $0x140] sm:$0xff] %vm255, %v2657
      %2761 = vst.msk [vmem:[#allocation4 + $0x148] sm:$0xff] %vm255, %v2659
      %2762 = vst.msk [vmem:[#allocation4 + $0x150] sm:$0xff] %vm255, %v2661
      %2763 = vst.msk [vmem:[#allocation4 + $0x158] sm:$0xff] %vm255, %v2663
      %2764 = vst.msk [vmem:[#allocation4 + $0x160] sm:$0xff] %vm255, %v2665
      %2765 = vst.msk [vmem:[#allocation4 + $0x168] sm:$0xff] %vm255, %v2667
      %2766 = vst.msk [vmem:[#allocation4 + $0x170] sm:$0xff] %vm255, %v2669
      %2767 = vst.msk [vmem:[#allocation4 + $0x178] sm:$0xff] %vm255, %v2671
      %2768 = vst.msk [vmem:[#allocation2] sm:$0xff] %vm255, 0.0
      %2769 = vst.msk [vmem:[#allocation2 + $0x8] sm:$0xff] %vm255, 0.0
      %2770 = vst.msk [vmem:[#allocation2 + $0x10] sm:$0xff] %vm255, 0.0
      %v2771 = vld [vmem:[#allocation4] sm:$0xff]
      %v2772 = vld [vmem:[#allocation4 + $0x8] sm:$0xff]
      %v2773 = vld [vmem:[#allocation4 + $0x10] sm:$0xff]
      %v2774 = vld [vmem:[#allocation4 + $0x18] sm:$0xff]
      %v2775 = vld [vmem:[#allocation4 + $0x20] sm:$0xff]
      %v2776 = vld [vmem:[#allocation4 + $0x28] sm:$0xff]
      %v2777 = vld [vmem:[#allocation4 + $0x30] sm:$0xff]
      %v2778 = vld [vmem:[#allocation4 + $0x38] sm:$0xff]
      %v2779 = vld [vmem:[#allocation4 + $0x40] sm:$0xff]
      %v2780 = vld [vmem:[#allocation4 + $0x48] sm:$0xff]
      %v2781 = vld [vmem:[#allocation4 + $0x50] sm:$0xff]
      %v2782 = vld [vmem:[#allocation4 + $0x58] sm:$0xff]
      %v2783 = vld [vmem:[#allocation4 + $0x60] sm:$0xff]
      %v2784 = vld [vmem:[#allocation4 + $0x68] sm:$0xff]
      %v2785 = vld [vmem:[#allocation4 + $0x70] sm:$0xff]
      %v2786 = vld [vmem:[#allocation4 + $0x78] sm:$0xff]
      %v2787 = vld [vmem:[#allocation4 + $0x80] sm:$0xff]
      %v2788 = vld [vmem:[#allocation4 + $0x88] sm:$0xff]
      %v2789 = vld [vmem:[#allocation4 + $0x90] sm:$0xff]
      %v2790 = vld [vmem:[#allocation4 + $0x98] sm:$0xff]
      %v2791 = vld [vmem:[#allocation4 + $0xa0] sm:$0xff]
      %v2792 = vld [vmem:[#allocation4 + $0xa8] sm:$0xff]
      %v2793 = vld [vmem:[#allocation4 + $0xb0] sm:$0xff]
      %v2794 = vld [vmem:[#allocation4 + $0xb8] sm:$0xff]
      %v2795 = vld [vmem:[#allocation4 + $0xc0] sm:$0xff]
      %v2796 = vld [vmem:[#allocation4 + $0xc8] sm:$0xff]
      %v2797 = vld [vmem:[#allocation4 + $0xd0] sm:$0xff]
      %v2798 = vld [vmem:[#allocation4 + $0xd8] sm:$0xff]
      %v2799 = vld [vmem:[#allocation4 + $0xe0] sm:$0xff]
      %v2800 = vld [vmem:[#allocation4 + $0xe8] sm:$0xff]
      %v2801 = vld [vmem:[#allocation4 + $0xf0] sm:$0xff]
      %v2802 = vld [vmem:[#allocation4 + $0xf8] sm:$0xff]
      %v2803 = vld [vmem:[#allocation4 + $0x100] sm:$0xff]
      %v2804 = vld [vmem:[#allocation4 + $0x108] sm:$0xff]
      %v2805 = vld [vmem:[#allocation4 + $0x110] sm:$0xff]
      %v2806 = vld [vmem:[#allocation4 + $0x118] sm:$0xff]
      %v2807 = vld [vmem:[#allocation4 + $0x120] sm:$0xff]
      %v2808 = vld [vmem:[#allocation4 + $0x128] sm:$0xff]
      %v2809 = vld [vmem:[#allocation4 + $0x130] sm:$0xff]
      %v2810 = vld [vmem:[#allocation4 + $0x138] sm:$0xff]
      %v2811 = vld [vmem:[#allocation4 + $0x140] sm:$0xff]
      %v2812 = vld [vmem:[#allocation4 + $0x148] sm:$0xff]
      %v2813 = vld [vmem:[#allocation4 + $0x150] sm:$0xff]
      %v2814 = vld [vmem:[#allocation4 + $0x158] sm:$0xff]
      %v2815 = vld [vmem:[#allocation4 + $0x160] sm:$0xff]
      %2816 = vst.msk [vmem:[#allocation2 + $0x18] sm:$0xff] %vm255, %v2771
      %2817 = vst.msk [vmem:[#allocation2 + $0x20] sm:$0xff] %vm255, %v2772
      %2818 = vst.msk [vmem:[#allocation2 + $0x28] sm:$0xff] %vm255, %v2773
      %2819 = vst.msk [vmem:[#allocation2 + $0x30] sm:$0xff] %vm255, %v2774
      %2820 = vst.msk [vmem:[#allocation2 + $0x38] sm:$0xff] %vm255, %v2775
      %2821 = vst.msk [vmem:[#allocation2 + $0x40] sm:$0xff] %vm255, %v2776
      %2822 = vst.msk [vmem:[#allocation2 + $0x48] sm:$0xff] %vm255, %v2777
      %2823 = vst.msk [vmem:[#allocation2 + $0x50] sm:$0xff] %vm255, %v2778
      %2824 = vst.msk [vmem:[#allocation2 + $0x58] sm:$0xff] %vm255, %v2779
      %2825 = vst.msk [vmem:[#allocation2 + $0x60] sm:$0xff] %vm255, %v2780
      %2826 = vst.msk [vmem:[#allocation2 + $0x68] sm:$0xff] %vm255, %v2781
      %2827 = vst.msk [vmem:[#allocation2 + $0x70] sm:$0xff] %vm255, %v2782
      %2828 = vst.msk [vmem:[#allocation2 + $0x78] sm:$0xff] %vm255, %v2783
      %2829 = vst.msk [vmem:[#allocation2 + $0x80] sm:$0xff] %vm255, %v2784
      %2830 = vst.msk [vmem:[#allocation2 + $0x88] sm:$0xff] %vm255, %v2785
      %2831 = vst.msk [vmem:[#allocation2 + $0x90] sm:$0xff] %vm255, %v2786
      %2832 = vst.msk [vmem:[#allocation2 + $0x98] sm:$0xff] %vm255, %v2787
      %2833 = vst.msk [vmem:[#allocation2 + $0xa0] sm:$0xff] %vm255, %v2788
      %2834 = vst.msk [vmem:[#allocation2 + $0xa8] sm:$0xff] %vm255, %v2789
      %2835 = vst.msk [vmem:[#allocation2 + $0xb0] sm:$0xff] %vm255, %v2790
      %2836 = vst.msk [vmem:[#allocation2 + $0xb8] sm:$0xff] %vm255, %v2791
      %2837 = vst.msk [vmem:[#allocation2 + $0xc0] sm:$0xff] %vm255, %v2792
      %2838 = vst.msk [vmem:[#allocation2 + $0xc8] sm:$0xff] %vm255, %v2793
      %2839 = vst.msk [vmem:[#allocation2 + $0xd0] sm:$0xff] %vm255, %v2794
      %2840 = vst.msk [vmem:[#allocation2 + $0xd8] sm:$0xff] %vm255, %v2795
      %2841 = vst.msk [vmem:[#allocation2 + $0xe0] sm:$0xff] %vm255, %v2796
      %2842 = vst.msk [vmem:[#allocation2 + $0xe8] sm:$0xff] %vm255, %v2797
      %2843 = vst.msk [vmem:[#allocation2 + $0xf0] sm:$0xff] %vm255, %v2798
      %2844 = vst.msk [vmem:[#allocation2 + $0xf8] sm:$0xff] %vm255, %v2799
      %2845 = vst.msk [vmem:[#allocation2 + $0x100] sm:$0xff] %vm255, %v2800
      %2846 = vst.msk [vmem:[#allocation2 + $0x108] sm:$0xff] %vm255, %v2801
      %2847 = vst.msk [vmem:[#allocation2 + $0x110] sm:$0xff] %vm255, %v2802
      %2848 = vst.msk [vmem:[#allocation2 + $0x118] sm:$0xff] %vm255, %v2803
      %2849 = vst.msk [vmem:[#allocation2 + $0x120] sm:$0xff] %vm255, %v2804
      %2850 = vst.msk [vmem:[#allocation2 + $0x128] sm:$0xff] %vm255, %v2805
      %2851 = vst.msk [vmem:[#allocation2 + $0x130] sm:$0xff] %vm255, %v2806
      %2852 = vst.msk [vmem:[#allocation2 + $0x138] sm:$0xff] %vm255, %v2807
      %2853 = vst.msk [vmem:[#allocation2 + $0x140] sm:$0xff] %vm255, %v2808
      %2854 = vst.msk [vmem:[#allocation2 + $0x148] sm:$0xff] %vm255, %v2809
      %2855 = vst.msk [vmem:[#allocation2 + $0x150] sm:$0xff] %vm255, %v2810
      %2856 = vst.msk [vmem:[#allocation2 + $0x158] sm:$0xff] %vm255, %v2811
      %2857 = vst.msk [vmem:[#allocation2 + $0x160] sm:$0xff] %vm255, %v2812
      %2858 = vst.msk [vmem:[#allocation2 + $0x168] sm:$0xff] %vm255, %v2813
      %2859 = vst.msk [vmem:[#allocation2 + $0x170] sm:$0xff] %vm255, %v2814
      %2860 = vst.msk [vmem:[#allocation2 + $0x178] sm:$0xff] %vm255, %v2815
      %v2861 = vld [vmem:[#allocation4] sm:$0xff]
      %v2862 = vld [vmem:[#allocation4 + $0x8] sm:$0xff]
      %v2863 = vld [vmem:[#allocation4 + $0x10] sm:$0xff]
      %v2864 = vld [vmem:[#allocation4 + $0x18] sm:$0xff]
      %v2865 = vld [vmem:[#allocation4 + $0x20] sm:$0xff]
      %v2866 = vld [vmem:[#allocation4 + $0x28] sm:$0xff]
      %v2867 = vld [vmem:[#allocation4 + $0x30] sm:$0xff]
      %v2868 = vld [vmem:[#allocation4 + $0x38] sm:$0xff]
      %v2869 = vld [vmem:[#allocation4 + $0x40] sm:$0xff]
      %v2870 = vld [vmem:[#allocation4 + $0x48] sm:$0xff]
      %v2871 = vld [vmem:[#allocation4 + $0x50] sm:$0xff]
      %v2872 = vld [vmem:[#allocation4 + $0x58] sm:$0xff]
      %v2873 = vld [vmem:[#allocation4 + $0x60] sm:$0xff]
      %v2874 = vld [vmem:[#allocation4 + $0x68] sm:$0xff]
      %v2875 = vld [vmem:[#allocation4 + $0x70] sm:$0xff]
      %v2876 = vld [vmem:[#allocation4 + $0x78] sm:$0xff]
      %v2877 = vld [vmem:[#allocation4 + $0x80] sm:$0xff]
      %v2878 = vld [vmem:[#allocation4 + $0x88] sm:$0xff]
      %v2879 = vld [vmem:[#allocation4 + $0x90] sm:$0xff]
      %v2880 = vld [vmem:[#allocation4 + $0x98] sm:$0xff]
      %v2881 = vld [vmem:[#allocation4 + $0xa0] sm:$0xff]
      %v2882 = vld [vmem:[#allocation4 + $0xa8] sm:$0xff]
      %v2883 = vld [vmem:[#allocation4 + $0xb0] sm:$0xff]
      %v2884 = vld [vmem:[#allocation4 + $0xb8] sm:$0xff]
      %v2885 = vld [vmem:[#allocation4 + $0xc0] sm:$0xff]
      %v2886 = vld [vmem:[#allocation4 + $0xc8] sm:$0xff]
      %v2887 = vld [vmem:[#allocation4 + $0xd0] sm:$0xff]
      %v2888 = vld [vmem:[#allocation4 + $0xd8] sm:$0xff]
      %v2889 = vld [vmem:[#allocation4 + $0xe0] sm:$0xff]
      %v2890 = vld [vmem:[#allocation4 + $0xe8] sm:$0xff]
      %v2891 = vld [vmem:[#allocation4 + $0xf0] sm:$0xff]
      %v2892 = vld [vmem:[#allocation4 + $0xf8] sm:$0xff]
      %v2893 = vld [vmem:[#allocation4 + $0x100] sm:$0xff]
      %v2894 = vld [vmem:[#allocation4 + $0x108] sm:$0xff]
      %v2895 = vld [vmem:[#allocation4 + $0x110] sm:$0xff]
      %v2896 = vld [vmem:[#allocation4 + $0x118] sm:$0xff]
      %v2897 = vld [vmem:[#allocation4 + $0x120] sm:$0xff]
      %v2898 = vld [vmem:[#allocation4 + $0x128] sm:$0xff]
      %v2899 = vld [vmem:[#allocation4 + $0x130] sm:$0xff]
      %v2900 = vld [vmem:[#allocation4 + $0x138] sm:$0xff]
      %v2901 = vld [vmem:[#allocation4 + $0x140] sm:$0xff]
      %v2902 = vld [vmem:[#allocation4 + $0x148] sm:$0xff]
      %v2903 = vld [vmem:[#allocation4 + $0x150] sm:$0xff]
      %v2904 = vld [vmem:[#allocation4 + $0x158] sm:$0xff]
      %v2905 = vld [vmem:[#allocation4 + $0x160] sm:$0xff]
      %v2906 = vld [vmem:[#allocation4 + $0x168] sm:$0xff]
      %v2907 = vld [vmem:[#allocation4 + $0x170] sm:$0xff]
      %v2908 = vld [vmem:[#allocation4 + $0x178] sm:$0xff]
      %2957 = vrot.lane.b32.xlu0 %v2861, 4
      %v2958 = vpop.permute.xlu0 %2957
      %2959 = vrot.lane.b32.xlu0 %v2862, 4
      %v2960 = vpop.permute.xlu0 %2959
      %2961 = vrot.lane.b32.xlu0 %v2863, 4
      %v2962 = vpop.permute.xlu0 %2961
      %2963 = vrot.lane.b32.xlu0 %v2864, 4
      %v2964 = vpop.permute.xlu0 %2963
      %2965 = vrot.lane.b32.xlu0 %v2865, 4
      %v2966 = vpop.permute.xlu0 %2965
      %2967 = vrot.lane.b32.xlu0 %v2866, 4
      %v2968 = vpop.permute.xlu0 %2967
      %2969 = vrot.lane.b32.xlu0 %v2867, 4
      %v2970 = vpop.permute.xlu0 %2969
      %2971 = vrot.lane.b32.xlu0 %v2868, 4
      %v2972 = vpop.permute.xlu0 %2971
      %2973 = vrot.lane.b32.xlu0 %v2869, 4
      %v2974 = vpop.permute.xlu0 %2973
      %2975 = vrot.lane.b32.xlu0 %v2870, 4
      %v2976 = vpop.permute.xlu0 %2975
      %2977 = vrot.lane.b32.xlu0 %v2871, 4
      %v2978 = vpop.permute.xlu0 %2977
      %2979 = vrot.lane.b32.xlu0 %v2872, 4
      %v2980 = vpop.permute.xlu0 %2979
      %2981 = vrot.lane.b32.xlu0 %v2873, 4
      %v2982 = vpop.permute.xlu0 %2981
      %2983 = vrot.lane.b32.xlu0 %v2874, 4
      %v2984 = vpop.permute.xlu0 %2983
      %2985 = vrot.lane.b32.xlu0 %v2875, 4
      %v2986 = vpop.permute.xlu0 %2985
      %2987 = vrot.lane.b32.xlu0 %v2876, 4
      %v2988 = vpop.permute.xlu0 %2987
      %2989 = vrot.lane.b32.xlu0 %v2877, 4
      %v2990 = vpop.permute.xlu0 %2989
      %2991 = vrot.lane.b32.xlu0 %v2878, 4
      %v2992 = vpop.permute.xlu0 %2991
      %2993 = vrot.lane.b32.xlu0 %v2879, 4
      %v2994 = vpop.permute.xlu0 %2993
      %2995 = vrot.lane.b32.xlu0 %v2880, 4
      %v2996 = vpop.permute.xlu0 %2995
      %2997 = vrot.lane.b32.xlu0 %v2881, 4
      %v2998 = vpop.permute.xlu0 %2997
      %2999 = vrot.lane.b32.xlu0 %v2882, 4
      %v3000 = vpop.permute.xlu0 %2999
      %3001 = vrot.lane.b32.xlu0 %v2883, 4
      %v3002 = vpop.permute.xlu0 %3001
      %3003 = vrot.lane.b32.xlu0 %v2884, 4
      %v3004 = vpop.permute.xlu0 %3003
      %3005 = vrot.lane.b32.xlu0 %v2885, 4
      %v3006 = vpop.permute.xlu0 %3005
      %3007 = vrot.lane.b32.xlu0 %v2886, 4
      %v3008 = vpop.permute.xlu0 %3007
      %3009 = vrot.lane.b32.xlu0 %v2887, 4
      %v3010 = vpop.permute.xlu0 %3009
      %3011 = vrot.lane.b32.xlu0 %v2888, 4
      %v3012 = vpop.permute.xlu0 %3011
      %3013 = vrot.lane.b32.xlu0 %v2889, 4
      %v3014 = vpop.permute.xlu0 %3013
      %3015 = vrot.lane.b32.xlu0 %v2890, 4
      %v3016 = vpop.permute.xlu0 %3015
      %3017 = vrot.lane.b32.xlu0 %v2891, 4
      %v3018 = vpop.permute.xlu0 %3017
      %3019 = vrot.lane.b32.xlu0 %v2892, 4
      %v3020 = vpop.permute.xlu0 %3019
      %3021 = vrot.lane.b32.xlu0 %v2893, 4
      %v3022 = vpop.permute.xlu0 %3021
      %3023 = vrot.lane.b32.xlu0 %v2894, 4
      %v3024 = vpop.permute.xlu0 %3023
      %3025 = vrot.lane.b32.xlu0 %v2895, 4
      %v3026 = vpop.permute.xlu0 %3025
      %3027 = vrot.lane.b32.xlu0 %v2896, 4
      %v3028 = vpop.permute.xlu0 %3027
      %3029 = vrot.lane.b32.xlu0 %v2897, 4
      %v3030 = vpop.permute.xlu0 %3029
      %3031 = vrot.lane.b32.xlu0 %v2898, 4
      %v3032 = vpop.permute.xlu0 %3031
      %3033 = vrot.lane.b32.xlu0 %v2899, 4
      %v3034 = vpop.permute.xlu0 %3033
      %3035 = vrot.lane.b32.xlu0 %v2900, 4
      %v3036 = vpop.permute.xlu0 %3035
      %3037 = vrot.lane.b32.xlu0 %v2901, 4
      %v3038 = vpop.permute.xlu0 %3037
      %3039 = vrot.lane.b32.xlu0 %v2902, 4
      %v3040 = vpop.permute.xlu0 %3039
      %3041 = vrot.lane.b32.xlu0 %v2903, 4
      %v3042 = vpop.permute.xlu0 %3041
      %3043 = vrot.lane.b32.xlu0 %v2904, 4
      %v3044 = vpop.permute.xlu0 %3043
      %3045 = vrot.lane.b32.xlu0 %v2905, 4
      %v3046 = vpop.permute.xlu0 %3045
      %3047 = vrot.lane.b32.xlu0 %v2906, 4
      %v3048 = vpop.permute.xlu0 %3047
      %3049 = vrot.lane.b32.xlu0 %v2907, 4
      %v3050 = vpop.permute.xlu0 %3049
      %3051 = vrot.lane.b32.xlu0 %v2908, 4
      %v3052 = vpop.permute.xlu0 %3051
      %3101 = vst.msk [vmem:[#allocation2] sm:$0xff] %vm589, %v2958
      %3102 = vst.msk [vmem:[#allocation2 + $0x8] sm:$0xff] %vm589, %v2960
      %3103 = vst.msk [vmem:[#allocation2 + $0x10] sm:$0xff] %vm589, %v2962
      %3104 = vst.msk [vmem:[#allocation2 + $0x18] sm:$0xff] %vm589, %v2964
      %3105 = vst.msk [vmem:[#allocation2 + $0x20] sm:$0xff] %vm589, %v2966
      %3106 = vst.msk [vmem:[#allocation2 + $0x28] sm:$0xff] %vm589, %v2968
      %3107 = vst.msk [vmem:[#allocation2 + $0x30] sm:$0xff] %vm589, %v2970
      %3108 = vst.msk [vmem:[#allocation2 + $0x38] sm:$0xff] %vm589, %v2972
      %3109 = vst.msk [vmem:[#allocation2 + $0x40] sm:$0xff] %vm589, %v2974
      %3110 = vst.msk [vmem:[#allocation2 + $0x48] sm:$0xff] %vm589, %v2976
      %3111 = vst.msk [vmem:[#allocation2 + $0x50] sm:$0xff] %vm589, %v2978
      %3112 = vst.msk [vmem:[#allocation2 + $0x58] sm:$0xff] %vm589, %v2980
      %3113 = vst.msk [vmem:[#allocation2 + $0x60] sm:$0xff] %vm589, %v2982
      %3114 = vst.msk [vmem:[#allocation2 + $0x68] sm:$0xff] %vm589, %v2984
      %3115 = vst.msk [vmem:[#allocation2 + $0x70] sm:$0xff] %vm589, %v2986
      %3116 = vst.msk [vmem:[#allocation2 + $0x78] sm:$0xff] %vm589, %v2988
      %3117 = vst.msk [vmem:[#allocation2 + $0x80] sm:$0xff] %vm589, %v2990
      %3118 = vst.msk [vmem:[#allocation2 + $0x88] sm:$0xff] %vm589, %v2992
      %3119 = vst.msk [vmem:[#allocation2 + $0x90] sm:$0xff] %vm589, %v2994
      %3120 = vst.msk [vmem:[#allocation2 + $0x98] sm:$0xff] %vm589, %v2996
      %3121 = vst.msk [vmem:[#allocation2 + $0xa0] sm:$0xff] %vm589, %v2998
      %3122 = vst.msk [vmem:[#allocation2 + $0xa8] sm:$0xff] %vm589, %v3000
      %3123 = vst.msk [vmem:[#allocation2 + $0xb0] sm:$0xff] %vm589, %v3002
      %3124 = vst.msk [vmem:[#allocation2 + $0xb8] sm:$0xff] %vm589, %v3004
      %3125 = vst.msk [vmem:[#allocation2 + $0xc0] sm:$0xff] %vm589, %v3006
      %3126 = vst.msk [vmem:[#allocation2 + $0xc8] sm:$0xff] %vm589, %v3008
      %3127 = vst.msk [vmem:[#allocation2 + $0xd0] sm:$0xff] %vm589, %v3010
      %3128 = vst.msk [vmem:[#allocation2 + $0xd8] sm:$0xff] %vm589, %v3012
      %3129 = vst.msk [vmem:[#allocation2 + $0xe0] sm:$0xff] %vm589, %v3014
      %3130 = vst.msk [vmem:[#allocation2 + $0xe8] sm:$0xff] %vm589, %v3016
      %3131 = vst.msk [vmem:[#allocation2 + $0xf0] sm:$0xff] %vm589, %v3018
      %3132 = vst.msk [vmem:[#allocation2 + $0xf8] sm:$0xff] %vm589, %v3020
      %3133 = vst.msk [vmem:[#allocation2 + $0x100] sm:$0xff] %vm589, %v3022
      %3134 = vst.msk [vmem:[#allocation2 + $0x108] sm:$0xff] %vm589, %v3024
      %3135 = vst.msk [vmem:[#allocation2 + $0x110] sm:$0xff] %vm589, %v3026
      %3136 = vst.msk [vmem:[#allocation2 + $0x118] sm:$0xff] %vm589, %v3028
      %3137 = vst.msk [vmem:[#allocation2 + $0x120] sm:$0xff] %vm589, %v3030
      %3138 = vst.msk [vmem:[#allocation2 + $0x128] sm:$0xff] %vm589, %v3032
      %3139 = vst.msk [vmem:[#allocation2 + $0x130] sm:$0xff] %vm589, %v3034
      %3140 = vst.msk [vmem:[#allocation2 + $0x138] sm:$0xff] %vm589, %v3036
      %3141 = vst.msk [vmem:[#allocation2 + $0x140] sm:$0xff] %vm589, %v3038
      %3142 = vst.msk [vmem:[#allocation2 + $0x148] sm:$0xff] %vm589, %v3040
      %3143 = vst.msk [vmem:[#allocation2 + $0x150] sm:$0xff] %vm589, %v3042
      %3144 = vst.msk [vmem:[#allocation2 + $0x158] sm:$0xff] %vm589, %v3044
      %3145 = vst.msk [vmem:[#allocation2 + $0x160] sm:$0xff] %vm589, %v3046
      %3146 = vst.msk [vmem:[#allocation2 + $0x168] sm:$0xff] %vm589, %v3048
      %3147 = vst.msk [vmem:[#allocation2 + $0x170] sm:$0xff] %vm589, %v3050
      %3148 = vst.msk [vmem:[#allocation2 + $0x178] sm:$0xff] %vm589, %v3052
      %v3149 = vld [vmem:[#allocation4 + $0x18] sm:$0xff]
      %v3150 = vld [vmem:[#allocation4 + $0x20] sm:$0xff]
      %v3151 = vld [vmem:[#allocation4 + $0x28] sm:$0xff]
      %v3152 = vld [vmem:[#allocation4 + $0x30] sm:$0xff]
      %v3153 = vld [vmem:[#allocation4 + $0x38] sm:$0xff]
      %v3154 = vld [vmem:[#allocation4 + $0x40] sm:$0xff]
      %v3155 = vld [vmem:[#allocation4 + $0x48] sm:$0xff]
      %v3156 = vld [vmem:[#allocation4 + $0x50] sm:$0xff]
      %v3157 = vld [vmem:[#allocation4 + $0x58] sm:$0xff]
      %v3158 = vld [vmem:[#allocation4 + $0x60] sm:$0xff]
      %v3159 = vld [vmem:[#allocation4 + $0x68] sm:$0xff]
      %v3160 = vld [vmem:[#allocation4 + $0x70] sm:$0xff]
      %v3161 = vld [vmem:[#allocation4 + $0x78] sm:$0xff]
      %v3162 = vld [vmem:[#allocation4 + $0x80] sm:$0xff]
      %v3163 = vld [vmem:[#allocation4 + $0x88] sm:$0xff]
      %v3164 = vld [vmem:[#allocation4 + $0x90] sm:$0xff]
      %v3165 = vld [vmem:[#allocation4 + $0x98] sm:$0xff]
      %v3166 = vld [vmem:[#allocation4 + $0xa0] sm:$0xff]
      %v3167 = vld [vmem:[#allocation4 + $0xa8] sm:$0xff]
      %v3168 = vld [vmem:[#allocation4 + $0xb0] sm:$0xff]
      %v3169 = vld [vmem:[#allocation4 + $0xb8] sm:$0xff]
      %v3170 = vld [vmem:[#allocation4 + $0xc0] sm:$0xff]
      %v3171 = vld [vmem:[#allocation4 + $0xc8] sm:$0xff]
      %v3172 = vld [vmem:[#allocation4 + $0xd0] sm:$0xff]
      %v3173 = vld [vmem:[#allocation4 + $0xd8] sm:$0xff]
      %v3174 = vld [vmem:[#allocation4 + $0xe0] sm:$0xff]
      %v3175 = vld [vmem:[#allocation4 + $0xe8] sm:$0xff]
      %v3176 = vld [vmem:[#allocation4 + $0xf0] sm:$0xff]
      %v3177 = vld [vmem:[#allocation4 + $0xf8] sm:$0xff]
      %v3178 = vld [vmem:[#allocation4 + $0x100] sm:$0xff]
      %v3179 = vld [vmem:[#allocation4 + $0x108] sm:$0xff]
      %v3180 = vld [vmem:[#allocation4 + $0x110] sm:$0xff]
      %v3181 = vld [vmem:[#allocation4 + $0x118] sm:$0xff]
      %v3182 = vld [vmem:[#allocation4 + $0x120] sm:$0xff]
      %v3183 = vld [vmem:[#allocation4 + $0x128] sm:$0xff]
      %v3184 = vld [vmem:[#allocation4 + $0x130] sm:$0xff]
      %v3185 = vld [vmem:[#allocation4 + $0x138] sm:$0xff]
      %v3186 = vld [vmem:[#allocation4 + $0x140] sm:$0xff]
      %v3187 = vld [vmem:[#allocation4 + $0x148] sm:$0xff]
      %v3188 = vld [vmem:[#allocation4 + $0x150] sm:$0xff]
      %v3189 = vld [vmem:[#allocation4 + $0x158] sm:$0xff]
      %v3190 = vld [vmem:[#allocation4 + $0x160] sm:$0xff]
      %v3191 = vld [vmem:[#allocation4 + $0x168] sm:$0xff]
      %v3192 = vld [vmem:[#allocation4 + $0x170] sm:$0xff]
      %v3193 = vld [vmem:[#allocation4 + $0x178] sm:$0xff]
      %3239 = vrot.lane.b32.xlu0 %v3149, 8
      %v3240 = vpop.permute.xlu0 %3239
      %3241 = vrot.lane.b32.xlu0 %v3150, 8
      %v3242 = vpop.permute.xlu0 %3241
      %3243 = vrot.lane.b32.xlu0 %v3151, 8
      %v3244 = vpop.permute.xlu0 %3243
      %3245 = vrot.lane.b32.xlu0 %v3152, 8
      %v3246 = vpop.permute.xlu0 %3245
      %3247 = vrot.lane.b32.xlu0 %v3153, 8
      %v3248 = vpop.permute.xlu0 %3247
      %3249 = vrot.lane.b32.xlu0 %v3154, 8
      %v3250 = vpop.permute.xlu0 %3249
      %3251 = vrot.lane.b32.xlu0 %v3155, 8
      %v3252 = vpop.permute.xlu0 %3251
      %3253 = vrot.lane.b32.xlu0 %v3156, 8
      %v3254 = vpop.permute.xlu0 %3253
      %3255 = vrot.lane.b32.xlu0 %v3157, 8
      %v3256 = vpop.permute.xlu0 %3255
      %3257 = vrot.lane.b32.xlu0 %v3158, 8
      %v3258 = vpop.permute.xlu0 %3257
      %3259 = vrot.lane.b32.xlu0 %v3159, 8
      %v3260 = vpop.permute.xlu0 %3259
      %3261 = vrot.lane.b32.xlu0 %v3160, 8
      %v3262 = vpop.permute.xlu0 %3261
      %3263 = vrot.lane.b32.xlu0 %v3161, 8
      %v3264 = vpop.permute.xlu0 %3263
      %3265 = vrot.lane.b32.xlu0 %v3162, 8
      %v3266 = vpop.permute.xlu0 %3265
      %3267 = vrot.lane.b32.xlu0 %v3163, 8
      %v3268 = vpop.permute.xlu0 %3267
      %3269 = vrot.lane.b32.xlu0 %v3164, 8
      %v3270 = vpop.permute.xlu0 %3269
      %3271 = vrot.lane.b32.xlu0 %v3165, 8
      %v3272 = vpop.permute.xlu0 %3271
      %3273 = vrot.lane.b32.xlu0 %v3166, 8
      %v3274 = vpop.permute.xlu0 %3273
      %3275 = vrot.lane.b32.xlu0 %v3167, 8
      %v3276 = vpop.permute.xlu0 %3275
      %3277 = vrot.lane.b32.xlu0 %v3168, 8
      %v3278 = vpop.permute.xlu0 %3277
      %3279 = vrot.lane.b32.xlu0 %v3169, 8
      %v3280 = vpop.permute.xlu0 %3279
      %3281 = vrot.lane.b32.xlu0 %v3170, 8
      %v3282 = vpop.permute.xlu0 %3281
      %3283 = vrot.lane.b32.xlu0 %v3171, 8
      %v3284 = vpop.permute.xlu0 %3283
      %3285 = vrot.lane.b32.xlu0 %v3172, 8
      %v3286 = vpop.permute.xlu0 %3285
      %3287 = vrot.lane.b32.xlu0 %v3173, 8
      %v3288 = vpop.permute.xlu0 %3287
      %3289 = vrot.lane.b32.xlu0 %v3174, 8
      %v3290 = vpop.permute.xlu0 %3289
      %3291 = vrot.lane.b32.xlu0 %v3175, 8
      %v3292 = vpop.permute.xlu0 %3291
      %3293 = vrot.lane.b32.xlu0 %v3176, 8
      %v3294 = vpop.permute.xlu0 %3293
      %3295 = vrot.lane.b32.xlu0 %v3177, 8
      %v3296 = vpop.permute.xlu0 %3295
      %3297 = vrot.lane.b32.xlu0 %v3178, 8
      %v3298 = vpop.permute.xlu0 %3297
      %3299 = vrot.lane.b32.xlu0 %v3179, 8
      %v3300 = vpop.permute.xlu0 %3299
      %3301 = vrot.lane.b32.xlu0 %v3180, 8
      %v3302 = vpop.permute.xlu0 %3301
      %3303 = vrot.lane.b32.xlu0 %v3181, 8
      %v3304 = vpop.permute.xlu0 %3303
      %3305 = vrot.lane.b32.xlu0 %v3182, 8
      %v3306 = vpop.permute.xlu0 %3305
      %3307 = vrot.lane.b32.xlu0 %v3183, 8
      %v3308 = vpop.permute.xlu0 %3307
      %3309 = vrot.lane.b32.xlu0 %v3184, 8
      %v3310 = vpop.permute.xlu0 %3309
      %3311 = vrot.lane.b32.xlu0 %v3185, 8
      %v3312 = vpop.permute.xlu0 %3311
      %3313 = vrot.lane.b32.xlu0 %v3186, 8
      %v3314 = vpop.permute.xlu0 %3313
      %3315 = vrot.lane.b32.xlu0 %v3187, 8
      %v3316 = vpop.permute.xlu0 %3315
      %3317 = vrot.lane.b32.xlu0 %v3188, 8
      %v3318 = vpop.permute.xlu0 %3317
      %3319 = vrot.lane.b32.xlu0 %v3189, 8
      %v3320 = vpop.permute.xlu0 %3319
      %3321 = vrot.lane.b32.xlu0 %v3190, 8
      %v3322 = vpop.permute.xlu0 %3321
      %3323 = vrot.lane.b32.xlu0 %v3191, 8
      %v3324 = vpop.permute.xlu0 %3323
      %3325 = vrot.lane.b32.xlu0 %v3192, 8
      %v3326 = vpop.permute.xlu0 %3325
      %3327 = vrot.lane.b32.xlu0 %v3193, 8
      %v3328 = vpop.permute.xlu0 %3327
      %3374 = vst.msk [vmem:[#allocation2] sm:$0xff] %vm863, %v3240
      %3375 = vst.msk [vmem:[#allocation2 + $0x8] sm:$0xff] %vm863, %v3242
      %3376 = vst.msk [vmem:[#allocation2 + $0x10] sm:$0xff] %vm863, %v3244
      %3377 = vst.msk [vmem:[#allocation2 + $0x18] sm:$0xff] %vm863, %v3246
      %3378 = vst.msk [vmem:[#allocation2 + $0x20] sm:$0xff] %vm863, %v3248
      %3379 = vst.msk [vmem:[#allocation2 + $0x28] sm:$0xff] %vm863, %v3250
      %3380 = vst.msk [vmem:[#allocation2 + $0x30] sm:$0xff] %vm863, %v3252
      %3381 = vst.msk [vmem:[#allocation2 + $0x38] sm:$0xff] %vm863, %v3254
      %3382 = vst.msk [vmem:[#allocation2 + $0x40] sm:$0xff] %vm863, %v3256
      %3383 = vst.msk [vmem:[#allocation2 + $0x48] sm:$0xff] %vm863, %v3258
      %3384 = vst.msk [vmem:[#allocation2 + $0x50] sm:$0xff] %vm863, %v3260
      %3385 = vst.msk [vmem:[#allocation2 + $0x58] sm:$0xff] %vm863, %v3262
      %3386 = vst.msk [vmem:[#allocation2 + $0x60] sm:$0xff] %vm863, %v3264
      %3387 = vst.msk [vmem:[#allocation2 + $0x68] sm:$0xff] %vm863, %v3266
      %3388 = vst.msk [vmem:[#allocation2 + $0x70] sm:$0xff] %vm863, %v3268
      %3389 = vst.msk [vmem:[#allocation2 + $0x78] sm:$0xff] %vm863, %v3270
      %3390 = vst.msk [vmem:[#allocation2 + $0x80] sm:$0xff] %vm863, %v3272
      %3391 = vst.msk [vmem:[#allocation2 + $0x88] sm:$0xff] %vm863, %v3274
      %3392 = vst.msk [vmem:[#allocation2 + $0x90] sm:$0xff] %vm863, %v3276
      %3393 = vst.msk [vmem:[#allocation2 + $0x98] sm:$0xff] %vm863, %v3278
      %3394 = vst.msk [vmem:[#allocation2 + $0xa0] sm:$0xff] %vm863, %v3280
      %3395 = vst.msk [vmem:[#allocation2 + $0xa8] sm:$0xff] %vm863, %v3282
      %3396 = vst.msk [vmem:[#allocation2 + $0xb0] sm:$0xff] %vm863, %v3284
      %3397 = vst.msk [vmem:[#allocation2 + $0xb8] sm:$0xff] %vm863, %v3286
      %3398 = vst.msk [vmem:[#allocation2 + $0xc0] sm:$0xff] %vm863, %v3288
      %3399 = vst.msk [vmem:[#allocation2 + $0xc8] sm:$0xff] %vm863, %v3290
      %3400 = vst.msk [vmem:[#allocation2 + $0xd0] sm:$0xff] %vm863, %v3292
      %3401 = vst.msk [vmem:[#allocation2 + $0xd8] sm:$0xff] %vm863, %v3294
      %3402 = vst.msk [vmem:[#allocation2 + $0xe0] sm:$0xff] %vm863, %v3296
      %3403 = vst.msk [vmem:[#allocation2 + $0xe8] sm:$0xff] %vm863, %v3298
      %3404 = vst.msk [vmem:[#allocation2 + $0xf0] sm:$0xff] %vm863, %v3300
      %3405 = vst.msk [vmem:[#allocation2 + $0xf8] sm:$0xff] %vm863, %v3302
      %3406 = vst.msk [vmem:[#allocation2 + $0x100] sm:$0xff] %vm863, %v3304
      %3407 = vst.msk [vmem:[#allocation2 + $0x108] sm:$0xff] %vm863, %v3306
      %3408 = vst.msk [vmem:[#allocation2 + $0x110] sm:$0xff] %vm863, %v3308
      %3409 = vst.msk [vmem:[#allocation2 + $0x118] sm:$0xff] %vm863, %v3310
      %3410 = vst.msk [vmem:[#allocation2 + $0x120] sm:$0xff] %vm863, %v3312
      %3411 = vst.msk [vmem:[#allocation2 + $0x128] sm:$0xff] %vm863, %v3314
      %3412 = vst.msk [vmem:[#allocation2 + $0x130] sm:$0xff] %vm863, %v3316
      %3413 = vst.msk [vmem:[#allocation2 + $0x138] sm:$0xff] %vm863, %v3318
      %3414 = vst.msk [vmem:[#allocation2 + $0x140] sm:$0xff] %vm863, %v3320
      %3415 = vst.msk [vmem:[#allocation2 + $0x148] sm:$0xff] %vm863, %v3322
      %3416 = vst.msk [vmem:[#allocation2 + $0x150] sm:$0xff] %vm863, %v3324
      %3417 = vst.msk [vmem:[#allocation2 + $0x158] sm:$0xff] %vm863, %v3326
      %3418 = vst.msk [vmem:[#allocation2 + $0x160] sm:$0xff] %vm863, %v3328
      %3419 = vst.msk [vmem:[#allocation2 + $0x168] sm:$0xff] %vm863, 0.0
      %3420 = vst.msk [vmem:[#allocation2 + $0x170] sm:$0xff] %vm863, 0.0
      %3421 = vst.msk [vmem:[#allocation2 + $0x178] sm:$0xff] %vm863, 0.0
      %v3422 = vld [vmem:[#allocation2] sm:$0xff]
      %v3423 = vld [vmem:[#allocation2 + $0x8] sm:$0xff]
      %v3424 = vld [vmem:[#allocation2 + $0x10] sm:$0xff]
      %v3425 = vld [vmem:[#allocation2 + $0x18] sm:$0xff]
      %v3426 = vld [vmem:[#allocation2 + $0x20] sm:$0xff]
      %v3427 = vld [vmem:[#allocation2 + $0x28] sm:$0xff]
      %v3428 = vld [vmem:[#allocation2 + $0x30] sm:$0xff]
      %v3429 = vld [vmem:[#allocation2 + $0x38] sm:$0xff]
      %v3430 = vld [vmem:[#allocation2 + $0x40] sm:$0xff]
      %v3431 = vld [vmem:[#allocation2 + $0x48] sm:$0xff]
      %v3432 = vld [vmem:[#allocation2 + $0x50] sm:$0xff]
      %v3433 = vld [vmem:[#allocation2 + $0x58] sm:$0xff]
      %v3434 = vld [vmem:[#allocation2 + $0x60] sm:$0xff]
      %v3435 = vld [vmem:[#allocation2 + $0x68] sm:$0xff]
      %v3436 = vld [vmem:[#allocation2 + $0x70] sm:$0xff]
      %v3437 = vld [vmem:[#allocation2 + $0x78] sm:$0xff]
      %v3438 = vld [vmem:[#allocation2 + $0x80] sm:$0xff]
      %v3439 = vld [vmem:[#allocation2 + $0x88] sm:$0xff]
      %v3440 = vld [vmem:[#allocation2 + $0x90] sm:$0xff]
      %v3441 = vld [vmem:[#allocation2 + $0x98] sm:$0xff]
      %v3442 = vld [vmem:[#allocation2 + $0xa0] sm:$0xff]
      %v3443 = vld [vmem:[#allocation2 + $0xa8] sm:$0xff]
      %v3444 = vld [vmem:[#allocation2 + $0xb0] sm:$0xff]
      %v3445 = vld [vmem:[#allocation2 + $0xb8] sm:$0xff]
      %v3446 = vld [vmem:[#allocation2 + $0xc0] sm:$0xff]
      %v3447 = vld [vmem:[#allocation2 + $0xc8] sm:$0xff]
      %v3448 = vld [vmem:[#allocation2 + $0xd0] sm:$0xff]
      %v3449 = vld [vmem:[#allocation2 + $0xd8] sm:$0xff]
      %v3450 = vld [vmem:[#allocation2 + $0xe0] sm:$0xff]
      %v3451 = vld [vmem:[#allocation2 + $0xe8] sm:$0xff]
      %v3452 = vld [vmem:[#allocation2 + $0xf0] sm:$0xff]
      %v3453 = vld [vmem:[#allocation2 + $0xf8] sm:$0xff]
      %v3454 = vld [vmem:[#allocation2 + $0x100] sm:$0xff]
      %v3455 = vld [vmem:[#allocation2 + $0x108] sm:$0xff]
      %v3456 = vld [vmem:[#allocation2 + $0x110] sm:$0xff]
      %v3457 = vld [vmem:[#allocation2 + $0x118] sm:$0xff]
      %v3458 = vld [vmem:[#allocation2 + $0x120] sm:$0xff]
      %v3459 = vld [vmem:[#allocation2 + $0x128] sm:$0xff]
      %v3460 = vld [vmem:[#allocation2 + $0x130] sm:$0xff]
      %v3461 = vld [vmem:[#allocation2 + $0x138] sm:$0xff]
      %v3462 = vld [vmem:[#allocation2 + $0x140] sm:$0xff]
      %v3463 = vld [vmem:[#allocation2 + $0x148] sm:$0xff]
      %v3464 = vld [vmem:[#allocation2 + $0x150] sm:$0xff]
      %v3465 = vld [vmem:[#allocation2 + $0x158] sm:$0xff]
      %v3466 = vld [vmem:[#allocation2 + $0x160] sm:$0xff]
      %v3467 = vld [vmem:[#allocation2 + $0x168] sm:$0xff]
      %v3468 = vld [vmem:[#allocation2 + $0x170] sm:$0xff]
      %v3469 = vld [vmem:[#allocation2 + $0x178] sm:$0xff]
      %v3470 = vld [vmem:[%s3] sm:$0xff]
      %v3471 = vld [vmem:[%s3 + $0x8] sm:$0xf]
      %v3473 = vsel %vm252, %v3422, 0
      %v3476 = vsel %vm252, %v3423, 0
      %v3479 = vsel %vm252, %v3424, 0
      %v3482 = vsel %vm252, %v3425, 0
      %v3485 = vsel %vm252, %v3426, 0
      %v3488 = vsel %vm252, %v3427, 0
      %v3491 = vsel %vm252, %v3428, 0
      %v3494 = vsel %vm252, %v3429, 0
      %v3497 = vsel %vm252, %v3430, 0
      %v3500 = vsel %vm252, %v3431, 0
      %v3503 = vsel %vm252, %v3432, 0
      %v3506 = vsel %vm252, %v3433, 0
      %v3509 = vsel %vm252, %v3434, 0
      %v3512 = vsel %vm252, %v3435, 0
      %v3515 = vsel %vm252, %v3436, 0
      %v3518 = vsel %vm252, %v3437, 0
      %v3521 = vsel %vm252, %v3438, 0
      %v3524 = vsel %vm252, %v3439, 0
      %v3527 = vsel %vm252, %v3440, 0
      %v3530 = vsel %vm252, %v3441, 0
      %v3533 = vsel %vm252, %v3442, 0
      %v3536 = vsel %vm252, %v3443, 0
      %v3539 = vsel %vm252, %v3444, 0
      %v3542 = vsel %vm252, %v3445, 0
      %v3545 = vsel %vm252, %v3446, 0
      %v3548 = vsel %vm252, %v3447, 0
      %v3551 = vsel %vm252, %v3448, 0
      %v3554 = vsel %vm252, %v3449, 0
      %v3557 = vsel %vm252, %v3450, 0
      %v3560 = vsel %vm252, %v3451, 0
      %v3563 = vsel %vm252, %v3452, 0
      %v3566 = vsel %vm252, %v3453, 0
      %v3569 = vsel %vm252, %v3454, 0
      %v3572 = vsel %vm252, %v3455, 0
      %v3575 = vsel %vm252, %v3456, 0
      %v3578 = vsel %vm252, %v3457, 0
      %v3581 = vsel %vm252, %v3458, 0
      %v3584 = vsel %vm252, %v3459, 0
      %v3587 = vsel %vm252, %v3460, 0
      %v3590 = vsel %vm252, %v3461, 0
      %v3593 = vsel %vm252, %v3462, 0
      %v3596 = vsel %vm252, %v3463, 0
      %v3599 = vsel %vm252, %v3464, 0
      %v3602 = vsel %vm252, %v3465, 0
      %v3605 = vsel %vm252, %v3466, 0
      %v3608 = vsel %vm252, %v3467, 0
      %v3611 = vsel %vm252, %v3468, 0
      %v3614 = vsel %vm252, %v3469, 0
      %v3617 = vsel %vm1106, %v3471, 0
      %3619 = vmatprep.subr.mxu0 0.0
      %3620 = vmatpush1.msra.mxu0 0.0
      %3621 = vmatprep.subr.mxu0 0.0
      %3622 = vmatpush1.msra.mxu0 0.0
      %3623 = vmatprep.subr.mxu0 0.0
      %3624 = vmatpush1.msra.mxu0 0.0
      %3625 = vmatprep.subr.mxu0 0.0
      %3626 = vmatpush1.msra.mxu0 0.0
      %3627 = vmatprep.subr.mxu0 0.0
      %3628 = vmatpush1.msra.mxu0 0.0
      %3629 = vmatprep.subr.mxu0 0.0
      %3630 = vmatpush1.msra.mxu0 0.0
      %3631 = vmatprep.subr.mxu0 0.0
      %3632 = vmatpush1.msra.mxu0 0.0
      %3633 = vmatprep.subr.mxu0 0.0
      %3634 = vmatpush1.msra.mxu0 0.0
      %3635 = vmatprep.subr.mxu0 0.0
      %3636 = vmatpush1.msra.mxu0 0.0
      %3637 = vmatprep.subr.mxu0 0.0
      %3638 = vmatpush1.msra.mxu0 0.0
      %3639 = vmatprep.subr.mxu0 0.0
      %3640 = vmatpush1.msra.mxu0 0.0
      %3641 = vmatprep.subr.mxu0 0.0
      %3642 = vmatpush1.msra.mxu0 0.0
      %3643 = vmatprep.subr.mxu0 0.0
      %3644 = vmatpush1.msra.mxu0 0.0
      %3645 = vmatprep.subr.mxu0 0.0
      %3646 = vmatpush1.msra.mxu0 0.0
      %3647 = vmatprep.subr.mxu0 0.0
      %3648 = vmatpush1.msra.mxu0 %v3617
      %3649 = vmatprep.subr.mxu0 0.0
      %3650 = vmatpush1.msra.mxu0 %v3470
      %3651 = vmatprep.subr.mxu0 0.0
      %3652 = vmatpush2.msra.mxu0 0.0
      %3653 = vmatprep.subr.mxu0 0.0
      %3654 = vmatpush2.msra.mxu0 0.0
      %3655 = vmatprep.subr.mxu0 0.0
      %3656 = vmatpush2.msra.mxu0 0.0
      %3657 = vmatprep.subr.mxu0 0.0
      %3658 = vmatpush2.msra.mxu0 0.0
      %3659 = vmatprep.subr.mxu0 0.0
      %3660 = vmatpush2.msra.mxu0 0.0
      %3661 = vmatprep.subr.mxu0 0.0
      %3662 = vmatpush2.msra.mxu0 0.0
      %3663 = vmatprep.subr.mxu0 0.0
      %3664 = vmatpush2.msra.mxu0 0.0
      %3665 = vmatprep.subr.mxu0 0.0
      %3666 = vmatpush2.msra.mxu0 0.0
      %3667 = vmatprep.subr.mxu0 0.0
      %3668 = vmatpush2.msra.mxu0 0.0
      %3669 = vmatprep.subr.mxu0 0.0
      %3670 = vmatpush2.msra.mxu0 0.0
      %3671 = vmatprep.subr.mxu0 0.0
      %3672 = vmatpush2.msra.mxu0 0.0
      %3673 = vmatprep.subr.mxu0 0.0
      %3674 = vmatpush2.msra.mxu0 0.0
      %3675 = vmatprep.subr.mxu0 0.0
      %3676 = vmatpush2.msra.mxu0 0.0
      %3677 = vmatprep.subr.mxu0 0.0
      %3678 = vmatpush2.msra.mxu0 0.0
      %3679 = vmatprep.subr.mxu0 0.0
      %3680 = vmatpush2.msra.mxu0 0.0
      %3681 = vmatprep.subr.mxu0 0.0
      %3682 = vmatpush2.msra.mxu0 0.0
      %3683 = vmatprep.mubr.f32.mxu0 0.0
      %3684 = vmatmul.mubr.f32.gmra.mxu0 %v3473
      %v3685 = vpop.f32.mrf.mxu0
      %v3686 = vadd.f32 0.0, %v3685
      %v3687 = vpop.f32.mrf.mxu0
      %3688 = vmatprep.mubr.f32.mxu0 0.0
      %3689 = vmatmul.mubr.f32.gmra.mxu0 %v3476
      %v3690 = vpop.f32.mrf.mxu0
      %v3691 = vadd.f32 0.0, %v3690
      %v3692 = vpop.f32.mrf.mxu0
      %3693 = vmatprep.mubr.f32.mxu0 0.0
      %3694 = vmatmul.mubr.f32.gmra.mxu0 %v3479
      %v3695 = vpop.f32.mrf.mxu0
      %v3696 = vadd.f32 0.0, %v3695
      %v3697 = vpop.f32.mrf.mxu0
      %3698 = vmatprep.mubr.f32.mxu0 0.0
      %3699 = vmatmul.mubr.f32.gmra.mxu0 %v3482
      %v3700 = vpop.f32.mrf.mxu0
      %v3701 = vadd.f32 0.0, %v3700
      %v3702 = vpop.f32.mrf.mxu0
      %3703 = vmatprep.mubr.f32.mxu0 0.0
      %3704 = vmatmul.mubr.f32.gmra.mxu0 %v3485
      %v3705 = vpop.f32.mrf.mxu0
      %v3706 = vadd.f32 0.0, %v3705
      %v3707 = vpop.f32.mrf.mxu0
      %3708 = vmatprep.mubr.f32.mxu0 0.0
      %3709 = vmatmul.mubr.f32.gmra.mxu0 %v3488
      %v3710 = vpop.f32.mrf.mxu0
      %v3711 = vadd.f32 0.0, %v3710
      %v3712 = vpop.f32.mrf.mxu0
      %3713 = vmatprep.mubr.f32.mxu0 0.0
      %3714 = vmatmul.mubr.f32.gmra.mxu0 %v3491
      %v3715 = vpop.f32.mrf.mxu0
      %v3716 = vadd.f32 0.0, %v3715
      %v3717 = vpop.f32.mrf.mxu0
      %3718 = vmatprep.mubr.f32.mxu0 0.0
      %3719 = vmatmul.mubr.f32.gmra.mxu0 %v3494
      %v3720 = vpop.f32.mrf.mxu0
      %v3721 = vadd.f32 0.0, %v3720
      %v3722 = vpop.f32.mrf.mxu0
      %3723 = vmatprep.mubr.f32.mxu0 0.0
      %3724 = vmatmul.mubr.f32.gmra.mxu0 %v3497
      %v3725 = vpop.f32.mrf.mxu0
      %v3726 = vadd.f32 0.0, %v3725
      %v3727 = vpop.f32.mrf.mxu0
      %3728 = vmatprep.mubr.f32.mxu0 0.0
      %3729 = vmatmul.mubr.f32.gmra.mxu0 %v3500
      %v3730 = vpop.f32.mrf.mxu0
      %v3731 = vadd.f32 0.0, %v3730
      %v3732 = vpop.f32.mrf.mxu0
      %3733 = vmatprep.mubr.f32.mxu0 0.0
      %3734 = vmatmul.mubr.f32.gmra.mxu0 %v3503
      %v3735 = vpop.f32.mrf.mxu0
      %v3736 = vadd.f32 0.0, %v3735
      %v3737 = vpop.f32.mrf.mxu0
      %3738 = vmatprep.mubr.f32.mxu0 0.0
      %3739 = vmatmul.mubr.f32.gmra.mxu0 %v3506
      %v3740 = vpop.f32.mrf.mxu0
      %v3741 = vadd.f32 0.0, %v3740
      %v3742 = vpop.f32.mrf.mxu0
      %3743 = vmatprep.mubr.f32.mxu0 0.0
      %3744 = vmatmul.mubr.f32.gmra.mxu0 %v3509
      %v3745 = vpop.f32.mrf.mxu0
      %v3746 = vadd.f32 0.0, %v3745
      %v3747 = vpop.f32.mrf.mxu0
      %3748 = vmatprep.mubr.f32.mxu0 0.0
      %3749 = vmatmul.mubr.f32.gmra.mxu0 %v3512
      %v3750 = vpop.f32.mrf.mxu0
      %v3751 = vadd.f32 0.0, %v3750
      %v3752 = vpop.f32.mrf.mxu0
      %3753 = vmatprep.mubr.f32.mxu0 0.0
      %3754 = vmatmul.mubr.f32.gmra.mxu0 %v3515
      %v3755 = vpop.f32.mrf.mxu0
      %v3756 = vadd.f32 0.0, %v3755
      %v3757 = vpop.f32.mrf.mxu0
      %3758 = vmatprep.mubr.f32.mxu0 0.0
      %3759 = vmatmul.mubr.f32.gmra.mxu0 %v3518
      %v3760 = vpop.f32.mrf.mxu0
      %v3761 = vadd.f32 0.0, %v3760
      %v3762 = vpop.f32.mrf.mxu0
      %3763 = vmatprep.mubr.f32.mxu0 0.0
      %3764 = vmatmul.mubr.f32.gmra.mxu0 %v3521
      %v3765 = vpop.f32.mrf.mxu0
      %v3766 = vadd.f32 0.0, %v3765
      %v3767 = vpop.f32.mrf.mxu0
      %3768 = vmatprep.mubr.f32.mxu0 0.0
      %3769 = vmatmul.mubr.f32.gmra.mxu0 %v3524
      %v3770 = vpop.f32.mrf.mxu0
      %v3771 = vadd.f32 0.0, %v3770
      %v3772 = vpop.f32.mrf.mxu0
      %3773 = vmatprep.mubr.f32.mxu0 0.0
      %3774 = vmatmul.mubr.f32.gmra.mxu0 %v3527
      %v3775 = vpop.f32.mrf.mxu0
      %v3776 = vadd.f32 0.0, %v3775
      %v3777 = vpop.f32.mrf.mxu0
      %3778 = vmatprep.mubr.f32.mxu0 0.0
      %3779 = vmatmul.mubr.f32.gmra.mxu0 %v3530
      %v3780 = vpop.f32.mrf.mxu0
      %v3781 = vadd.f32 0.0, %v3780
      %v3782 = vpop.f32.mrf.mxu0
      %3783 = vmatprep.mubr.f32.mxu0 0.0
      %3784 = vmatmul.mubr.f32.gmra.mxu0 %v3533
      %v3785 = vpop.f32.mrf.mxu0
      %v3786 = vadd.f32 0.0, %v3785
      %v3787 = vpop.f32.mrf.mxu0
      %3788 = vmatprep.mubr.f32.mxu0 0.0
      %3789 = vmatmul.mubr.f32.gmra.mxu0 %v3536
      %v3790 = vpop.f32.mrf.mxu0
      %v3791 = vadd.f32 0.0, %v3790
      %v3792 = vpop.f32.mrf.mxu0
      %3793 = vmatprep.mubr.f32.mxu0 0.0
      %3794 = vmatmul.mubr.f32.gmra.mxu0 %v3539
      %v3795 = vpop.f32.mrf.mxu0
      %v3796 = vadd.f32 0.0, %v3795
      %v3797 = vpop.f32.mrf.mxu0
      %3798 = vmatprep.mubr.f32.mxu0 0.0
      %3799 = vmatmul.mubr.f32.gmra.mxu0 %v3542
      %v3800 = vpop.f32.mrf.mxu0
      %v3801 = vadd.f32 0.0, %v3800
      %v3802 = vpop.f32.mrf.mxu0
      %3803 = vmatprep.mubr.f32.mxu0 0.0
      %3804 = vmatmul.mubr.f32.gmra.mxu0 %v3545
      %v3805 = vpop.f32.mrf.mxu0
      %v3806 = vadd.f32 0.0, %v3805
      %v3807 = vpop.f32.mrf.mxu0
      %3808 = vmatprep.mubr.f32.mxu0 0.0
      %3809 = vmatmul.mubr.f32.gmra.mxu0 %v3548
      %v3810 = vpop.f32.mrf.mxu0
      %v3811 = vadd.f32 0.0, %v3810
      %v3812 = vpop.f32.mrf.mxu0
      %3813 = vmatprep.mubr.f32.mxu0 0.0
      %3814 = vmatmul.mubr.f32.gmra.mxu0 %v3551
      %v3815 = vpop.f32.mrf.mxu0
      %v3816 = vadd.f32 0.0, %v3815
      %v3817 = vpop.f32.mrf.mxu0
      %3818 = vmatprep.mubr.f32.mxu0 0.0
      %3819 = vmatmul.mubr.f32.gmra.mxu0 %v3554
      %v3820 = vpop.f32.mrf.mxu0
      %v3821 = vadd.f32 0.0, %v3820
      %v3822 = vpop.f32.mrf.mxu0
      %3823 = vmatprep.mubr.f32.mxu0 0.0
      %3824 = vmatmul.mubr.f32.gmra.mxu0 %v3557
      %v3825 = vpop.f32.mrf.mxu0
      %v3826 = vadd.f32 0.0, %v3825
      %v3827 = vpop.f32.mrf.mxu0
      %3828 = vmatprep.mubr.f32.mxu0 0.0
      %3829 = vmatmul.mubr.f32.gmra.mxu0 %v3560
      %v3830 = vpop.f32.mrf.mxu0
      %v3831 = vadd.f32 0.0, %v3830
      %v3832 = vpop.f32.mrf.mxu0
      %3833 = vmatprep.mubr.f32.mxu0 0.0
      %3834 = vmatmul.mubr.f32.gmra.mxu0 %v3563
      %v3835 = vpop.f32.mrf.mxu0
      %v3836 = vadd.f32 0.0, %v3835
      %v3837 = vpop.f32.mrf.mxu0
      %3838 = vmatprep.mubr.f32.mxu0 0.0
      %3839 = vmatmul.mubr.f32.gmra.mxu0 %v3566
      %v3840 = vpop.f32.mrf.mxu0
      %v3841 = vadd.f32 0.0, %v3840
      %v3842 = vpop.f32.mrf.mxu0
      %3843 = vmatprep.mubr.f32.mxu0 0.0
      %3844 = vmatmul.mubr.f32.gmra.mxu0 %v3569
      %v3845 = vpop.f32.mrf.mxu0
      %v3846 = vadd.f32 0.0, %v3845
      %v3847 = vpop.f32.mrf.mxu0
      %3848 = vmatprep.mubr.f32.mxu0 0.0
      %3849 = vmatmul.mubr.f32.gmra.mxu0 %v3572
      %v3850 = vpop.f32.mrf.mxu0
      %v3851 = vadd.f32 0.0, %v3850
      %v3852 = vpop.f32.mrf.mxu0
      %3853 = vmatprep.mubr.f32.mxu0 0.0
      %3854 = vmatmul.mubr.f32.gmra.mxu0 %v3575
      %v3855 = vpop.f32.mrf.mxu0
      %v3856 = vadd.f32 0.0, %v3855
      %v3857 = vpop.f32.mrf.mxu0
      %3858 = vmatprep.mubr.f32.mxu0 0.0
      %3859 = vmatmul.mubr.f32.gmra.mxu0 %v3578
      %v3860 = vpop.f32.mrf.mxu0
      %v3861 = vadd.f32 0.0, %v3860
      %v3862 = vpop.f32.mrf.mxu0
      %3863 = vmatprep.mubr.f32.mxu0 0.0
      %3864 = vmatmul.mubr.f32.gmra.mxu0 %v3581
      %v3865 = vpop.f32.mrf.mxu0
      %v3866 = vadd.f32 0.0, %v3865
      %v3867 = vpop.f32.mrf.mxu0
      %3868 = vmatprep.mubr.f32.mxu0 0.0
      %3869 = vmatmul.mubr.f32.gmra.mxu0 %v3584
      %v3870 = vpop.f32.mrf.mxu0
      %v3871 = vadd.f32 0.0, %v3870
      %v3872 = vpop.f32.mrf.mxu0
      %3873 = vmatprep.mubr.f32.mxu0 0.0
      %3874 = vmatmul.mubr.f32.gmra.mxu0 %v3587
      %v3875 = vpop.f32.mrf.mxu0
      %v3876 = vadd.f32 0.0, %v3875
      %v3877 = vpop.f32.mrf.mxu0
      %3878 = vmatprep.mubr.f32.mxu0 0.0
      %3879 = vmatmul.mubr.f32.gmra.mxu0 %v3590
      %v3880 = vpop.f32.mrf.mxu0
      %v3881 = vadd.f32 0.0, %v3880
      %v3882 = vpop.f32.mrf.mxu0
      %3883 = vmatprep.mubr.f32.mxu0 0.0
      %3884 = vmatmul.mubr.f32.gmra.mxu0 %v3593
      %v3885 = vpop.f32.mrf.mxu0
      %v3886 = vadd.f32 0.0, %v3885
      %v3887 = vpop.f32.mrf.mxu0
      %3888 = vmatprep.mubr.f32.mxu0 0.0
      %3889 = vmatmul.mubr.f32.gmra.mxu0 %v3596
      %v3890 = vpop.f32.mrf.mxu0
      %v3891 = vadd.f32 0.0, %v3890
      %v3892 = vpop.f32.mrf.mxu0
      %3893 = vmatprep.mubr.f32.mxu0 0.0
      %3894 = vmatmul.mubr.f32.gmra.mxu0 %v3599
      %v3895 = vpop.f32.mrf.mxu0
      %v3896 = vadd.f32 0.0, %v3895
      %v3897 = vpop.f32.mrf.mxu0
      %3898 = vmatprep.mubr.f32.mxu0 0.0
      %3899 = vmatmul.mubr.f32.gmra.mxu0 %v3602
      %v3900 = vpop.f32.mrf.mxu0
      %v3901 = vadd.f32 0.0, %v3900
      %v3902 = vpop.f32.mrf.mxu0
      %3903 = vmatprep.mubr.f32.mxu0 0.0
      %3904 = vmatmul.mubr.f32.gmra.mxu0 %v3605
      %v3905 = vpop.f32.mrf.mxu0
      %v3906 = vadd.f32 0.0, %v3905
      %v3907 = vpop.f32.mrf.mxu0
      %3908 = vmatprep.mubr.f32.mxu0 0.0
      %3909 = vmatmul.mubr.f32.gmra.mxu0 %v3608
      %v3910 = vpop.f32.mrf.mxu0
      %v3911 = vadd.f32 0.0, %v3910
      %v3912 = vpop.f32.mrf.mxu0
      %3913 = vmatprep.mubr.f32.mxu0 0.0
      %3914 = vmatmul.mubr.f32.gmra.mxu0 %v3611
      %v3915 = vpop.f32.mrf.mxu0
      %v3916 = vadd.f32 0.0, %v3915
      %v3917 = vpop.f32.mrf.mxu0
      %3918 = vmatprep.mubr.f32.mxu0 0.0
      %3919 = vmatmul.mubr.f32.gmra.mxu0 %v3614
      %v3920 = vpop.f32.mrf.mxu0
      %v3921 = vadd.f32 0.0, %v3920
      %v3922 = vpop.f32.mrf.mxu0
      %3923 = vdwg.mxu0
      %3924 = vst.msk [vmem:[#allocation3 + $0x8] sm:$0xff] %vm252, %v3686
      %3925 = vst.msk [vmem:[#allocation3 + $0x10] sm:$0xff] %vm252, %v3691
      %3926 = vst.msk [vmem:[#allocation3 + $0x18] sm:$0xff] %vm252, %v3696
      %3927 = vst.msk [vmem:[#allocation3 + $0x20] sm:$0xff] %vm252, %v3701
      %3928 = vst.msk [vmem:[#allocation3 + $0x28] sm:$0xff] %vm252, %v3706
      %3929 = vst.msk [vmem:[#allocation3 + $0x30] sm:$0xff] %vm252, %v3711
      %3930 = vst.msk [vmem:[#allocation3 + $0x38] sm:$0xff] %vm252, %v3716
      %3931 = vst.msk [vmem:[#allocation3 + $0x40] sm:$0xff] %vm252, %v3721
      %3932 = vst.msk [vmem:[#allocation3 + $0x48] sm:$0xff] %vm252, %v3726
      %3933 = vst.msk [vmem:[#allocation3 + $0x50] sm:$0xff] %vm252, %v3731
      %3934 = vst.msk [vmem:[#allocation3 + $0x58] sm:$0xff] %vm252, %v3736
      %3935 = vst.msk [vmem:[#allocation3 + $0x60] sm:$0xff] %vm252, %v3741
      %3936 = vst.msk [vmem:[#allocation3 + $0x68] sm:$0xff] %vm252, %v3746
      %3937 = vst.msk [vmem:[#allocation3 + $0x70] sm:$0xff] %vm252, %v3751
      %3938 = vst.msk [vmem:[#allocation3 + $0x78] sm:$0xff] %vm252, %v3756
      %3939 = vst.msk [vmem:[#allocation3 + $0x80] sm:$0xff] %vm252, %v3761
      %3940 = vst.msk [vmem:[#allocation3 + $0x88] sm:$0xff] %vm252, %v3766
      %3941 = vst.msk [vmem:[#allocation3 + $0x90] sm:$0xff] %vm252, %v3771
      %3942 = vst.msk [vmem:[#allocation3 + $0x98] sm:$0xff] %vm252, %v3776
      %3943 = vst.msk [vmem:[#allocation3 + $0xa0] sm:$0xff] %vm252, %v3781
      %3944 = vst.msk [vmem:[#allocation3 + $0xa8] sm:$0xff] %vm252, %v3786
      %3945 = vst.msk [vmem:[#allocation3 + $0xb0] sm:$0xff] %vm252, %v3791
      %3946 = vst.msk [vmem:[#allocation3 + $0xb8] sm:$0xff] %vm252, %v3796
      %3947 = vst.msk [vmem:[#allocation3 + $0xc0] sm:$0xff] %vm252, %v3801
      %3948 = vst.msk [vmem:[#allocation3 + $0xc8] sm:$0xff] %vm252, %v3806
      %3949 = vst.msk [vmem:[#allocation3 + $0xd0] sm:$0xff] %vm252, %v3811
      %3950 = vst.msk [vmem:[#allocation3 + $0xd8] sm:$0xff] %vm252, %v3816
      %3951 = vst.msk [vmem:[#allocation3 + $0xe0] sm:$0xff] %vm252, %v3821
      %3952 = vst.msk [vmem:[#allocation3 + $0xe8] sm:$0xff] %vm252, %v3826
      %3953 = vst.msk [vmem:[#allocation3 + $0xf0] sm:$0xff] %vm252, %v3831
      %3954 = vst.msk [vmem:[#allocation3 + $0xf8] sm:$0xff] %vm252, %v3836
      %3955 = vst.msk [vmem:[#allocation3 + $0x100] sm:$0xff] %vm252, %v3841
      %3956 = vst.msk [vmem:[#allocation3 + $0x108] sm:$0xff] %vm252, %v3846
      %3957 = vst.msk [vmem:[#allocation3 + $0x110] sm:$0xff] %vm252, %v3851
      %3958 = vst.msk [vmem:[#allocation3 + $0x118] sm:$0xff] %vm252, %v3856
      %3959 = vst.msk [vmem:[#allocation3 + $0x120] sm:$0xff] %vm252, %v3861
      %3960 = vst.msk [vmem:[#allocation3 + $0x128] sm:$0xff] %vm252, %v3866
      %3961 = vst.msk [vmem:[#allocation3 + $0x130] sm:$0xff] %vm252, %v3871
      %3962 = vst.msk [vmem:[#allocation3 + $0x138] sm:$0xff] %vm252, %v3876
      %3963 = vst.msk [vmem:[#allocation3 + $0x140] sm:$0xff] %vm252, %v3881
      %3964 = vst.msk [vmem:[#allocation3 + $0x148] sm:$0xff] %vm252, %v3886
      %3965 = vst.msk [vmem:[#allocation3 + $0x150] sm:$0xff] %vm252, %v3891
      %3966 = vst.msk [vmem:[#allocation3 + $0x158] sm:$0xff] %vm252, %v3896
      %3967 = vst.msk [vmem:[#allocation3 + $0x160] sm:$0xff] %vm252, %v3901
      %3968 = vst.msk [vmem:[#allocation3 + $0x168] sm:$0xff] %vm252, %v3906
      %3969 = vst.msk [vmem:[#allocation3 + $0x170] sm:$0xff] %vm252, %v3911
      %3970 = vst.msk [vmem:[#allocation3 + $0x178] sm:$0xff] %vm252, %v3916
      %3971 = vst.msk [vmem:[#allocation3 + $0x180] sm:$0xff] %vm252, %v3921
      %v3972 = vld [vmem:[#allocation3 + $0x8] sm:$0xff]
      %v3973 = vld [vmem:[#allocation3 + $0x10] sm:$0xff]
      %v3974 = vld [vmem:[#allocation3 + $0x18] sm:$0xff]
      %v3975 = vld [vmem:[#allocation3 + $0x20] sm:$0xff]
      %v3976 = vld [vmem:[#allocation3 + $0x28] sm:$0xff]
      %v3977 = vld [vmem:[#allocation3 + $0x30] sm:$0xff]
      %v3978 = vld [vmem:[#allocation3 + $0x38] sm:$0xff]
      %v3979 = vld [vmem:[#allocation3 + $0x40] sm:$0xff]
      %v3980 = vld [vmem:[#allocation3 + $0x48] sm:$0xff]
      %v3981 = vld [vmem:[#allocation3 + $0x50] sm:$0xff]
      %v3982 = vld [vmem:[#allocation3 + $0x58] sm:$0xff]
      %v3983 = vld [vmem:[#allocation3 + $0x60] sm:$0xff]
      %v3984 = vld [vmem:[#allocation3 + $0x68] sm:$0xff]
      %v3985 = vld [vmem:[#allocation3 + $0x70] sm:$0xff]
      %v3986 = vld [vmem:[#allocation3 + $0x78] sm:$0xff]
      %v3987 = vld [vmem:[#allocation3 + $0x80] sm:$0xff]
      %v3988 = vld [vmem:[#allocation3 + $0x88] sm:$0xff]
      %v3989 = vld [vmem:[#allocation3 + $0x90] sm:$0xff]
      %v3990 = vld [vmem:[#allocation3 + $0x98] sm:$0xff]
      %v3991 = vld [vmem:[#allocation3 + $0xa0] sm:$0xff]
      %v3992 = vld [vmem:[#allocation3 + $0xa8] sm:$0xff]
      %v3993 = vld [vmem:[#allocation3 + $0xb0] sm:$0xff]
      %v3994 = vld [vmem:[#allocation3 + $0xb8] sm:$0xff]
      %v3995 = vld [vmem:[#allocation3 + $0xc0] sm:$0xff]
      %v3996 = vld [vmem:[#allocation3 + $0xc8] sm:$0xff]
      %v3997 = vld [vmem:[#allocation3 + $0xd0] sm:$0xff]
      %v3998 = vld [vmem:[#allocation3 + $0xd8] sm:$0xff]
      %v3999 = vld [vmem:[#allocation3 + $0xe0] sm:$0xff]
      %v4000 = vld [vmem:[#allocation3 + $0xe8] sm:$0xff]
      %v4001 = vld [vmem:[#allocation3 + $0xf0] sm:$0xff]
      %v4002 = vld [vmem:[#allocation3 + $0xf8] sm:$0xff]
      %v4003 = vld [vmem:[#allocation3 + $0x100] sm:$0xff]
      %v4004 = vld [vmem:[#allocation3 + $0x108] sm:$0xff]
      %v4005 = vld [vmem:[#allocation3 + $0x110] sm:$0xff]
      %v4006 = vld [vmem:[#allocation3 + $0x118] sm:$0xff]
      %v4007 = vld [vmem:[#allocation3 + $0x120] sm:$0xff]
      %v4008 = vld [vmem:[#allocation3 + $0x128] sm:$0xff]
      %v4009 = vld [vmem:[#allocation3 + $0x130] sm:$0xff]
      %v4010 = vld [vmem:[#allocation3 + $0x138] sm:$0xff]
      %v4011 = vld [vmem:[#allocation3 + $0x140] sm:$0xff]
      %v4012 = vld [vmem:[#allocation3 + $0x148] sm:$0xff]
      %v4013 = vld [vmem:[#allocation3 + $0x150] sm:$0xff]
      %v4014 = vld [vmem:[#allocation3 + $0x158] sm:$0xff]
      %v4015 = vld [vmem:[#allocation3 + $0x160] sm:$0xff]
      %v4016 = vld [vmem:[#allocation3 + $0x168] sm:$0xff]
      %v4017 = vld [vmem:[#allocation3 + $0x170] sm:$0xff]
      %v4018 = vld [vmem:[#allocation3 + $0x178] sm:$0xff]
      %v4019 = vld [vmem:[#allocation3 + $0x180] sm:$0xff]
      %v4020 = vld [vmem:[#allocation3 + $0x7] sm:$0xff]
      %v4021 = vld [vmem:[#allocation3 + $0xf] sm:$0xff]
      %v4022 = vld [vmem:[#allocation3 + $0x17] sm:$0xff]
      %v4023 = vld [vmem:[#allocation3 + $0x1f] sm:$0xff]
      %v4024 = vld [vmem:[#allocation3 + $0x27] sm:$0xff]
      %v4025 = vld [vmem:[#allocation3 + $0x2f] sm:$0xff]
      %v4026 = vld [vmem:[#allocation3 + $0x37] sm:$0xff]
      %v4027 = vld [vmem:[#allocation3 + $0x3f] sm:$0xff]
      %v4028 = vld [vmem:[#allocation3 + $0x47] sm:$0xff]
      %v4029 = vld [vmem:[#allocation3 + $0x4f] sm:$0xff]
      %v4030 = vld [vmem:[#allocation3 + $0x57] sm:$0xff]
      %v4031 = vld [vmem:[#allocation3 + $0x5f] sm:$0xff]
      %v4032 = vld [vmem:[#allocation3 + $0x67] sm:$0xff]
      %v4033 = vld [vmem:[#allocation3 + $0x6f] sm:$0xff]
      %v4034 = vld [vmem:[#allocation3 + $0x77] sm:$0xff]
      %v4035 = vld [vmem:[#allocation3 + $0x7f] sm:$0xff]
      %v4036 = vld [vmem:[#allocation3 + $0x87] sm:$0xff]
      %v4037 = vld [vmem:[#allocation3 + $0x8f] sm:$0xff]
      %v4038 = vld [vmem:[#allocation3 + $0x97] sm:$0xff]
      %v4039 = vld [vmem:[#allocation3 + $0x9f] sm:$0xff]
      %v4040 = vld [vmem:[#allocation3 + $0xa7] sm:$0xff]
      %v4041 = vld [vmem:[#allocation3 + $0xaf] sm:$0xff]
      %v4042 = vld [vmem:[#allocation3 + $0xb7] sm:$0xff]
      %v4043 = vld [vmem:[#allocation3 + $0xbf] sm:$0xff]
      %v4044 = vld [vmem:[#allocation3 + $0xc7] sm:$0xff]
      %v4045 = vld [vmem:[#allocation3 + $0xcf] sm:$0xff]
      %v4046 = vld [vmem:[#allocation3 + $0xd7] sm:$0xff]
      %v4047 = vld [vmem:[#allocation3 + $0xdf] sm:$0xff]
      %v4048 = vld [vmem:[#allocation3 + $0xe7] sm:$0xff]
      %v4049 = vld [vmem:[#allocation3 + $0xef] sm:$0xff]
      %v4050 = vld [vmem:[#allocation3 + $0xf7] sm:$0xff]
      %v4051 = vld [vmem:[#allocation3 + $0xff] sm:$0xff]
      %v4052 = vld [vmem:[#allocation3 + $0x107] sm:$0xff]
      %v4053 = vld [vmem:[#allocation3 + $0x10f] sm:$0xff]
      %v4054 = vld [vmem:[#allocation3 + $0x117] sm:$0xff]
      %v4055 = vld [vmem:[#allocation3 + $0x11f] sm:$0xff]
      %v4056 = vld [vmem:[#allocation3 + $0x127] sm:$0xff]
      %v4057 = vld [vmem:[#allocation3 + $0x12f] sm:$0xff]
      %v4058 = vld [vmem:[#allocation3 + $0x137] sm:$0xff]
      %v4059 = vld [vmem:[#allocation3 + $0x13f] sm:$0xff]
      %v4060 = vld [vmem:[#allocation3 + $0x147] sm:$0xff]
      %v4061 = vld [vmem:[#allocation3 + $0x14f] sm:$0xff]
      %v4062 = vld [vmem:[#allocation3 + $0x157] sm:$0xff]
      %v4063 = vld [vmem:[#allocation3 + $0x15f] sm:$0xff]
      %v4064 = vld [vmem:[#allocation3 + $0x167] sm:$0xff]
      %v4065 = vld [vmem:[#allocation3 + $0x16f] sm:$0xff]
      %v4066 = vld [vmem:[#allocation3 + $0x177] sm:$0xff]
      %v4067 = vld [vmem:[#allocation3 + $0x17f] sm:$0xff]
      %4116 = vrot.lane.b32.xlu0 %v4020, 4
      %v4117 = vpop.permute.xlu0 %4116
      %4118 = vrot.lane.b32.xlu0 %v4021, 4
      %v4119 = vpop.permute.xlu0 %4118
      %4120 = vrot.lane.b32.xlu0 %v4022, 4
      %v4121 = vpop.permute.xlu0 %4120
      %4122 = vrot.lane.b32.xlu0 %v4023, 4
      %v4123 = vpop.permute.xlu0 %4122
      %4124 = vrot.lane.b32.xlu0 %v4024, 4
      %v4125 = vpop.permute.xlu0 %4124
      %4126 = vrot.lane.b32.xlu0 %v4025, 4
      %v4127 = vpop.permute.xlu0 %4126
      %4128 = vrot.lane.b32.xlu0 %v4026, 4
      %v4129 = vpop.permute.xlu0 %4128
      %4130 = vrot.lane.b32.xlu0 %v4027, 4
      %v4131 = vpop.permute.xlu0 %4130
      %4132 = vrot.lane.b32.xlu0 %v4028, 4
      %v4133 = vpop.permute.xlu0 %4132
      %4134 = vrot.lane.b32.xlu0 %v4029, 4
      %v4135 = vpop.permute.xlu0 %4134
      %4136 = vrot.lane.b32.xlu0 %v4030, 4
      %v4137 = vpop.permute.xlu0 %4136
      %4138 = vrot.lane.b32.xlu0 %v4031, 4
      %v4139 = vpop.permute.xlu0 %4138
      %4140 = vrot.lane.b32.xlu0 %v4032, 4
      %v4141 = vpop.permute.xlu0 %4140
      %4142 = vrot.lane.b32.xlu0 %v4033, 4
      %v4143 = vpop.permute.xlu0 %4142
      %4144 = vrot.lane.b32.xlu0 %v4034, 4
      %v4145 = vpop.permute.xlu0 %4144
      %4146 = vrot.lane.b32.xlu0 %v4035, 4
      %v4147 = vpop.permute.xlu0 %4146
      %4148 = vrot.lane.b32.xlu0 %v4036, 4
      %v4149 = vpop.permute.xlu0 %4148
      %4150 = vrot.lane.b32.xlu0 %v4037, 4
      %v4151 = vpop.permute.xlu0 %4150
      %4152 = vrot.lane.b32.xlu0 %v4038, 4
      %v4153 = vpop.permute.xlu0 %4152
      %4154 = vrot.lane.b32.xlu0 %v4039, 4
      %v4155 = vpop.permute.xlu0 %4154
      %4156 = vrot.lane.b32.xlu0 %v4040, 4
      %v4157 = vpop.permute.xlu0 %4156
      %4158 = vrot.lane.b32.xlu0 %v4041, 4
      %v4159 = vpop.permute.xlu0 %4158
      %4160 = vrot.lane.b32.xlu0 %v4042, 4
      %v4161 = vpop.permute.xlu0 %4160
      %4162 = vrot.lane.b32.xlu0 %v4043, 4
      %v4163 = vpop.permute.xlu0 %4162
      %4164 = vrot.lane.b32.xlu0 %v4044, 4
      %v4165 = vpop.permute.xlu0 %4164
      %4166 = vrot.lane.b32.xlu0 %v4045, 4
      %v4167 = vpop.permute.xlu0 %4166
      %4168 = vrot.lane.b32.xlu0 %v4046, 4
      %v4169 = vpop.permute.xlu0 %4168
      %4170 = vrot.lane.b32.xlu0 %v4047, 4
      %v4171 = vpop.permute.xlu0 %4170
      %4172 = vrot.lane.b32.xlu0 %v4048, 4
      %v4173 = vpop.permute.xlu0 %4172
      %4174 = vrot.lane.b32.xlu0 %v4049, 4
      %v4175 = vpop.permute.xlu0 %4174
      %4176 = vrot.lane.b32.xlu0 %v4050, 4
      %v4177 = vpop.permute.xlu0 %4176
      %4178 = vrot.lane.b32.xlu0 %v4051, 4
      %v4179 = vpop.permute.xlu0 %4178
      %4180 = vrot.lane.b32.xlu0 %v4052, 4
      %v4181 = vpop.permute.xlu0 %4180
      %4182 = vrot.lane.b32.xlu0 %v4053, 4
      %v4183 = vpop.permute.xlu0 %4182
      %4184 = vrot.lane.b32.xlu0 %v4054, 4
      %v4185 = vpop.permute.xlu0 %4184
      %4186 = vrot.lane.b32.xlu0 %v4055, 4
      %v4187 = vpop.permute.xlu0 %4186
      %4188 = vrot.lane.b32.xlu0 %v4056, 4
      %v4189 = vpop.permute.xlu0 %4188
      %4190 = vrot.lane.b32.xlu0 %v4057, 4
      %v4191 = vpop.permute.xlu0 %4190
      %4192 = vrot.lane.b32.xlu0 %v4058, 4
      %v4193 = vpop.permute.xlu0 %4192
      %4194 = vrot.lane.b32.xlu0 %v4059, 4
      %v4195 = vpop.permute.xlu0 %4194
      %4196 = vrot.lane.b32.xlu0 %v4060, 4
      %v4197 = vpop.permute.xlu0 %4196
      %4198 = vrot.lane.b32.xlu0 %v4061, 4
      %v4199 = vpop.permute.xlu0 %4198
      %4200 = vrot.lane.b32.xlu0 %v4062, 4
      %v4201 = vpop.permute.xlu0 %4200
      %4202 = vrot.lane.b32.xlu0 %v4063, 4
      %v4203 = vpop.permute.xlu0 %4202
      %4204 = vrot.lane.b32.xlu0 %v4064, 4
      %v4205 = vpop.permute.xlu0 %4204
      %4206 = vrot.lane.b32.xlu0 %v4065, 4
      %v4207 = vpop.permute.xlu0 %4206
      %4208 = vrot.lane.b32.xlu0 %v4066, 4
      %v4209 = vpop.permute.xlu0 %4208
      %4210 = vrot.lane.b32.xlu0 %v4067, 4
      %v4211 = vpop.permute.xlu0 %4210
      %v4260 = vadd.f32 %v3972, %v4117
      %v4261 = vadd.f32 %v3973, %v4119
      %v4262 = vadd.f32 %v3974, %v4121
      %v4263 = vadd.f32 %v3975, %v4123
      %v4264 = vadd.f32 %v3976, %v4125
      %v4265 = vadd.f32 %v3977, %v4127
      %v4266 = vadd.f32 %v3978, %v4129
      %v4267 = vadd.f32 %v3979, %v4131
      %v4268 = vadd.f32 %v3980, %v4133
      %v4269 = vadd.f32 %v3981, %v4135
      %v4270 = vadd.f32 %v3982, %v4137
      %v4271 = vadd.f32 %v3983, %v4139
      %v4272 = vadd.f32 %v3984, %v4141
      %v4273 = vadd.f32 %v3985, %v4143
      %v4274 = vadd.f32 %v3986, %v4145
      %v4275 = vadd.f32 %v3987, %v4147
      %v4276 = vadd.f32 %v3988, %v4149
      %v4277 = vadd.f32 %v3989, %v4151
      %v4278 = vadd.f32 %v3990, %v4153
      %v4279 = vadd.f32 %v3991, %v4155
      %v4280 = vadd.f32 %v3992, %v4157
      %v4281 = vadd.f32 %v3993, %v4159
      %v4282 = vadd.f32 %v3994, %v4161
      %v4283 = vadd.f32 %v3995, %v4163
      %v4284 = vadd.f32 %v3996, %v4165
      %v4285 = vadd.f32 %v3997, %v4167
      %v4286 = vadd.f32 %v3998, %v4169
      %v4287 = vadd.f32 %v3999, %v4171
      %v4288 = vadd.f32 %v4000, %v4173
      %v4289 = vadd.f32 %v4001, %v4175
      %v4290 = vadd.f32 %v4002, %v4177
      %v4291 = vadd.f32 %v4003, %v4179
      %v4292 = vadd.f32 %v4004, %v4181
      %v4293 = vadd.f32 %v4005, %v4183
      %v4294 = vadd.f32 %v4006, %v4185
      %v4295 = vadd.f32 %v4007, %v4187
      %v4296 = vadd.f32 %v4008, %v4189
      %v4297 = vadd.f32 %v4009, %v4191
      %v4298 = vadd.f32 %v4010, %v4193
      %v4299 = vadd.f32 %v4011, %v4195
      %v4300 = vadd.f32 %v4012, %v4197
      %v4301 = vadd.f32 %v4013, %v4199
      %v4302 = vadd.f32 %v4014, %v4201
      %v4303 = vadd.f32 %v4015, %v4203
      %v4304 = vadd.f32 %v4016, %v4205
      %v4305 = vadd.f32 %v4017, %v4207
      %v4306 = vadd.f32 %v4018, %v4209
      %v4307 = vadd.f32 %v4019, %v4211
      %v4308 = vld [vmem:[#allocation3 + $0x9] sm:$0xff]
      %v4309 = vld [vmem:[#allocation3 + $0x11] sm:$0xff]
      %v4310 = vld [vmem:[#allocation3 + $0x19] sm:$0xff]
      %v4311 = vld [vmem:[#allocation3 + $0x21] sm:$0xff]
      %v4312 = vld [vmem:[#allocation3 + $0x29] sm:$0xff]
      %v4313 = vld [vmem:[#allocation3 + $0x31] sm:$0xff]
      %v4314 = vld [vmem:[#allocation3 + $0x39] sm:$0xff]
      %v4315 = vld [vmem:[#allocation3 + $0x41] sm:$0xff]
      %v4316 = vld [vmem:[#allocation3 + $0x49] sm:$0xff]
      %v4317 = vld [vmem:[#allocation3 + $0x51] sm:$0xff]
      %v4318 = vld [vmem:[#allocation3 + $0x59] sm:$0xff]
      %v4319 = vld [vmem:[#allocation3 + $0x61] sm:$0xff]
      %v4320 = vld [vmem:[#allocation3 + $0x69] sm:$0xff]
      %v4321 = vld [vmem:[#allocation3 + $0x71] sm:$0xff]
      %v4322 = vld [vmem:[#allocation3 + $0x79] sm:$0xff]
      %v4323 = vld [vmem:[#allocation3 + $0x81] sm:$0xff]
      %v4324 = vld [vmem:[#allocation3 + $0x89] sm:$0xff]
      %v4325 = vld [vmem:[#allocation3 + $0x91] sm:$0xff]
      %v4326 = vld [vmem:[#allocation3 + $0x99] sm:$0xff]
      %v4327 = vld [vmem:[#allocation3 + $0xa1] sm:$0xff]
      %v4328 = vld [vmem:[#allocation3 + $0xa9] sm:$0xff]
      %v4329 = vld [vmem:[#allocation3 + $0xb1] sm:$0xff]
      %v4330 = vld [vmem:[#allocation3 + $0xb9] sm:$0xff]
      %v4331 = vld [vmem:[#allocation3 + $0xc1] sm:$0xff]
      %v4332 = vld [vmem:[#allocation3 + $0xc9] sm:$0xff]
      %v4333 = vld [vmem:[#allocation3 + $0xd1] sm:$0xff]
      %v4334 = vld [vmem:[#allocation3 + $0xd9] sm:$0xff]
      %v4335 = vld [vmem:[#allocation3 + $0xe1] sm:$0xff]
      %v4336 = vld [vmem:[#allocation3 + $0xe9] sm:$0xff]
      %v4337 = vld [vmem:[#allocation3 + $0xf1] sm:$0xff]
      %v4338 = vld [vmem:[#allocation3 + $0xf9] sm:$0xff]
      %v4339 = vld [vmem:[#allocation3 + $0x101] sm:$0xff]
      %v4340 = vld [vmem:[#allocation3 + $0x109] sm:$0xff]
      %v4341 = vld [vmem:[#allocation3 + $0x111] sm:$0xff]
      %v4342 = vld [vmem:[#allocation3 + $0x119] sm:$0xff]
      %v4343 = vld [vmem:[#allocation3 + $0x121] sm:$0xff]
      %v4344 = vld [vmem:[#allocation3 + $0x129] sm:$0xff]
      %v4345 = vld [vmem:[#allocation3 + $0x131] sm:$0xff]
      %v4346 = vld [vmem:[#allocation3 + $0x139] sm:$0xff]
      %v4347 = vld [vmem:[#allocation3 + $0x141] sm:$0xff]
      %v4348 = vld [vmem:[#allocation3 + $0x149] sm:$0xff]
      %v4349 = vld [vmem:[#allocation3 + $0x151] sm:$0xff]
      %v4350 = vld [vmem:[#allocation3 + $0x159] sm:$0xff]
      %v4351 = vld [vmem:[#allocation3 + $0x161] sm:$0xff]
      %v4352 = vld [vmem:[#allocation3 + $0x169] sm:$0xff]
      %v4353 = vld [vmem:[#allocation3 + $0x171] sm:$0xff]
      %v4354 = vld [vmem:[#allocation3 + $0x179] sm:$0xff]
      %v4355 = vld [vmem:[#allocation3 + $0x181] sm:$0xff]
      %4404 = vrot.lane.b32.xlu0 %v4308, 124
      %v4405 = vpop.permute.xlu0 %4404
      %4406 = vrot.lane.b32.xlu0 %v4309, 124
      %v4407 = vpop.permute.xlu0 %4406
      %4408 = vrot.lane.b32.xlu0 %v4310, 124
      %v4409 = vpop.permute.xlu0 %4408
      %4410 = vrot.lane.b32.xlu0 %v4311, 124
      %v4411 = vpop.permute.xlu0 %4410
      %4412 = vrot.lane.b32.xlu0 %v4312, 124
      %v4413 = vpop.permute.xlu0 %4412
      %4414 = vrot.lane.b32.xlu0 %v4313, 124
      %v4415 = vpop.permute.xlu0 %4414
      %4416 = vrot.lane.b32.xlu0 %v4314, 124
      %v4417 = vpop.permute.xlu0 %4416
      %4418 = vrot.lane.b32.xlu0 %v4315, 124
      %v4419 = vpop.permute.xlu0 %4418
      %4420 = vrot.lane.b32.xlu0 %v4316, 124
      %v4421 = vpop.permute.xlu0 %4420
      %4422 = vrot.lane.b32.xlu0 %v4317, 124
      %v4423 = vpop.permute.xlu0 %4422
      %4424 = vrot.lane.b32.xlu0 %v4318, 124
      %v4425 = vpop.permute.xlu0 %4424
      %4426 = vrot.lane.b32.xlu0 %v4319, 124
      %v4427 = vpop.permute.xlu0 %4426
      %4428 = vrot.lane.b32.xlu0 %v4320, 124
      %v4429 = vpop.permute.xlu0 %4428
      %4430 = vrot.lane.b32.xlu0 %v4321, 124
      %v4431 = vpop.permute.xlu0 %4430
      %4432 = vrot.lane.b32.xlu0 %v4322, 124
      %v4433 = vpop.permute.xlu0 %4432
      %4434 = vrot.lane.b32.xlu0 %v4323, 124
      %v4435 = vpop.permute.xlu0 %4434
      %4436 = vrot.lane.b32.xlu0 %v4324, 124
      %v4437 = vpop.permute.xlu0 %4436
      %4438 = vrot.lane.b32.xlu0 %v4325, 124
      %v4439 = vpop.permute.xlu0 %4438
      %4440 = vrot.lane.b32.xlu0 %v4326, 124
      %v4441 = vpop.permute.xlu0 %4440
      %4442 = vrot.lane.b32.xlu0 %v4327, 124
      %v4443 = vpop.permute.xlu0 %4442
      %4444 = vrot.lane.b32.xlu0 %v4328, 124
      %v4445 = vpop.permute.xlu0 %4444
      %4446 = vrot.lane.b32.xlu0 %v4329, 124
      %v4447 = vpop.permute.xlu0 %4446
      %4448 = vrot.lane.b32.xlu0 %v4330, 124
      %v4449 = vpop.permute.xlu0 %4448
      %4450 = vrot.lane.b32.xlu0 %v4331, 124
      %v4451 = vpop.permute.xlu0 %4450
      %4452 = vrot.lane.b32.xlu0 %v4332, 124
      %v4453 = vpop.permute.xlu0 %4452
      %4454 = vrot.lane.b32.xlu0 %v4333, 124
      %v4455 = vpop.permute.xlu0 %4454
      %4456 = vrot.lane.b32.xlu0 %v4334, 124
      %v4457 = vpop.permute.xlu0 %4456
      %4458 = vrot.lane.b32.xlu0 %v4335, 124
      %v4459 = vpop.permute.xlu0 %4458
      %4460 = vrot.lane.b32.xlu0 %v4336, 124
      %v4461 = vpop.permute.xlu0 %4460
      %4462 = vrot.lane.b32.xlu0 %v4337, 124
      %v4463 = vpop.permute.xlu0 %4462
      %4464 = vrot.lane.b32.xlu0 %v4338, 124
      %v4465 = vpop.permute.xlu0 %4464
      %4466 = vrot.lane.b32.xlu0 %v4339, 124
      %v4467 = vpop.permute.xlu0 %4466
      %4468 = vrot.lane.b32.xlu0 %v4340, 124
      %v4469 = vpop.permute.xlu0 %4468
      %4470 = vrot.lane.b32.xlu0 %v4341, 124
      %v4471 = vpop.permute.xlu0 %4470
      %4472 = vrot.lane.b32.xlu0 %v4342, 124
      %v4473 = vpop.permute.xlu0 %4472
      %4474 = vrot.lane.b32.xlu0 %v4343, 124
      %v4475 = vpop.permute.xlu0 %4474
      %4476 = vrot.lane.b32.xlu0 %v4344, 124
      %v4477 = vpop.permute.xlu0 %4476
      %4478 = vrot.lane.b32.xlu0 %v4345, 124
      %v4479 = vpop.permute.xlu0 %4478
      %4480 = vrot.lane.b32.xlu0 %v4346, 124
      %v4481 = vpop.permute.xlu0 %4480
      %4482 = vrot.lane.b32.xlu0 %v4347, 124
      %v4483 = vpop.permute.xlu0 %4482
      %4484 = vrot.lane.b32.xlu0 %v4348, 124
      %v4485 = vpop.permute.xlu0 %4484
      %4486 = vrot.lane.b32.xlu0 %v4349, 124
      %v4487 = vpop.permute.xlu0 %4486
      %4488 = vrot.lane.b32.xlu0 %v4350, 124
      %v4489 = vpop.permute.xlu0 %4488
      %4490 = vrot.lane.b32.xlu0 %v4351, 124
      %v4491 = vpop.permute.xlu0 %4490
      %4492 = vrot.lane.b32.xlu0 %v4352, 124
      %v4493 = vpop.permute.xlu0 %4492
      %4494 = vrot.lane.b32.xlu0 %v4353, 124
      %v4495 = vpop.permute.xlu0 %4494
      %4496 = vrot.lane.b32.xlu0 %v4354, 124
      %v4497 = vpop.permute.xlu0 %4496
      %4498 = vrot.lane.b32.xlu0 %v4355, 124
      %v4499 = vpop.permute.xlu0 %4498
      %v4548 = vadd.f32 %v4260, %v4405
      %v4549 = vadd.f32 %v4261, %v4407
      %v4550 = vadd.f32 %v4262, %v4409
      %v4551 = vadd.f32 %v4263, %v4411
      %v4552 = vadd.f32 %v4264, %v4413
      %v4553 = vadd.f32 %v4265, %v4415
      %v4554 = vadd.f32 %v4266, %v4417
      %v4555 = vadd.f32 %v4267, %v4419
      %v4556 = vadd.f32 %v4268, %v4421
      %v4557 = vadd.f32 %v4269, %v4423
      %v4558 = vadd.f32 %v4270, %v4425
      %v4559 = vadd.f32 %v4271, %v4427
      %v4560 = vadd.f32 %v4272, %v4429
      %v4561 = vadd.f32 %v4273, %v4431
      %v4562 = vadd.f32 %v4274, %v4433
      %v4563 = vadd.f32 %v4275, %v4435
      %v4564 = vadd.f32 %v4276, %v4437
      %v4565 = vadd.f32 %v4277, %v4439
      %v4566 = vadd.f32 %v4278, %v4441
      %v4567 = vadd.f32 %v4279, %v4443
      %v4568 = vadd.f32 %v4280, %v4445
      %v4569 = vadd.f32 %v4281, %v4447
      %v4570 = vadd.f32 %v4282, %v4449
      %v4571 = vadd.f32 %v4283, %v4451
      %v4572 = vadd.f32 %v4284, %v4453
      %v4573 = vadd.f32 %v4285, %v4455
      %v4574 = vadd.f32 %v4286, %v4457
      %v4575 = vadd.f32 %v4287, %v4459
      %v4576 = vadd.f32 %v4288, %v4461
      %v4577 = vadd.f32 %v4289, %v4463
      %v4578 = vadd.f32 %v4290, %v4465
      %v4579 = vadd.f32 %v4291, %v4467
      %v4580 = vadd.f32 %v4292, %v4469
      %v4581 = vadd.f32 %v4293, %v4471
      %v4582 = vadd.f32 %v4294, %v4473
      %v4583 = vadd.f32 %v4295, %v4475
      %v4584 = vadd.f32 %v4296, %v4477
      %v4585 = vadd.f32 %v4297, %v4479
      %v4586 = vadd.f32 %v4298, %v4481
      %v4587 = vadd.f32 %v4299, %v4483
      %v4588 = vadd.f32 %v4300, %v4485
      %v4589 = vadd.f32 %v4301, %v4487
      %v4590 = vadd.f32 %v4302, %v4489
      %v4591 = vadd.f32 %v4303, %v4491
      %v4592 = vadd.f32 %v4304, %v4493
      %v4593 = vadd.f32 %v4305, %v4495
      %v4594 = vadd.f32 %v4306, %v4497
      %v4595 = vadd.f32 %v4307, %v4499
      %v4596 = vld [vmem:[%s4] sm:$0x1]
      %v4598 = vlaneseq
      %v4599 = vshrl.u32 %v4598, 7
      %v4600 = vsub.s32 0, %v4599
      %v4601 = vrot.slane %v4596, %v4600
      %4602 = vrot.lane.b32.xlu0 %v4601, 4
      %v4603 = vpop.permute.xlu0 %4602
      %v4605 = vadd.f32 %v4548, %v4603
      %v4606 = vadd.f32 %v4549, %v4603
      %v4607 = vadd.f32 %v4550, %v4603
      %v4608 = vadd.f32 %v4551, %v4603
      %v4609 = vadd.f32 %v4552, %v4603
      %v4610 = vadd.f32 %v4553, %v4603
      %v4611 = vadd.f32 %v4554, %v4603
      %v4612 = vadd.f32 %v4555, %v4603
      %v4613 = vadd.f32 %v4556, %v4603
      %v4614 = vadd.f32 %v4557, %v4603
      %v4615 = vadd.f32 %v4558, %v4603
      %v4616 = vadd.f32 %v4559, %v4603
      %v4617 = vadd.f32 %v4560, %v4603
      %v4618 = vadd.f32 %v4561, %v4603
      %v4619 = vadd.f32 %v4562, %v4603
      %v4620 = vadd.f32 %v4563, %v4603
      %v4621 = vadd.f32 %v4564, %v4603
      %v4622 = vadd.f32 %v4565, %v4603
      %v4623 = vadd.f32 %v4566, %v4603
      %v4624 = vadd.f32 %v4567, %v4603
      %v4625 = vadd.f32 %v4568, %v4603
      %v4626 = vadd.f32 %v4569, %v4603
      %v4627 = vadd.f32 %v4570, %v4603
      %v4628 = vadd.f32 %v4571, %v4603
      %v4629 = vadd.f32 %v4572, %v4603
      %v4630 = vadd.f32 %v4573, %v4603
      %v4631 = vadd.f32 %v4574, %v4603
      %v4632 = vadd.f32 %v4575, %v4603
      %v4633 = vadd.f32 %v4576, %v4603
      %v4634 = vadd.f32 %v4577, %v4603
      %v4635 = vadd.f32 %v4578, %v4603
      %v4636 = vadd.f32 %v4579, %v4603
      %v4637 = vadd.f32 %v4580, %v4603
      %v4638 = vadd.f32 %v4581, %v4603
      %v4639 = vadd.f32 %v4582, %v4603
      %v4640 = vadd.f32 %v4583, %v4603
      %v4641 = vadd.f32 %v4584, %v4603
      %v4642 = vadd.f32 %v4585, %v4603
      %v4643 = vadd.f32 %v4586, %v4603
      %v4644 = vadd.f32 %v4587, %v4603
      %v4645 = vadd.f32 %v4588, %v4603
      %v4646 = vadd.f32 %v4589, %v4603
      %v4647 = vadd.f32 %v4590, %v4603
      %v4648 = vadd.f32 %v4591, %v4603
      %v4649 = vadd.f32 %v4592, %v4603
      %v4650 = vadd.f32 %v4593, %v4603
      %v4651 = vadd.f32 %v4594, %v4603
      %v4652 = vadd.f32 %v4595, %v4603
      %v4653 = vld [vmem:[%s246] sm:$0xff]
      %v4654 = vld [vmem:[%s246 + $0x8] sm:$0xff]
      %v4655 = vld [vmem:[%s246 + $0x10] sm:$0xff]
      %v4656 = vld [vmem:[%s246 + $0x18] sm:$0xff]
      %v4657 = vld [vmem:[%s246 + $0x20] sm:$0xff]
      %v4658 = vld [vmem:[%s246 + $0x28] sm:$0xff]
      %v4659 = vld [vmem:[%s246 + $0x30] sm:$0xff]
      %v4660 = vld [vmem:[%s246 + $0x38] sm:$0xff]
      %v4661 = vld [vmem:[%s246 + $0x40] sm:$0xff]
      %v4662 = vld [vmem:[%s246 + $0x48] sm:$0xff]
      %v4663 = vld [vmem:[%s246 + $0x50] sm:$0xff]
      %v4664 = vld [vmem:[%s246 + $0x58] sm:$0xff]
      %v4665 = vld [vmem:[%s246 + $0x60] sm:$0xff]
      %v4666 = vld [vmem:[%s246 + $0x68] sm:$0xff]
      %v4667 = vld [vmem:[%s246 + $0x70] sm:$0xff]
      %v4668 = vld [vmem:[%s246 + $0x78] sm:$0xff]
      %v4669 = vld [vmem:[%s246 + $0x80] sm:$0xff]
      %v4670 = vld [vmem:[%s246 + $0x88] sm:$0xff]
      %v4671 = vld [vmem:[%s246 + $0x90] sm:$0xff]
      %v4672 = vld [vmem:[%s246 + $0x98] sm:$0xff]
      %v4673 = vld [vmem:[%s246 + $0xa0] sm:$0xff]
      %v4674 = vld [vmem:[%s246 + $0xa8] sm:$0xff]
      %v4675 = vld [vmem:[%s246 + $0xb0] sm:$0xff]
      %v4676 = vld [vmem:[%s246 + $0xb8] sm:$0xff]
      %v4677 = vld [vmem:[%s246 + $0xc0] sm:$0xff]
      %v4678 = vld [vmem:[%s246 + $0xc8] sm:$0xff]
      %v4679 = vld [vmem:[%s246 + $0xd0] sm:$0xff]
      %v4680 = vld [vmem:[%s246 + $0xd8] sm:$0xff]
      %v4681 = vld [vmem:[%s246 + $0xe0] sm:$0xff]
      %v4682 = vld [vmem:[%s246 + $0xe8] sm:$0xff]
      %v4683 = vld [vmem:[%s246 + $0xf0] sm:$0xff]
      %v4684 = vld [vmem:[%s246 + $0xf8] sm:$0xff]
      %v4685 = vld [vmem:[%s246 + $0x100] sm:$0xff]
      %v4686 = vld [vmem:[%s246 + $0x108] sm:$0xff]
      %v4687 = vld [vmem:[%s246 + $0x110] sm:$0xff]
      %v4688 = vld [vmem:[%s246 + $0x118] sm:$0xff]
      %v4689 = vld [vmem:[%s246 + $0x120] sm:$0xff]
      %v4690 = vld [vmem:[%s246 + $0x128] sm:$0xff]
      %v4691 = vld [vmem:[%s246 + $0x130] sm:$0xff]
      %v4692 = vld [vmem:[%s246 + $0x138] sm:$0xff]
      %v4693 = vld [vmem:[%s246 + $0x140] sm:$0xff]
      %v4694 = vld [vmem:[%s246 + $0x148] sm:$0xff]
      %v4695 = vld [vmem:[%s246 + $0x150] sm:$0xff]
      %v4696 = vld [vmem:[%s246 + $0x158] sm:$0xff]
      %v4697 = vld [vmem:[%s246 + $0x160] sm:$0xff]
      %v4698 = vld [vmem:[%s246 + $0x168] sm:$0xff]
      %v4699 = vld [vmem:[%s246 + $0x170] sm:$0xff]
      %v4700 = vld [vmem:[%s246 + $0x178] sm:$0xff]
      %4749 = vrot.lane.b32.xlu0 %v4653, 4
      %v4750 = vpop.permute.xlu0 %4749
      %4751 = vrot.lane.b32.xlu0 %v4654, 4
      %v4752 = vpop.permute.xlu0 %4751
      %4753 = vrot.lane.b32.xlu0 %v4655, 4
      %v4754 = vpop.permute.xlu0 %4753
      %4755 = vrot.lane.b32.xlu0 %v4656, 4
      %v4756 = vpop.permute.xlu0 %4755
      %4757 = vrot.lane.b32.xlu0 %v4657, 4
      %v4758 = vpop.permute.xlu0 %4757
      %4759 = vrot.lane.b32.xlu0 %v4658, 4
      %v4760 = vpop.permute.xlu0 %4759
      %4761 = vrot.lane.b32.xlu0 %v4659, 4
      %v4762 = vpop.permute.xlu0 %4761
      %4763 = vrot.lane.b32.xlu0 %v4660, 4
      %v4764 = vpop.permute.xlu0 %4763
      %4765 = vrot.lane.b32.xlu0 %v4661, 4
      %v4766 = vpop.permute.xlu0 %4765
      %4767 = vrot.lane.b32.xlu0 %v4662, 4
      %v4768 = vpop.permute.xlu0 %4767
      %4769 = vrot.lane.b32.xlu0 %v4663, 4
      %v4770 = vpop.permute.xlu0 %4769
      %4771 = vrot.lane.b32.xlu0 %v4664, 4
      %v4772 = vpop.permute.xlu0 %4771
      %4773 = vrot.lane.b32.xlu0 %v4665, 4
      %v4774 = vpop.permute.xlu0 %4773
      %4775 = vrot.lane.b32.xlu0 %v4666, 4
      %v4776 = vpop.permute.xlu0 %4775
      %4777 = vrot.lane.b32.xlu0 %v4667, 4
      %v4778 = vpop.permute.xlu0 %4777
      %4779 = vrot.lane.b32.xlu0 %v4668, 4
      %v4780 = vpop.permute.xlu0 %4779
      %4781 = vrot.lane.b32.xlu0 %v4669, 4
      %v4782 = vpop.permute.xlu0 %4781
      %4783 = vrot.lane.b32.xlu0 %v4670, 4
      %v4784 = vpop.permute.xlu0 %4783
      %4785 = vrot.lane.b32.xlu0 %v4671, 4
      %v4786 = vpop.permute.xlu0 %4785
      %4787 = vrot.lane.b32.xlu0 %v4672, 4
      %v4788 = vpop.permute.xlu0 %4787
      %4789 = vrot.lane.b32.xlu0 %v4673, 4
      %v4790 = vpop.permute.xlu0 %4789
      %4791 = vrot.lane.b32.xlu0 %v4674, 4
      %v4792 = vpop.permute.xlu0 %4791
      %4793 = vrot.lane.b32.xlu0 %v4675, 4
      %v4794 = vpop.permute.xlu0 %4793
      %4795 = vrot.lane.b32.xlu0 %v4676, 4
      %v4796 = vpop.permute.xlu0 %4795
      %4797 = vrot.lane.b32.xlu0 %v4677, 4
      %v4798 = vpop.permute.xlu0 %4797
      %4799 = vrot.lane.b32.xlu0 %v4678, 4
      %v4800 = vpop.permute.xlu0 %4799
      %4801 = vrot.lane.b32.xlu0 %v4679, 4
      %v4802 = vpop.permute.xlu0 %4801
      %4803 = vrot.lane.b32.xlu0 %v4680, 4
      %v4804 = vpop.permute.xlu0 %4803
      %4805 = vrot.lane.b32.xlu0 %v4681, 4
      %v4806 = vpop.permute.xlu0 %4805
      %4807 = vrot.lane.b32.xlu0 %v4682, 4
      %v4808 = vpop.permute.xlu0 %4807
      %4809 = vrot.lane.b32.xlu0 %v4683, 4
      %v4810 = vpop.permute.xlu0 %4809
      %4811 = vrot.lane.b32.xlu0 %v4684, 4
      %v4812 = vpop.permute.xlu0 %4811
      %4813 = vrot.lane.b32.xlu0 %v4685, 4
      %v4814 = vpop.permute.xlu0 %4813
      %4815 = vrot.lane.b32.xlu0 %v4686, 4
      %v4816 = vpop.permute.xlu0 %4815
      %4817 = vrot.lane.b32.xlu0 %v4687, 4
      %v4818 = vpop.permute.xlu0 %4817
      %4819 = vrot.lane.b32.xlu0 %v4688, 4
      %v4820 = vpop.permute.xlu0 %4819
      %4821 = vrot.lane.b32.xlu0 %v4689, 4
      %v4822 = vpop.permute.xlu0 %4821
      %4823 = vrot.lane.b32.xlu0 %v4690, 4
      %v4824 = vpop.permute.xlu0 %4823
      %4825 = vrot.lane.b32.xlu0 %v4691, 4
      %v4826 = vpop.permute.xlu0 %4825
      %4827 = vrot.lane.b32.xlu0 %v4692, 4
      %v4828 = vpop.permute.xlu0 %4827
      %4829 = vrot.lane.b32.xlu0 %v4693, 4
      %v4830 = vpop.permute.xlu0 %4829
      %4831 = vrot.lane.b32.xlu0 %v4694, 4
      %v4832 = vpop.permute.xlu0 %4831
      %4833 = vrot.lane.b32.xlu0 %v4695, 4
      %v4834 = vpop.permute.xlu0 %4833
      %4835 = vrot.lane.b32.xlu0 %v4696, 4
      %v4836 = vpop.permute.xlu0 %4835
      %4837 = vrot.lane.b32.xlu0 %v4697, 4
      %v4838 = vpop.permute.xlu0 %4837
      %4839 = vrot.lane.b32.xlu0 %v4698, 4
      %v4840 = vpop.permute.xlu0 %4839
      %4841 = vrot.lane.b32.xlu0 %v4699, 4
      %v4842 = vpop.permute.xlu0 %4841
      %4843 = vrot.lane.b32.xlu0 %v4700, 4
      %v4844 = vpop.permute.xlu0 %4843
      %v4893 = vadd.f32 %v4605, %v4750
      %v4894 = vadd.f32 %v4606, %v4752
      %v4895 = vadd.f32 %v4607, %v4754
      %v4896 = vadd.f32 %v4608, %v4756
      %v4897 = vadd.f32 %v4609, %v4758
      %v4898 = vadd.f32 %v4610, %v4760
      %v4899 = vadd.f32 %v4611, %v4762
      %v4900 = vadd.f32 %v4612, %v4764
      %v4901 = vadd.f32 %v4613, %v4766
      %v4902 = vadd.f32 %v4614, %v4768
      %v4903 = vadd.f32 %v4615, %v4770
      %v4904 = vadd.f32 %v4616, %v4772
      %v4905 = vadd.f32 %v4617, %v4774
      %v4906 = vadd.f32 %v4618, %v4776
      %v4907 = vadd.f32 %v4619, %v4778
      %v4908 = vadd.f32 %v4620, %v4780
      %v4909 = vadd.f32 %v4621, %v4782
      %v4910 = vadd.f32 %v4622, %v4784
      %v4911 = vadd.f32 %v4623, %v4786
      %v4912 = vadd.f32 %v4624, %v4788
      %v4913 = vadd.f32 %v4625, %v4790
      %v4914 = vadd.f32 %v4626, %v4792
      %v4915 = vadd.f32 %v4627, %v4794
      %v4916 = vadd.f32 %v4628, %v4796
      %v4917 = vadd.f32 %v4629, %v4798
      %v4918 = vadd.f32 %v4630, %v4800
      %v4919 = vadd.f32 %v4631, %v4802
      %v4920 = vadd.f32 %v4632, %v4804
      %v4921 = vadd.f32 %v4633, %v4806
      %v4922 = vadd.f32 %v4634, %v4808
      %v4923 = vadd.f32 %v4635, %v4810
      %v4924 = vadd.f32 %v4636, %v4812
      %v4925 = vadd.f32 %v4637, %v4814
      %v4926 = vadd.f32 %v4638, %v4816
      %v4927 = vadd.f32 %v4639, %v4818
      %v4928 = vadd.f32 %v4640, %v4820
      %v4929 = vadd.f32 %v4641, %v4822
      %v4930 = vadd.f32 %v4642, %v4824
      %v4931 = vadd.f32 %v4643, %v4826
      %v4932 = vadd.f32 %v4644, %v4828
      %v4933 = vadd.f32 %v4645, %v4830
      %v4934 = vadd.f32 %v4646, %v4832
      %v4935 = vadd.f32 %v4647, %v4834
      %v4936 = vadd.f32 %v4648, %v4836
      %v4937 = vadd.f32 %v4649, %v4838
      %v4938 = vadd.f32 %v4650, %v4840
      %v4939 = vadd.f32 %v4651, %v4842
      %v4940 = vadd.f32 %v4652, %v4844
      %v4941 = vmax.f32 %v4893, 0.0
      %v4942 = vmax.f32 %v4894, 0.0
      %v4943 = vmax.f32 %v4895, 0.0
      %v4944 = vmax.f32 %v4896, 0.0
      %v4945 = vmax.f32 %v4897, 0.0
      %v4946 = vmax.f32 %v4898, 0.0
      %v4947 = vmax.f32 %v4899, 0.0
      %v4948 = vmax.f32 %v4900, 0.0
      %v4949 = vmax.f32 %v4901, 0.0
      %v4950 = vmax.f32 %v4902, 0.0
      %v4951 = vmax.f32 %v4903, 0.0
      %v4952 = vmax.f32 %v4904, 0.0
      %v4953 = vmax.f32 %v4905, 0.0
      %v4954 = vmax.f32 %v4906, 0.0
      %v4955 = vmax.f32 %v4907, 0.0
      %v4956 = vmax.f32 %v4908, 0.0
      %v4957 = vmax.f32 %v4909, 0.0
      %v4958 = vmax.f32 %v4910, 0.0
      %v4959 = vmax.f32 %v4911, 0.0
      %v4960 = vmax.f32 %v4912, 0.0
      %v4961 = vmax.f32 %v4913, 0.0
      %v4962 = vmax.f32 %v4914, 0.0
      %v4963 = vmax.f32 %v4915, 0.0
      %v4964 = vmax.f32 %v4916, 0.0
      %v4965 = vmax.f32 %v4917, 0.0
      %v4966 = vmax.f32 %v4918, 0.0
      %v4967 = vmax.f32 %v4919, 0.0
      %v4968 = vmax.f32 %v4920, 0.0
      %v4969 = vmax.f32 %v4921, 0.0
      %v4970 = vmax.f32 %v4922, 0.0
      %v4971 = vmax.f32 %v4923, 0.0
      %v4972 = vmax.f32 %v4924, 0.0
      %v4973 = vmax.f32 %v4925, 0.0
      %v4974 = vmax.f32 %v4926, 0.0
      %v4975 = vmax.f32 %v4927, 0.0
      %v4976 = vmax.f32 %v4928, 0.0
      %v4977 = vmax.f32 %v4929, 0.0
      %v4978 = vmax.f32 %v4930, 0.0
      %v4979 = vmax.f32 %v4931, 0.0
      %v4980 = vmax.f32 %v4932, 0.0
      %v4981 = vmax.f32 %v4933, 0.0
      %v4982 = vmax.f32 %v4934, 0.0
      %v4983 = vmax.f32 %v4935, 0.0
      %v4984 = vmax.f32 %v4936, 0.0
      %v4985 = vmax.f32 %v4937, 0.0
      %v4986 = vmax.f32 %v4938, 0.0
      %v4987 = vmax.f32 %v4939, 0.0
      %v4988 = vmax.f32 %v4940, 0.0
      %5037 = vrot.lane.b32.xlu0 %v4941, 124
      %v5038 = vpop.permute.xlu0 %5037
      %5039 = vrot.lane.b32.xlu0 %v4942, 124
      %v5040 = vpop.permute.xlu0 %5039
      %5041 = vrot.lane.b32.xlu0 %v4943, 124
      %v5042 = vpop.permute.xlu0 %5041
      %5043 = vrot.lane.b32.xlu0 %v4944, 124
      %v5044 = vpop.permute.xlu0 %5043
      %5045 = vrot.lane.b32.xlu0 %v4945, 124
      %v5046 = vpop.permute.xlu0 %5045
      %5047 = vrot.lane.b32.xlu0 %v4946, 124
      %v5048 = vpop.permute.xlu0 %5047
      %5049 = vrot.lane.b32.xlu0 %v4947, 124
      %v5050 = vpop.permute.xlu0 %5049
      %5051 = vrot.lane.b32.xlu0 %v4948, 124
      %v5052 = vpop.permute.xlu0 %5051
      %5053 = vrot.lane.b32.xlu0 %v4949, 124
      %v5054 = vpop.permute.xlu0 %5053
      %5055 = vrot.lane.b32.xlu0 %v4950, 124
      %v5056 = vpop.permute.xlu0 %5055
      %5057 = vrot.lane.b32.xlu0 %v4951, 124
      %v5058 = vpop.permute.xlu0 %5057
      %5059 = vrot.lane.b32.xlu0 %v4952, 124
      %v5060 = vpop.permute.xlu0 %5059
      %5061 = vrot.lane.b32.xlu0 %v4953, 124
      %v5062 = vpop.permute.xlu0 %5061
      %5063 = vrot.lane.b32.xlu0 %v4954, 124
      %v5064 = vpop.permute.xlu0 %5063
      %5065 = vrot.lane.b32.xlu0 %v4955, 124
      %v5066 = vpop.permute.xlu0 %5065
      %5067 = vrot.lane.b32.xlu0 %v4956, 124
      %v5068 = vpop.permute.xlu0 %5067
      %5069 = vrot.lane.b32.xlu0 %v4957, 124
      %v5070 = vpop.permute.xlu0 %5069
      %5071 = vrot.lane.b32.xlu0 %v4958, 124
      %v5072 = vpop.permute.xlu0 %5071
      %5073 = vrot.lane.b32.xlu0 %v4959, 124
      %v5074 = vpop.permute.xlu0 %5073
      %5075 = vrot.lane.b32.xlu0 %v4960, 124
      %v5076 = vpop.permute.xlu0 %5075
      %5077 = vrot.lane.b32.xlu0 %v4961, 124
      %v5078 = vpop.permute.xlu0 %5077
      %5079 = vrot.lane.b32.xlu0 %v4962, 124
      %v5080 = vpop.permute.xlu0 %5079
      %5081 = vrot.lane.b32.xlu0 %v4963, 124
      %v5082 = vpop.permute.xlu0 %5081
      %5083 = vrot.lane.b32.xlu0 %v4964, 124
      %v5084 = vpop.permute.xlu0 %5083
      %5085 = vrot.lane.b32.xlu0 %v4965, 124
      %v5086 = vpop.permute.xlu0 %5085
      %5087 = vrot.lane.b32.xlu0 %v4966, 124
      %v5088 = vpop.permute.xlu0 %5087
      %5089 = vrot.lane.b32.xlu0 %v4967, 124
      %v5090 = vpop.permute.xlu0 %5089
      %5091 = vrot.lane.b32.xlu0 %v4968, 124
      %v5092 = vpop.permute.xlu0 %5091
      %5093 = vrot.lane.b32.xlu0 %v4969, 124
      %v5094 = vpop.permute.xlu0 %5093
      %5095 = vrot.lane.b32.xlu0 %v4970, 124
      %v5096 = vpop.permute.xlu0 %5095
      %5097 = vrot.lane.b32.xlu0 %v4971, 124
      %v5098 = vpop.permute.xlu0 %5097
      %5099 = vrot.lane.b32.xlu0 %v4972, 124
      %v5100 = vpop.permute.xlu0 %5099
      %5101 = vrot.lane.b32.xlu0 %v4973, 124
      %v5102 = vpop.permute.xlu0 %5101
      %5103 = vrot.lane.b32.xlu0 %v4974, 124
      %v5104 = vpop.permute.xlu0 %5103
      %5105 = vrot.lane.b32.xlu0 %v4975, 124
      %v5106 = vpop.permute.xlu0 %5105
      %5107 = vrot.lane.b32.xlu0 %v4976, 124
      %v5108 = vpop.permute.xlu0 %5107
      %5109 = vrot.lane.b32.xlu0 %v4977, 124
      %v5110 = vpop.permute.xlu0 %5109
      %5111 = vrot.lane.b32.xlu0 %v4978, 124
      %v5112 = vpop.permute.xlu0 %5111
      %5113 = vrot.lane.b32.xlu0 %v4979, 124
      %v5114 = vpop.permute.xlu0 %5113
      %5115 = vrot.lane.b32.xlu0 %v4980, 124
      %v5116 = vpop.permute.xlu0 %5115
      %5117 = vrot.lane.b32.xlu0 %v4981, 124
      %v5118 = vpop.permute.xlu0 %5117
      %5119 = vrot.lane.b32.xlu0 %v4982, 124
      %v5120 = vpop.permute.xlu0 %5119
      %5121 = vrot.lane.b32.xlu0 %v4983, 124
      %v5122 = vpop.permute.xlu0 %5121
      %5123 = vrot.lane.b32.xlu0 %v4984, 124
      %v5124 = vpop.permute.xlu0 %5123
      %5125 = vrot.lane.b32.xlu0 %v4985, 124
      %v5126 = vpop.permute.xlu0 %5125
      %5127 = vrot.lane.b32.xlu0 %v4986, 124
      %v5128 = vpop.permute.xlu0 %5127
      %5129 = vrot.lane.b32.xlu0 %v4987, 124
      %v5130 = vpop.permute.xlu0 %5129
      %5131 = vrot.lane.b32.xlu0 %v4988, 124
      %v5132 = vpop.permute.xlu0 %5131
      %5181 = vst.msk [vmem:[%s251] sm:$0xff] %vm255, %v5038
      %5182 = vst.msk [vmem:[%s251 + $0x8] sm:$0xff] %vm255, %v5040
      %5183 = vst.msk [vmem:[%s251 + $0x10] sm:$0xff] %vm255, %v5042
      %5184 = vst.msk [vmem:[%s251 + $0x18] sm:$0xff] %vm255, %v5044
      %5185 = vst.msk [vmem:[%s251 + $0x20] sm:$0xff] %vm255, %v5046
      %5186 = vst.msk [vmem:[%s251 + $0x28] sm:$0xff] %vm255, %v5048
      %5187 = vst.msk [vmem:[%s251 + $0x30] sm:$0xff] %vm255, %v5050
      %5188 = vst.msk [vmem:[%s251 + $0x38] sm:$0xff] %vm255, %v5052
      %5189 = vst.msk [vmem:[%s251 + $0x40] sm:$0xff] %vm255, %v5054
      %5190 = vst.msk [vmem:[%s251 + $0x48] sm:$0xff] %vm255, %v5056
      %5191 = vst.msk [vmem:[%s251 + $0x50] sm:$0xff] %vm255, %v5058
      %5192 = vst.msk [vmem:[%s251 + $0x58] sm:$0xff] %vm255, %v5060
      %5193 = vst.msk [vmem:[%s251 + $0x60] sm:$0xff] %vm255, %v5062
      %5194 = vst.msk [vmem:[%s251 + $0x68] sm:$0xff] %vm255, %v5064
      %5195 = vst.msk [vmem:[%s251 + $0x70] sm:$0xff] %vm255, %v5066
      %5196 = vst.msk [vmem:[%s251 + $0x78] sm:$0xff] %vm255, %v5068
      %5197 = vst.msk [vmem:[%s251 + $0x80] sm:$0xff] %vm255, %v5070
      %5198 = vst.msk [vmem:[%s251 + $0x88] sm:$0xff] %vm255, %v5072
      %5199 = vst.msk [vmem:[%s251 + $0x90] sm:$0xff] %vm255, %v5074
      %5200 = vst.msk [vmem:[%s251 + $0x98] sm:$0xff] %vm255, %v5076
      %5201 = vst.msk [vmem:[%s251 + $0xa0] sm:$0xff] %vm255, %v5078
      %5202 = vst.msk [vmem:[%s251 + $0xa8] sm:$0xff] %vm255, %v5080
      %5203 = vst.msk [vmem:[%s251 + $0xb0] sm:$0xff] %vm255, %v5082
      %5204 = vst.msk [vmem:[%s251 + $0xb8] sm:$0xff] %vm255, %v5084
      %5205 = vst.msk [vmem:[%s251 + $0xc0] sm:$0xff] %vm255, %v5086
      %5206 = vst.msk [vmem:[%s251 + $0xc8] sm:$0xff] %vm255, %v5088
      %5207 = vst.msk [vmem:[%s251 + $0xd0] sm:$0xff] %vm255, %v5090
      %5208 = vst.msk [vmem:[%s251 + $0xd8] sm:$0xff] %vm255, %v5092
      %5209 = vst.msk [vmem:[%s251 + $0xe0] sm:$0xff] %vm255, %v5094
      %5210 = vst.msk [vmem:[%s251 + $0xe8] sm:$0xff] %vm255, %v5096
      %5211 = vst.msk [vmem:[%s251 + $0xf0] sm:$0xff] %vm255, %v5098
      %5212 = vst.msk [vmem:[%s251 + $0xf8] sm:$0xff] %vm255, %v5100
      %5213 = vst.msk [vmem:[%s251 + $0x100] sm:$0xff] %vm255, %v5102
      %5214 = vst.msk [vmem:[%s251 + $0x108] sm:$0xff] %vm255, %v5104
      %5215 = vst.msk [vmem:[%s251 + $0x110] sm:$0xff] %vm255, %v5106
      %5216 = vst.msk [vmem:[%s251 + $0x118] sm:$0xff] %vm255, %v5108
      %5217 = vst.msk [vmem:[%s251 + $0x120] sm:$0xff] %vm255, %v5110
      %5218 = vst.msk [vmem:[%s251 + $0x128] sm:$0xff] %vm255, %v5112
      %5219 = vst.msk [vmem:[%s251 + $0x130] sm:$0xff] %vm255, %v5114
      %5220 = vst.msk [vmem:[%s251 + $0x138] sm:$0xff] %vm255, %v5116
      %5221 = vst.msk [vmem:[%s251 + $0x140] sm:$0xff] %vm255, %v5118
      %5222 = vst.msk [vmem:[%s251 + $0x148] sm:$0xff] %vm255, %v5120
      %5223 = vst.msk [vmem:[%s251 + $0x150] sm:$0xff] %vm255, %v5122
      %5224 = vst.msk [vmem:[%s251 + $0x158] sm:$0xff] %vm255, %v5124
      %5225 = vst.msk [vmem:[%s251 + $0x160] sm:$0xff] %vm255, %v5126
      %5226 = vst.msk [vmem:[%s251 + $0x168] sm:$0xff] %vm255, %v5128
      %5227 = vst.msk [vmem:[%s251 + $0x170] sm:$0xff] %vm255, %v5130
      %5228 = vst.msk [vmem:[%s251 + $0x178] sm:$0xff] %vm255, %v5132
      %p5229 = scmp.lt.s32.totalorder %s17, 1
      %s5230 = scalar_select %p5229, %s17, 1
      %s5231 = smul.addr %s5230, 48
      %s5232 = smul.addr %s5231, 8
      %s5233 = scalar_lea.vmem %s6, %s5232
      // Predicated region
      $region45: #{basic_block_forward.1} parent=43 // pred_check
        %p5234 = pneg %p166
      $region46: #{basic_block_forward.1} parent=43 // pred_check_branch
        %5236 = sbr.rel (%p5234) target = $region48
      $region47: #{basic_block_forward.1} parent=43 // pred_region
        _
      $region48: #{basic_block_forward.1} parent=43 // pred_fallthru
        _
    $region44: #{basic_block_forward.1} parent=5 // pred_fallthru
      _
    %p5237 = scmp.le.s32.totalorder 2, %s12
    // Predicated region
    $region49: #{basic_block_forward.1} parent=5 // pred_check
      %p5238 = pneg %p5237
    $region50: #{basic_block_forward.1} parent=5 // pred_check_branch
      %5240 = sbr.rel (%p5238) target = $region52
    $region51: #{basic_block_forward.1} parent=5 // pred_region
      %s5241 = ssub.s32 %s12, 2
      // Predicated region
      $region53: #{basic_block_forward.1} parent=51 // pred_check
        %p5242 = pneg %p172
      $region54: #{basic_block_forward.1} parent=51 // pred_check_branch
        %5244 = sbr.rel (%p5242) target = $region56
      $region55: #{basic_block_forward.1} parent=51 // pred_region
        %p5245 = scmp.lt.s32.totalorder %s18, 1
        %s5246 = scalar_select %p5245, %s18, 1
        %s5247 = smul.addr %s5246, 48
        %s5248 = smul.addr %s5247, 8
        %s5249 = scalar_lea.vmem %s6, %s5248
      $region56: #{basic_block_forward.1} parent=51 // pred_fallthru
        _
    $region52: #{basic_block_forward.1} parent=5 // pred_fallthru
      _
  $region6: #{basic_block_forward.1} parent=0 // loop_footer
    %s16 = sadd.s32 1, %s12
  $region7: #{basic_block_forward.1} parent=0 // loop_footer_branch
    %11 = sbr.rel target = $region3
  $region8: #{basic_block_forward.1} parent=0 // loop_exit
    _

</llo_original>
